<compile_context>
chip_gen: v5e
topology: v5e:2x2
jax: 0.10.0
libtpu: 0.0.40
codegen_flags: <defaults>
</compile_context>

<pallas_src>
import functools
import math

import jax
import jax.numpy as jnp
from jax.experimental import pallas as pl
from jax.experimental.pallas import tpu as pltpu


# ----------------------------- in-kernel helpers -----------------------------

def _mm(a, b):
    # x @ w with f32 accumulation on the MXU.
    return jnp.dot(a, b, preferred_element_type=jnp.float32)


def _layernorm(x, g, b, eps=1e-5):
    mean = jnp.mean(x, axis=-1, keepdims=True)
    var = jnp.mean((x - mean) ** 2, axis=-1, keepdims=True)
    return (x - mean) * jax.lax.rsqrt(var + eps) * g + b


def _mha(q_in, kv_in, w, b, *, n_heads, head_dim, same_qkv):
    """Multi-head attention on one batch element.

    q_in: (S_q, D), kv_in: (S_k, D).
    w: (D, 4D) packed [wq | wk | wv | wo];  b: (1, 4D) packed [bq|bk|bv|bo].
    Heads are contiguous D-slices (matches the PyTorch view/transpose).
    """
    D = n_heads * head_dim
    scale = 1.0 / math.sqrt(head_dim)

    if same_qkv:
        # Single lane-dense (S, D) @ (D, 4D=128) matmul covers q, k, v
        # (the wo columns ride along for free inside the same MXU tile).
        full = _mm(q_in, w) + b
        q, k, v = full[:, :D], full[:, D:2 * D], full[:, 2 * D:3 * D]
    else:
        fq = _mm(q_in, w) + b
        fkv = _mm(kv_in, w) + b
        q = fq[:, :D]
        k, v = fkv[:, D:2 * D], fkv[:, 2 * D:3 * D]

    # Head-batched tensors: (H, S, head_dim).
    qh = jnp.stack([q[:, h * head_dim:(h + 1) * head_dim] for h in range(n_heads)])
    kh = jnp.stack([k[:, h * head_dim:(h + 1) * head_dim] for h in range(n_heads)])
    vh = jnp.stack([v[:, h * head_dim:(h + 1) * head_dim] for h in range(n_heads)])

    # Scores + softmax batched over all heads at once.
    scores = jnp.einsum('hqd,hkd->hqk', qh, kh,
                        preferred_element_type=jnp.float32) * scale
    scores = scores - jnp.max(scores, axis=-1, keepdims=True)
    p = jnp.exp(scores)
    p = p / jnp.sum(p, axis=-1, keepdims=True)          # exact softmax
    ctx = jnp.einsum('hqk,hkd->hqd', p, vh,
                     preferred_element_type=jnp.float32)  # (H, S_q, head_dim)

    # Merge heads (columns ordered head0|head1|...) then ONE output matmul.
    merged = jnp.concatenate([ctx[h] for h in range(n_heads)], axis=-1)  # (S_q, D)
    return _mm(merged, w[:, 3 * D:]) + b[:, 3 * D:]


# ----------------------------- fused forward kernel -----------------------------

def _decoder_forward_kernel(
    x_ref, enc_ref,
    attn_w_ref,   # (n_blocks*2*D, 4D)  rows: [blk0 self, blk0 cross, blk1 self, ...]
    attn_b_ref,   # (n_blocks*2, 4D)
    ffw1_ref,     # (n_blocks*D, d_ff)
    ffw2_ref,     # (n_blocks*d_ff, D)
    vec_ref,      # (n_blocks*8 + 2, max(D, d_ff)) per-block:
                  #   [ln1_g, ln1_b, ln2_g, ln2_b, ln3_g, ln3_b, ff_b2, ff_b1]
                  # then final [ln_g, ln_b]
    final_ref,    # (D + 1, V_pad): rows 0..D-1 = proj_w, row D = proj_b
    out_ref,      # (S, V_pad)
    *, n_blocks, n_heads, d_model, d_ff,
):
    D = d_model
    head_dim = D // n_heads

    def vrow(r, width):
        return vec_ref[r:r + 1, :width]     # (1, width) static-slice load

    x = x_ref[...]        # (S, D)
    enc = enc_ref[...]    # (S_enc, D)

    for blk in range(n_blocks):            # static unroll over decoder blocks
        a = blk * 2                         # attention index (self), a+1 = cross
        vb = blk * 8

        ln1_g, ln1_b = vrow(vb + 0, D), vrow(vb + 1, D)
        ln2_g, ln2_b = vrow(vb + 2, D), vrow(vb + 3, D)
        ln3_g, ln3_b = vrow(vb + 4, D), vrow(vb + 5, D)
        ff_b2 = vrow(vb + 6, D)
        ff_b1 = vrow(vb + 7, d_ff)

        sw = attn_w_ref[a * D:(a + 1) * D, :]            # (D, 4D) self-attn
        sb = attn_b_ref[a:a + 1, :]                      # (1, 4D)
        cw = attn_w_ref[(a + 1) * D:(a + 2) * D, :]      # (D, 4D) cross-attn
        cb = attn_b_ref[a + 1:a + 2, :]

        w1 = ffw1_ref[blk * D:(blk + 1) * D, :]          # (D, d_ff)
        w2 = ffw2_ref[blk * d_ff:(blk + 1) * d_ff, :]    # (d_ff, D)

        # --- self-attention sub-layer:  x = ln1(residue1 + self_att(ln1(x))) ---
        residue1 = x
        xn = _layernorm(x, ln1_g, ln1_b)
        s = _mha(xn, xn, sw, sb, n_heads=n_heads, head_dim=head_dim, same_qkv=True)
        x = _layernorm(residue1 + s, ln1_g, ln1_b)

        # --- cross-attention sub-layer (double residual, per the reference) ---
        residue2 = x
        c = _mha(x, enc, cw, cb, n_heads=n_heads, head_dim=head_dim, same_qkv=False)
        x = _layernorm(c + residue2, ln2_g, ln2_b)
        x = x + residue2

        # --- feed-forward sub-layer:  x = ln3(ff(x)) + residue3 ---
        residue3 = x
        h = jnp.maximum(_mm(x, w1) + ff_b1, 0.0)
        f = _mm(h, w2) + ff_b2
        x = _layernorm(f, ln3_g, ln3_b) + residue3

    # --- final LayerNorm + vocab projection (lane-dense V_pad output) ---
    fln_g = vrow(n_blocks * 8 + 0, D)
    fln_b = vrow(n_blocks * 8 + 1, D)
    xn = _layernorm(x, fln_g, fln_b)
    pw = final_ref[:D, :]          # (D, V_pad)
    pb = final_ref[D:D + 1, :]     # (1, V_pad)
    out_ref[...] = _mm(xn, pw) + pb


# ----------------------------- wrapper -----------------------------

def _whole(arr):
    # Full (un-tiled) block, same for every grid step (DMA'd once).
    return pl.BlockSpec(arr.shape, lambda i: (0, 0))


def decoder_forward(output_ids, encoder_output, packed, *,
                    n_blocks, n_heads, d_ff, v_size):
    b, s = output_ids.shape
    D = packed["emb"].shape[1]
    s_enc = encoder_output.shape[1]
    v_pad = packed["final"].shape[1]

    # TODO(synk): embedding/position gathers stay in plain JAX (tiny tables; no
    # clean Pallas gather win at these sizes).
    tok = jnp.take(packed["emb"], output_ids, axis=0)          # (B, S, D)
    x2d = (tok + packed["pos"][:s][None, :, :]).reshape(b * s, D)
    enc2d = encoder_output.reshape(b * s_enc, D)

    kernel = functools.partial(_decoder_forward_kernel, n_blocks=n_blocks,
                               n_heads=n_heads, d_model=D, d_ff=d_ff)

    logits = pl.pallas_call(
        kernel,
        out_shape=jax.ShapeDtypeStruct((b * s, v_pad), jnp.float32),
        grid=(b,),
        in_specs=[
            pl.BlockSpec((s, D), lambda i: (i, 0)),
            pl.BlockSpec((s_enc, D), lambda i: (i, 0)),
            _whole(packed["attn_w"]),
            _whole(packed["attn_b"]),
            _whole(packed["ffw1"]),
            _whole(packed["ffw2"]),
            _whole(packed["vec"]),
            _whole(packed["final"]),
        ],
        out_specs=pl.BlockSpec((s, v_pad), lambda i: (i, 0)),
        compiler_params=pltpu.CompilerParams(
            dimension_semantics=("parallel",)),     # batch across TCs on v7x
    )(x2d, enc2d, packed["attn_w"], packed["attn_b"], packed["ffw1"],
      packed["ffw2"], packed["vec"], packed["final"])

    return logits[:, :v_size].reshape(b, s, v_size)


# ----------------------------- parameter init & packing -----------------------------

def xavier_uniform(key, d_in, d_out):
    bound = math.sqrt(6.0 / (d_in + d_out))
    # stored as (d_in, d_out): kernel computes x @ w (== torch x @ W.T)
    return jax.random.uniform(
        key, (d_in, d_out), jnp.float32, minval=-bound, maxval=bound)


def make_mha_params(key, d_model):
    ks = jax.random.split(key, 4)
    return {
        "wq": xavier_uniform(ks[0], d_model, d_model),
        "bq": jnp.zeros((d_model,), jnp.float32),
        "wk": xavier_uniform(ks[1], d_model, d_model),
        "bk": jnp.zeros((d_model,), jnp.float32),
        "wv": xavier_uniform(ks[2], d_model, d_model),
        "bv": jnp.zeros((d_model,), jnp.float32),
        "wo": xavier_uniform(ks[3], d_model, d_model),
        "bo": jnp.zeros((d_model,), jnp.float32),
    }


def make_block_params(key, d_model, d_ff):
    ks = jax.random.split(key, 4)
    return {
        "self": make_mha_params(ks[0], d_model),
        "cross": make_mha_params(ks[1], d_model),
        "ln1_g": jnp.ones((d_model,), jnp.float32),
        "ln1_b": jnp.zeros((d_model,), jnp.float32),
        "ln2_g": jnp.ones((d_model,), jnp.float32),
        "ln2_b": jnp.zeros((d_model,), jnp.float32),
        "ln3_g": jnp.ones((d_model,), jnp.float32),
        "ln3_b": jnp.zeros((d_model,), jnp.float32),
        "ff_w1": xavier_uniform(ks[2], d_model, d_ff),
        "ff_b1": jnp.zeros((d_ff,), jnp.float32),
        "ff_w2": xavier_uniform(ks[3], d_ff, d_model),
        "ff_b2": jnp.zeros((d_model,), jnp.float32),
    }


def make_decoder_params(key, v_size, max_seq, d_model, d_ff, n_blocks):
    ks = jax.random.split(key, 3 + n_blocks)
    return {
        "emb": jax.random.normal(ks[0], (v_size, d_model), jnp.float32),
        "pos": jax.random.normal(ks[1], (max_seq, d_model), jnp.float32),
        "blocks": [
            make_block_params(ks[3 + i], d_model, d_ff) for i in range(n_blocks)
        ],
        "ln_g": jnp.ones((d_model,), jnp.float32),
        "ln_b": jnp.zeros((d_model,), jnp.float32),
        "proj_w": jax.random.uniform(
            ks[2], (d_model, v_size), jnp.float32,
            minval=-1.0 / math.sqrt(d_model), maxval=1.0 / math.sqrt(d_model)),
        "proj_b": jnp.zeros((v_size,), jnp.float32),
    }


def pack_decoder_params(params):
    """One-time packing of all weights into a handful of kernel slabs."""
    D = params["emb"].shape[1]
    d_ff = params["blocks"][0]["ff_w1"].shape[1]
    W = max(D, d_ff)
    v_size = params["proj_w"].shape[1]
    v_pad = pl.cdiv(v_size, 128) * 128

    def pad_row(v, width):
        return jnp.pad(v, (0, width - v.shape[0])).reshape(1, width)

    attn_w_rows, attn_b_rows = [], []
    ffw1_rows, ffw2_rows, vec_rows = [], [], []
    for blk in params["blocks"]:
        for att in (blk["self"], blk["cross"]):
            attn_w_rows.append(jnp.concatenate(
                [att["wq"], att["wk"], att["wv"], att["wo"]], axis=1))   # (D, 4D)
            attn_b_rows.append(jnp.concatenate(
                [att["bq"], att["bk"], att["bv"], att["bo"]]).reshape(1, 4 * D))
        ffw1_rows.append(blk["ff_w1"])
        ffw2_rows.append(blk["ff_w2"])
        vec_rows += [pad_row(blk["ln1_g"], W), pad_row(blk["ln1_b"], W),
                     pad_row(blk["ln2_g"], W), pad_row(blk["ln2_b"], W),
                     pad_row(blk["ln3_g"], W), pad_row(blk["ln3_b"], W),
                     pad_row(blk["ff_b2"], W), pad_row(blk["ff_b1"], W)]
    vec_rows += [pad_row(params["ln_g"], W), pad_row(params["ln_b"], W)]

    proj_w_pad = jnp.pad(params["proj_w"], ((0, 0), (0, v_pad - v_size)))
    proj_b_pad = jnp.pad(params["proj_b"], (0, v_pad - v_size)).reshape(1, v_pad)

    return {
        "emb": params["emb"],
        "pos": params["pos"],
        "attn_w": jnp.concatenate(attn_w_rows, axis=0),   # (n_blocks*2*D, 4D)
        "attn_b": jnp.concatenate(attn_b_rows, axis=0),   # (n_blocks*2, 4D)
        "ffw1": jnp.concatenate(ffw1_rows, axis=0),       # (n_blocks*D, d_ff)
        "ffw2": jnp.concatenate(ffw2_rows, axis=0),       # (n_blocks*d_ff, D)
        "vec": jnp.concatenate(vec_rows, axis=0),         # (n_blocks*8+2, W)
        "final": jnp.concatenate([proj_w_pad, proj_b_pad], axis=0),  # (D+1, v_pad)
    }


# ----------------------------- main -----------------------------

if __name__ == "__main__":
    v_size = 50
    max_seq = 16
    d_model = 32
    d_ff = 64
    n_blocks = 2
    n_heads = 4
    batch = 2
    seq = 8

    key = jax.random.PRNGKey(0)
    k_param, k_ids, k_enc = jax.random.split(key, 3)

    raw_params = make_decoder_params(k_param, v_size, max_seq, d_model, d_ff, n_blocks)
    packed = pack_decoder_params(raw_params)          # one-time preprocessing

    output_ids = jax.random.randint(k_ids, (batch, seq), 0, v_size, dtype=jnp.int32)
    encoder_output = jax.random.normal(k_enc, (batch, seq, d_model), jnp.float32)

    fwd = jax.jit(functools.partial(decoder_forward, n_blocks=n_blocks,
                                    n_heads=n_heads, d_ff=d_ff, v_size=v_size))
    logits = fwd(output_ids, encoder_output, packed)
    jax.block_until_ready(logits)

    assert logits.shape == (batch, seq, v_size)
    assert logits.dtype == jnp.float32
    assert bool(jnp.all(jnp.isfinite(logits)))
    print("KERNEL_OK")
</pallas_src>

<mosaic_0001>
module attributes {stable_mosaic.version = 11 : i64} {
  func.func @_decoder_forward_kernel(%arg0: i32, %arg1: memref<8x32xf32, #tpu.memory_space<vmem>>, %arg2: memref<8x32xf32, #tpu.memory_space<vmem>>, %arg3: memref<128x128xf32, #tpu.memory_space<vmem>>, %arg4: memref<4x128xf32, #tpu.memory_space<vmem>>, %arg5: memref<64x64xf32, #tpu.memory_space<vmem>>, %arg6: memref<128x32xf32, #tpu.memory_space<vmem>>, %arg7: memref<18x64xf32, #tpu.memory_space<vmem>>, %arg8: memref<33x128xf32, #tpu.memory_space<vmem>>, %arg9: memref<8x128xf32, #tpu.memory_space<vmem>>) attributes {dimension_semantics = [#tpu.dimension_semantics<parallel>], iteration_bounds = array<i64: 2>, scalar_prefetch = 0 : i64, scratch_operands = 0 : i64, tpu.core_type = #tpu.core_type<tc>, window_params = [{transform_indices = @transform_0, window_bounds = array<i64: 8, 32>}, {transform_indices = @transform_1, window_bounds = array<i64: 8, 32>}, {pipeline_mode = #tpu.pipeline_mode<synchronous>, transform_indices = @transform_2, window_bounds = array<i64: 128, 128>}, {pipeline_mode = #tpu.pipeline_mode<synchronous>, transform_indices = @transform_3, window_bounds = array<i64: 4, 128>}, {pipeline_mode = #tpu.pipeline_mode<synchronous>, transform_indices = @transform_4, window_bounds = array<i64: 64, 64>}, {pipeline_mode = #tpu.pipeline_mode<synchronous>, transform_indices = @transform_5, window_bounds = array<i64: 128, 32>}, {pipeline_mode = #tpu.pipeline_mode<synchronous>, transform_indices = @transform_6, window_bounds = array<i64: 18, 64>}, {pipeline_mode = #tpu.pipeline_mode<synchronous>, transform_indices = @transform_7, window_bounds = array<i64: 33, 128>}, {transform_indices = @transform_8, window_bounds = array<i64: 8, 128>}]} {
    %c0 = arith.constant 0 : index
    %c0_0 = arith.constant 0 : index
    %0 = vector.load %arg1[%c0, %c0_0] : memref<8x32xf32, #tpu.memory_space<vmem>>, vector<8x32xf32>
    %c0_1 = arith.constant 0 : index
    %c0_2 = arith.constant 0 : index
    %1 = vector.load %arg2[%c0_1, %c0_2] : memref<8x32xf32, #tpu.memory_space<vmem>>, vector<8x32xf32>
    %c0_3 = arith.constant 0 : index
    %c0_4 = arith.constant 0 : index
    %2 = vector.load %arg7[%c0_3, %c0_4] : memref<18x64xf32, #tpu.memory_space<vmem>>, vector<1x32xf32>
    %c1 = arith.constant 1 : index
    %c0_5 = arith.constant 0 : index
    %3 = vector.load %arg7[%c1, %c0_5] : memref<18x64xf32, #tpu.memory_space<vmem>>, vector<1x32xf32>
    %c2 = arith.constant 2 : index
    %c0_6 = arith.constant 0 : index
    %4 = vector.load %arg7[%c2, %c0_6] : memref<18x64xf32, #tpu.memory_space<vmem>>, vector<1x32xf32>
    %c3 = arith.constant 3 : index
    %c0_7 = arith.constant 0 : index
    %5 = vector.load %arg7[%c3, %c0_7] : memref<18x64xf32, #tpu.memory_space<vmem>>, vector<1x32xf32>
    %c4 = arith.constant 4 : index
    %c0_8 = arith.constant 0 : index
    %6 = vector.load %arg7[%c4, %c0_8] : memref<18x64xf32, #tpu.memory_space<vmem>>, vector<1x32xf32>
    %c5 = arith.constant 5 : index
    %c0_9 = arith.constant 0 : index
    %7 = vector.load %arg7[%c5, %c0_9] : memref<18x64xf32, #tpu.memory_space<vmem>>, vector<1x32xf32>
    %c6 = arith.constant 6 : index
    %c0_10 = arith.constant 0 : index
    %8 = vector.load %arg7[%c6, %c0_10] : memref<18x64xf32, #tpu.memory_space<vmem>>, vector<1x32xf32>
    %c7 = arith.constant 7 : index
    %c0_11 = arith.constant 0 : index
    %9 = vector.load %arg7[%c7, %c0_11] : memref<18x64xf32, #tpu.memory_space<vmem>>, vector<1x64xf32>
    %c0_12 = arith.constant 0 : index
    %c0_13 = arith.constant 0 : index
    %10 = vector.load %arg3[%c0_12, %c0_13] : memref<128x128xf32, #tpu.memory_space<vmem>>, vector<32x128xf32>
    %c0_14 = arith.constant 0 : index
    %c0_15 = arith.constant 0 : index
    %11 = vector.load %arg4[%c0_14, %c0_15] : memref<4x128xf32, #tpu.memory_space<vmem>>, vector<1x128xf32>
    %c32 = arith.constant 32 : index
    %c0_16 = arith.constant 0 : index
    %12 = vector.load %arg3[%c32, %c0_16] : memref<128x128xf32, #tpu.memory_space<vmem>>, vector<32x128xf32>
    %c1_17 = arith.constant 1 : index
    %c0_18 = arith.constant 0 : index
    %13 = vector.load %arg4[%c1_17, %c0_18] : memref<4x128xf32, #tpu.memory_space<vmem>>, vector<1x128xf32>
    %c0_19 = arith.constant 0 : index
    %c0_20 = arith.constant 0 : index
    %14 = vector.load %arg5[%c0_19, %c0_20] : memref<64x64xf32, #tpu.memory_space<vmem>>, vector<32x64xf32>
    %c0_21 = arith.constant 0 : index
    %c0_22 = arith.constant 0 : index
    %15 = vector.load %arg6[%c0_21, %c0_22] : memref<128x32xf32, #tpu.memory_space<vmem>>, vector<64x32xf32>
    %cst = arith.constant dense<0.000000e+00> : vector<8xf32>
    %16 = vector.multi_reduction <add>, %0, %cst [1] : vector<8x32xf32> to vector<8xf32>
    %17 = vector.shape_cast %16 : vector<8xf32> to vector<8x1xf32>
    %cst_23 = arith.constant 3.200000e+01 : f32
    %18 = vector.broadcast %cst_23 : f32 to vector<8x1xf32>
    %19 = arith.divf %17, %18 : vector<8x1xf32>
    %20 = vector.broadcast %19 : vector<8x1xf32> to vector<8x32xf32>
    %21 = arith.subf %0, %20 : vector<8x32xf32>
    %22 = arith.mulf %21, %21 : vector<8x32xf32>
    %cst_24 = arith.constant dense<0.000000e+00> : vector<8xf32>
    %23 = vector.multi_reduction <add>, %22, %cst_24 [1] : vector<8x32xf32> to vector<8xf32>
    %24 = vector.shape_cast %23 : vector<8xf32> to vector<8x1xf32>
    %cst_25 = arith.constant 3.200000e+01 : f32
    %25 = vector.broadcast %cst_25 : f32 to vector<8x1xf32>
    %26 = arith.divf %24, %25 : vector<8x1xf32>
    %27 = vector.broadcast %19 : vector<8x1xf32> to vector<8x32xf32>
    %28 = arith.subf %0, %27 : vector<8x32xf32>
    %cst_26 = arith.constant 9.99999974E-6 : f32
    %29 = vector.broadcast %cst_26 : f32 to vector<8x1xf32>
    %30 = arith.addf %26, %29 : vector<8x1xf32>
    %31 = math.rsqrt %30 : vector<8x1xf32>
    %32 = vector.broadcast %31 : vector<8x1xf32> to vector<8x32xf32>
    %33 = arith.mulf %28, %32 : vector<8x32xf32>
    %34 = vector.broadcast %2 : vector<1x32xf32> to vector<8x32xf32>
    %35 = arith.mulf %33, %34 : vector<8x32xf32>
    %36 = vector.broadcast %3 : vector<1x32xf32> to vector<8x32xf32>
    %37 = arith.addf %35, %36 : vector<8x32xf32>
    %cst_27 = arith.constant dense<0.000000e+00> : vector<8x128xf32>
    %38 = tpu.matmul %37, %10, %cst_27 {dimension_numbers = #tpu.dot_dimension_numbers<[1], [0], [0], [1], [0, 0, 1, 1], [], []>} : vector<8x32xf32>, vector<32x128xf32>, vector<8x128xf32> -> vector<8x128xf32>
    %39 = vector.broadcast %11 : vector<1x128xf32> to vector<8x128xf32>
    %40 = arith.addf %38, %39 : vector<8x128xf32>
    %41 = vector.extract_strided_slice %40 {offsets = [0, 0], sizes = [8, 32], strides = [1, 1]} : vector<8x128xf32> to vector<8x32xf32>
    %42 = vector.extract_strided_slice %40 {offsets = [0, 32], sizes = [8, 32], strides = [1, 1]} : vector<8x128xf32> to vector<8x32xf32>
    %43 = vector.extract_strided_slice %40 {offsets = [0, 64], sizes = [8, 32], strides = [1, 1]} : vector<8x128xf32> to vector<8x32xf32>
    %44 = vector.extract_strided_slice %41 {offsets = [0, 0], sizes = [8, 8], strides = [1, 1]} : vector<8x32xf32> to vector<8x8xf32>
    %45 = vector.extract_strided_slice %41 {offsets = [0, 8], sizes = [8, 8], strides = [1, 1]} : vector<8x32xf32> to vector<8x8xf32>
    %46 = vector.extract_strided_slice %41 {offsets = [0, 16], sizes = [8, 8], strides = [1, 1]} : vector<8x32xf32> to vector<8x8xf32>
    %47 = vector.extract_strided_slice %41 {offsets = [0, 24], sizes = [8, 8], strides = [1, 1]} : vector<8x32xf32> to vector<8x8xf32>
    %48 = vector.shape_cast %44 : vector<8x8xf32> to vector<1x8x8xf32>
    %49 = vector.shape_cast %45 : vector<8x8xf32> to vector<1x8x8xf32>
    %50 = vector.shape_cast %46 : vector<8x8xf32> to vector<1x8x8xf32>
    %51 = vector.shape_cast %47 : vector<8x8xf32> to vector<1x8x8xf32>
    %52 = tpu.concatenate %48, %49, %50, %51 in 0 : vector<1x8x8xf32>, vector<1x8x8xf32>, vector<1x8x8xf32>, vector<1x8x8xf32> -> vector<4x8x8xf32>
    %53 = vector.extract_strided_slice %42 {offsets = [0, 0], sizes = [8, 8], strides = [1, 1]} : vector<8x32xf32> to vector<8x8xf32>
    %54 = vector.extract_strided_slice %42 {offsets = [0, 8], sizes = [8, 8], strides = [1, 1]} : vector<8x32xf32> to vector<8x8xf32>
    %55 = vector.extract_strided_slice %42 {offsets = [0, 16], sizes = [8, 8], strides = [1, 1]} : vector<8x32xf32> to vector<8x8xf32>
    %56 = vector.extract_strided_slice %42 {offsets = [0, 24], sizes = [8, 8], strides = [1, 1]} : vector<8x32xf32> to vector<8x8xf32>
    %57 = vector.shape_cast %53 : vector<8x8xf32> to vector<1x8x8xf32>
    %58 = vector.shape_cast %54 : vector<8x8xf32> to vector<1x8x8xf32>
    %59 = vector.shape_cast %55 : vector<8x8xf32> to vector<1x8x8xf32>
    %60 = vector.shape_cast %56 : vector<8x8xf32> to vector<1x8x8xf32>
    %61 = tpu.concatenate %57, %58, %59, %60 in 0 : vector<1x8x8xf32>, vector<1x8x8xf32>, vector<1x8x8xf32>, vector<1x8x8xf32> -> vector<4x8x8xf32>
    %62 = vector.extract_strided_slice %43 {offsets = [0, 0], sizes = [8, 8], strides = [1, 1]} : vector<8x32xf32> to vector<8x8xf32>
    %63 = vector.extract_strided_slice %43 {offsets = [0, 8], sizes = [8, 8], strides = [1, 1]} : vector<8x32xf32> to vector<8x8xf32>
    %64 = vector.extract_strided_slice %43 {offsets = [0, 16], sizes = [8, 8], strides = [1, 1]} : vector<8x32xf32> to vector<8x8xf32>
    %65 = vector.extract_strided_slice %43 {offsets = [0, 24], sizes = [8, 8], strides = [1, 1]} : vector<8x32xf32> to vector<8x8xf32>
    %66 = vector.shape_cast %62 : vector<8x8xf32> to vector<1x8x8xf32>
    %67 = vector.shape_cast %63 : vector<8x8xf32> to vector<1x8x8xf32>
    %68 = vector.shape_cast %64 : vector<8x8xf32> to vector<1x8x8xf32>
    %69 = vector.shape_cast %65 : vector<8x8xf32> to vector<1x8x8xf32>
    %70 = tpu.concatenate %66, %67, %68, %69 in 0 : vector<1x8x8xf32>, vector<1x8x8xf32>, vector<1x8x8xf32>, vector<1x8x8xf32> -> vector<4x8x8xf32>
    "tpu.trace_start"() <{level = 10 : i32, message = "hqd,hkd->hqk"}> : () -> ()
    %cst_28 = arith.constant dense<0.000000e+00> : vector<4x8x8xf32>
    %71 = tpu.matmul %52, %61, %cst_28 {dimension_numbers = #tpu.dot_dimension_numbers<[2], [2], [1], [1], [0, 0, 0, 1, 1, 1], [0], [0]>} : vector<4x8x8xf32>, vector<4x8x8xf32>, vector<4x8x8xf32> -> vector<4x8x8xf32>
    "tpu.trace_stop"() : () -> ()
    %cst_29 = arith.constant 0.353553385 : f32
    %72 = vector.broadcast %cst_29 : f32 to vector<4x8x8xf32>
    %73 = arith.mulf %71, %72 : vector<4x8x8xf32>
    %cst_30 = arith.constant dense<0xFF800000> : vector<4x8xf32>
    %74 = vector.multi_reduction <maximumf>, %73, %cst_30 [2] : vector<4x8x8xf32> to vector<4x8xf32>
    %75 = vector.shape_cast %74 : vector<4x8xf32> to vector<4x8x1xf32>
    %76 = vector.broadcast %75 : vector<4x8x1xf32> to vector<4x8x8xf32>
    %77 = arith.subf %73, %76 : vector<4x8x8xf32>
    %78 = math.exp %77 : vector<4x8x8xf32>
    %cst_31 = arith.constant dense<0.000000e+00> : vector<4x8xf32>
    %79 = vector.multi_reduction <add>, %78, %cst_31 [2] : vector<4x8x8xf32> to vector<4x8xf32>
    %80 = vector.shape_cast %79 : vector<4x8xf32> to vector<4x8x1xf32>
    %81 = vector.broadcast %80 : vector<4x8x1xf32> to vector<4x8x8xf32>
    %82 = arith.divf %78, %81 : vector<4x8x8xf32>
    "tpu.trace_start"() <{level = 10 : i32, message = "hqk,hkd->hqd"}> : () -> ()
    %cst_32 = arith.constant dense<0.000000e+00> : vector<4x8x8xf32>
    %83 = tpu.matmul %82, %70, %cst_32 {dimension_numbers = #tpu.dot_dimension_numbers<[2], [1], [1], [2], [0, 0, 0, 1, 1, 2], [0], [0]>} : vector<4x8x8xf32>, vector<4x8x8xf32>, vector<4x8x8xf32> -> vector<4x8x8xf32>
    "tpu.trace_stop"() : () -> ()
    %84 = vector.extract_strided_slice %83 {offsets = [0, 0, 0], sizes = [1, 8, 8], strides = [1, 1, 1]} : vector<4x8x8xf32> to vector<1x8x8xf32>
    %85 = vector.shape_cast %84 : vector<1x8x8xf32> to vector<8x8xf32>
    %86 = vector.extract_strided_slice %83 {offsets = [1, 0, 0], sizes = [1, 8, 8], strides = [1, 1, 1]} : vector<4x8x8xf32> to vector<1x8x8xf32>
    %87 = vector.shape_cast %86 : vector<1x8x8xf32> to vector<8x8xf32>
    %88 = vector.extract_strided_slice %83 {offsets = [2, 0, 0], sizes = [1, 8, 8], strides = [1, 1, 1]} : vector<4x8x8xf32> to vector<1x8x8xf32>
    %89 = vector.shape_cast %88 : vector<1x8x8xf32> to vector<8x8xf32>
    %90 = vector.extract_strided_slice %83 {offsets = [3, 0, 0], sizes = [1, 8, 8], strides = [1, 1, 1]} : vector<4x8x8xf32> to vector<1x8x8xf32>
    %91 = vector.shape_cast %90 : vector<1x8x8xf32> to vector<8x8xf32>
    %92 = tpu.concatenate %85, %87, %89, %91 in 1 : vector<8x8xf32>, vector<8x8xf32>, vector<8x8xf32>, vector<8x8xf32> -> vector<8x32xf32>
    %93 = vector.extract_strided_slice %10 {offsets = [0, 96], sizes = [32, 32], strides = [1, 1]} : vector<32x128xf32> to vector<32x32xf32>
    %cst_33 = arith.constant dense<0.000000e+00> : vector<8x32xf32>
    %94 = tpu.matmul %92, %93, %cst_33 {dimension_numbers = #tpu.dot_dimension_numbers<[1], [0], [0], [1], [0, 0, 1, 1], [], []>} : vector<8x32xf32>, vector<32x32xf32>, vector<8x32xf32> -> vector<8x32xf32>
    %95 = vector.extract_strided_slice %11 {offsets = [0, 96], sizes = [1, 32], strides = [1, 1]} : vector<1x128xf32> to vector<1x32xf32>
    %96 = vector.broadcast %95 : vector<1x32xf32> to vector<8x32xf32>
    %97 = arith.addf %94, %96 : vector<8x32xf32>
    %98 = arith.addf %0, %97 : vector<8x32xf32>
    %cst_34 = arith.constant dense<0.000000e+00> : vector<8xf32>
    %99 = vector.multi_reduction <add>, %98, %cst_34 [1] : vector<8x32xf32> to vector<8xf32>
    %100 = vector.shape_cast %99 : vector<8xf32> to vector<8x1xf32>
    %cst_35 = arith.constant 3.200000e+01 : f32
    %101 = vector.broadcast %cst_35 : f32 to vector<8x1xf32>
    %102 = arith.divf %100, %101 : vector<8x1xf32>
    %103 = vector.broadcast %102 : vector<8x1xf32> to vector<8x32xf32>
    %104 = arith.subf %98, %103 : vector<8x32xf32>
    %105 = arith.mulf %104, %104 : vector<8x32xf32>
    %cst_36 = arith.constant dense<0.000000e+00> : vector<8xf32>
    %106 = vector.multi_reduction <add>, %105, %cst_36 [1] : vector<8x32xf32> to vector<8xf32>
    %107 = vector.shape_cast %106 : vector<8xf32> to vector<8x1xf32>
    %cst_37 = arith.constant 3.200000e+01 : f32
    %108 = vector.broadcast %cst_37 : f32 to vector<8x1xf32>
    %109 = arith.divf %107, %108 : vector<8x1xf32>
    %110 = vector.broadcast %102 : vector<8x1xf32> to vector<8x32xf32>
    %111 = arith.subf %98, %110 : vector<8x32xf32>
    %cst_38 = arith.constant 9.99999974E-6 : f32
    %112 = vector.broadcast %cst_38 : f32 to vector<8x1xf32>
    %113 = arith.addf %109, %112 : vector<8x1xf32>
    %114 = math.rsqrt %113 : vector<8x1xf32>
    %115 = vector.broadcast %114 : vector<8x1xf32> to vector<8x32xf32>
    %116 = arith.mulf %111, %115 : vector<8x32xf32>
    %117 = vector.broadcast %2 : vector<1x32xf32> to vector<8x32xf32>
    %118 = arith.mulf %116, %117 : vector<8x32xf32>
    %119 = vector.broadcast %3 : vector<1x32xf32> to vector<8x32xf32>
    %120 = arith.addf %118, %119 : vector<8x32xf32>
    %cst_39 = arith.constant dense<0.000000e+00> : vector<8x128xf32>
    %121 = tpu.matmul %120, %12, %cst_39 {dimension_numbers = #tpu.dot_dimension_numbers<[1], [0], [0], [1], [0, 0, 1, 1], [], []>} : vector<8x32xf32>, vector<32x128xf32>, vector<8x128xf32> -> vector<8x128xf32>
    %122 = vector.broadcast %13 : vector<1x128xf32> to vector<8x128xf32>
    %123 = arith.addf %121, %122 : vector<8x128xf32>
    %cst_40 = arith.constant dense<0.000000e+00> : vector<8x128xf32>
    %124 = tpu.matmul %1, %12, %cst_40 {dimension_numbers = #tpu.dot_dimension_numbers<[1], [0], [0], [1], [0, 0, 1, 1], [], []>} : vector<8x32xf32>, vector<32x128xf32>, vector<8x128xf32> -> vector<8x128xf32>
    %125 = vector.broadcast %13 : vector<1x128xf32> to vector<8x128xf32>
    %126 = arith.addf %124, %125 : vector<8x128xf32>
    %127 = vector.extract_strided_slice %123 {offsets = [0, 0], sizes = [8, 32], strides = [1, 1]} : vector<8x128xf32> to vector<8x32xf32>
    %128 = vector.extract_strided_slice %126 {offsets = [0, 32], sizes = [8, 32], strides = [1, 1]} : vector<8x128xf32> to vector<8x32xf32>
    %129 = vector.extract_strided_slice %126 {offsets = [0, 64], sizes = [8, 32], strides = [1, 1]} : vector<8x128xf32> to vector<8x32xf32>
    %130 = vector.extract_strided_slice %127 {offsets = [0, 0], sizes = [8, 8], strides = [1, 1]} : vector<8x32xf32> to vector<8x8xf32>
    %131 = vector.extract_strided_slice %127 {offsets = [0, 8], sizes = [8, 8], strides = [1, 1]} : vector<8x32xf32> to vector<8x8xf32>
    %132 = vector.extract_strided_slice %127 {offsets = [0, 16], sizes = [8, 8], strides = [1, 1]} : vector<8x32xf32> to vector<8x8xf32>
    %133 = vector.extract_strided_slice %127 {offsets = [0, 24], sizes = [8, 8], strides = [1, 1]} : vector<8x32xf32> to vector<8x8xf32>
    %134 = vector.shape_cast %130 : vector<8x8xf32> to vector<1x8x8xf32>
    %135 = vector.shape_cast %131 : vector<8x8xf32> to vector<1x8x8xf32>
    %136 = vector.shape_cast %132 : vector<8x8xf32> to vector<1x8x8xf32>
    %137 = vector.shape_cast %133 : vector<8x8xf32> to vector<1x8x8xf32>
    %138 = tpu.concatenate %134, %135, %136, %137 in 0 : vector<1x8x8xf32>, vector<1x8x8xf32>, vector<1x8x8xf32>, vector<1x8x8xf32> -> vector<4x8x8xf32>
    %139 = vector.extract_strided_slice %128 {offsets = [0, 0], sizes = [8, 8], strides = [1, 1]} : vector<8x32xf32> to vector<8x8xf32>
    %140 = vector.extract_strided_slice %128 {offsets = [0, 8], sizes = [8, 8], strides = [1, 1]} : vector<8x32xf32> to vector<8x8xf32>
    %141 = vector.extract_strided_slice %128 {offsets = [0, 16], sizes = [8, 8], strides = [1, 1]} : vector<8x32xf32> to vector<8x8xf32>
    %142 = vector.extract_strided_slice %128 {offsets = [0, 24], sizes = [8, 8], strides = [1, 1]} : vector<8x32xf32> to vector<8x8xf32>
    %143 = vector.shape_cast %139 : vector<8x8xf32> to vector<1x8x8xf32>
    %144 = vector.shape_cast %140 : vector<8x8xf32> to vector<1x8x8xf32>
    %145 = vector.shape_cast %141 : vector<8x8xf32> to vector<1x8x8xf32>
    %146 = vector.shape_cast %142 : vector<8x8xf32> to vector<1x8x8xf32>
    %147 = tpu.concatenate %143, %144, %145, %146 in 0 : vector<1x8x8xf32>, vector<1x8x8xf32>, vector<1x8x8xf32>, vector<1x8x8xf32> -> vector<4x8x8xf32>
    %148 = vector.extract_strided_slice %129 {offsets = [0, 0], sizes = [8, 8], strides = [1, 1]} : vector<8x32xf32> to vector<8x8xf32>
    %149 = vector.extract_strided_slice %129 {offsets = [0, 8], sizes = [8, 8], strides = [1, 1]} : vector<8x32xf32> to vector<8x8xf32>
    %150 = vector.extract_strided_slice %129 {offsets = [0, 16], sizes = [8, 8], strides = [1, 1]} : vector<8x32xf32> to vector<8x8xf32>
    %151 = vector.extract_strided_slice %129 {offsets = [0, 24], sizes = [8, 8], strides = [1, 1]} : vector<8x32xf32> to vector<8x8xf32>
    %152 = vector.shape_cast %148 : vector<8x8xf32> to vector<1x8x8xf32>
    %153 = vector.shape_cast %149 : vector<8x8xf32> to vector<1x8x8xf32>
    %154 = vector.shape_cast %150 : vector<8x8xf32> to vector<1x8x8xf32>
    %155 = vector.shape_cast %151 : vector<8x8xf32> to vector<1x8x8xf32>
    %156 = tpu.concatenate %152, %153, %154, %155 in 0 : vector<1x8x8xf32>, vector<1x8x8xf32>, vector<1x8x8xf32>, vector<1x8x8xf32> -> vector<4x8x8xf32>
    "tpu.trace_start"() <{level = 10 : i32, message = "hqd,hkd->hqk"}> : () -> ()
    %cst_41 = arith.constant dense<0.000000e+00> : vector<4x8x8xf32>
    %157 = tpu.matmul %138, %147, %cst_41 {dimension_numbers = #tpu.dot_dimension_numbers<[2], [2], [1], [1], [0, 0, 0, 1, 1, 1], [0], [0]>} : vector<4x8x8xf32>, vector<4x8x8xf32>, vector<4x8x8xf32> -> vector<4x8x8xf32>
    "tpu.trace_stop"() : () -> ()
    %cst_42 = arith.constant 0.353553385 : f32
    %158 = vector.broadcast %cst_42 : f32 to vector<4x8x8xf32>
    %159 = arith.mulf %157, %158 : vector<4x8x8xf32>
    %cst_43 = arith.constant dense<0xFF800000> : vector<4x8xf32>
    %160 = vector.multi_reduction <maximumf>, %159, %cst_43 [2] : vector<4x8x8xf32> to vector<4x8xf32>
    %161 = vector.shape_cast %160 : vector<4x8xf32> to vector<4x8x1xf32>
    %162 = vector.broadcast %161 : vector<4x8x1xf32> to vector<4x8x8xf32>
    %163 = arith.subf %159, %162 : vector<4x8x8xf32>
    %164 = math.exp %163 : vector<4x8x8xf32>
    %cst_44 = arith.constant dense<0.000000e+00> : vector<4x8xf32>
    %165 = vector.multi_reduction <add>, %164, %cst_44 [2] : vector<4x8x8xf32> to vector<4x8xf32>
    %166 = vector.shape_cast %165 : vector<4x8xf32> to vector<4x8x1xf32>
    %167 = vector.broadcast %166 : vector<4x8x1xf32> to vector<4x8x8xf32>
    %168 = arith.divf %164, %167 : vector<4x8x8xf32>
    "tpu.trace_start"() <{level = 10 : i32, message = "hqk,hkd->hqd"}> : () -> ()
    %cst_45 = arith.constant dense<0.000000e+00> : vector<4x8x8xf32>
    %169 = tpu.matmul %168, %156, %cst_45 {dimension_numbers = #tpu.dot_dimension_numbers<[2], [1], [1], [2], [0, 0, 0, 1, 1, 2], [0], [0]>} : vector<4x8x8xf32>, vector<4x8x8xf32>, vector<4x8x8xf32> -> vector<4x8x8xf32>
    "tpu.trace_stop"() : () -> ()
    %170 = vector.extract_strided_slice %169 {offsets = [0, 0, 0], sizes = [1, 8, 8], strides = [1, 1, 1]} : vector<4x8x8xf32> to vector<1x8x8xf32>
    %171 = vector.shape_cast %170 : vector<1x8x8xf32> to vector<8x8xf32>
    %172 = vector.extract_strided_slice %169 {offsets = [1, 0, 0], sizes = [1, 8, 8], strides = [1, 1, 1]} : vector<4x8x8xf32> to vector<1x8x8xf32>
    %173 = vector.shape_cast %172 : vector<1x8x8xf32> to vector<8x8xf32>
    %174 = vector.extract_strided_slice %169 {offsets = [2, 0, 0], sizes = [1, 8, 8], strides = [1, 1, 1]} : vector<4x8x8xf32> to vector<1x8x8xf32>
    %175 = vector.shape_cast %174 : vector<1x8x8xf32> to vector<8x8xf32>
    %176 = vector.extract_strided_slice %169 {offsets = [3, 0, 0], sizes = [1, 8, 8], strides = [1, 1, 1]} : vector<4x8x8xf32> to vector<1x8x8xf32>
    %177 = vector.shape_cast %176 : vector<1x8x8xf32> to vector<8x8xf32>
    %178 = tpu.concatenate %171, %173, %175, %177 in 1 : vector<8x8xf32>, vector<8x8xf32>, vector<8x8xf32>, vector<8x8xf32> -> vector<8x32xf32>
    %179 = vector.extract_strided_slice %12 {offsets = [0, 96], sizes = [32, 32], strides = [1, 1]} : vector<32x128xf32> to vector<32x32xf32>
    %cst_46 = arith.constant dense<0.000000e+00> : vector<8x32xf32>
    %180 = tpu.matmul %178, %179, %cst_46 {dimension_numbers = #tpu.dot_dimension_numbers<[1], [0], [0], [1], [0, 0, 1, 1], [], []>} : vector<8x32xf32>, vector<32x32xf32>, vector<8x32xf32> -> vector<8x32xf32>
    %181 = vector.extract_strided_slice %13 {offsets = [0, 96], sizes = [1, 32], strides = [1, 1]} : vector<1x128xf32> to vector<1x32xf32>
    %182 = vector.broadcast %181 : vector<1x32xf32> to vector<8x32xf32>
    %183 = arith.addf %180, %182 : vector<8x32xf32>
    %184 = arith.addf %183, %120 : vector<8x32xf32>
    %cst_47 = arith.constant dense<0.000000e+00> : vector<8xf32>
    %185 = vector.multi_reduction <add>, %184, %cst_47 [1] : vector<8x32xf32> to vector<8xf32>
    %186 = vector.shape_cast %185 : vector<8xf32> to vector<8x1xf32>
    %cst_48 = arith.constant 3.200000e+01 : f32
    %187 = vector.broadcast %cst_48 : f32 to vector<8x1xf32>
    %188 = arith.divf %186, %187 : vector<8x1xf32>
    %189 = vector.broadcast %188 : vector<8x1xf32> to vector<8x32xf32>
    %190 = arith.subf %184, %189 : vector<8x32xf32>
    %191 = arith.mulf %190, %190 : vector<8x32xf32>
    %cst_49 = arith.constant dense<0.000000e+00> : vector<8xf32>
    %192 = vector.multi_reduction <add>, %191, %cst_49 [1] : vector<8x32xf32> to vector<8xf32>
    %193 = vector.shape_cast %192 : vector<8xf32> to vector<8x1xf32>
    %cst_50 = arith.constant 3.200000e+01 : f32
    %194 = vector.broadcast %cst_50 : f32 to vector<8x1xf32>
    %195 = arith.divf %193, %194 : vector<8x1xf32>
    %196 = vector.broadcast %188 : vector<8x1xf32> to vector<8x32xf32>
    %197 = arith.subf %184, %196 : vector<8x32xf32>
    %cst_51 = arith.constant 9.99999974E-6 : f32
    %198 = vector.broadcast %cst_51 : f32 to vector<8x1xf32>
    %199 = arith.addf %195, %198 : vector<8x1xf32>
    %200 = math.rsqrt %199 : vector<8x1xf32>
    %201 = vector.broadcast %200 : vector<8x1xf32> to vector<8x32xf32>
    %202 = arith.mulf %197, %201 : vector<8x32xf32>
    %203 = vector.broadcast %4 : vector<1x32xf32> to vector<8x32xf32>
    %204 = arith.mulf %202, %203 : vector<8x32xf32>
    %205 = vector.broadcast %5 : vector<1x32xf32> to vector<8x32xf32>
    %206 = arith.addf %204, %205 : vector<8x32xf32>
    %207 = arith.addf %206, %120 : vector<8x32xf32>
    %cst_52 = arith.constant dense<0.000000e+00> : vector<8x64xf32>
    %208 = tpu.matmul %207, %14, %cst_52 {dimension_numbers = #tpu.dot_dimension_numbers<[1], [0], [0], [1], [0, 0, 1, 1], [], []>} : vector<8x32xf32>, vector<32x64xf32>, vector<8x64xf32> -> vector<8x64xf32>
    %209 = vector.broadcast %9 : vector<1x64xf32> to vector<8x64xf32>
    %210 = arith.addf %208, %209 : vector<8x64xf32>
    %cst_53 = arith.constant 0.000000e+00 : f32
    %211 = vector.broadcast %cst_53 : f32 to vector<8x64xf32>
    %212 = arith.maximumf %210, %211 : vector<8x64xf32>
    %cst_54 = arith.constant dense<0.000000e+00> : vector<8x32xf32>
    %213 = tpu.matmul %212, %15, %cst_54 {dimension_numbers = #tpu.dot_dimension_numbers<[1], [0], [0], [1], [0, 0, 1, 1], [], []>} : vector<8x64xf32>, vector<64x32xf32>, vector<8x32xf32> -> vector<8x32xf32>
    %214 = vector.broadcast %8 : vector<1x32xf32> to vector<8x32xf32>
    %215 = arith.addf %213, %214 : vector<8x32xf32>
    %cst_55 = arith.constant dense<0.000000e+00> : vector<8xf32>
    %216 = vector.multi_reduction <add>, %215, %cst_55 [1] : vector<8x32xf32> to vector<8xf32>
    %217 = vector.shape_cast %216 : vector<8xf32> to vector<8x1xf32>
    %cst_56 = arith.constant 3.200000e+01 : f32
    %218 = vector.broadcast %cst_56 : f32 to vector<8x1xf32>
    %219 = arith.divf %217, %218 : vector<8x1xf32>
    %220 = vector.broadcast %219 : vector<8x1xf32> to vector<8x32xf32>
    %221 = arith.subf %215, %220 : vector<8x32xf32>
    %222 = arith.mulf %221, %221 : vector<8x32xf32>
    %cst_57 = arith.constant dense<0.000000e+00> : vector<8xf32>
    %223 = vector.multi_reduction <add>, %222, %cst_57 [1] : vector<8x32xf32> to vector<8xf32>
    %224 = vector.shape_cast %223 : vector<8xf32> to vector<8x1xf32>
    %cst_58 = arith.constant 3.200000e+01 : f32
    %225 = vector.broadcast %cst_58 : f32 to vector<8x1xf32>
    %226 = arith.divf %224, %225 : vector<8x1xf32>
    %227 = vector.broadcast %219 : vector<8x1xf32> to vector<8x32xf32>
    %228 = arith.subf %215, %227 : vector<8x32xf32>
    %cst_59 = arith.constant 9.99999974E-6 : f32
    %229 = vector.broadcast %cst_59 : f32 to vector<8x1xf32>
    %230 = arith.addf %226, %229 : vector<8x1xf32>
    %231 = math.rsqrt %230 : vector<8x1xf32>
    %232 = vector.broadcast %231 : vector<8x1xf32> to vector<8x32xf32>
    %233 = arith.mulf %228, %232 : vector<8x32xf32>
    %234 = vector.broadcast %6 : vector<1x32xf32> to vector<8x32xf32>
    %235 = arith.mulf %233, %234 : vector<8x32xf32>
    %236 = vector.broadcast %7 : vector<1x32xf32> to vector<8x32xf32>
    %237 = arith.addf %235, %236 : vector<8x32xf32>
    %238 = arith.addf %237, %207 : vector<8x32xf32>
    %c8 = arith.constant 8 : index
    %c0_60 = arith.constant 0 : index
    %239 = vector.load %arg7[%c8, %c0_60] : memref<18x64xf32, #tpu.memory_space<vmem>>, vector<1x32xf32>
    %c9 = arith.constant 9 : index
    %c0_61 = arith.constant 0 : index
    %240 = vector.load %arg7[%c9, %c0_61] : memref<18x64xf32, #tpu.memory_space<vmem>>, vector<1x32xf32>
    %c10 = arith.constant 10 : index
    %c0_62 = arith.constant 0 : index
    %241 = vector.load %arg7[%c10, %c0_62] : memref<18x64xf32, #tpu.memory_space<vmem>>, vector<1x32xf32>
    %c11 = arith.constant 11 : index
    %c0_63 = arith.constant 0 : index
    %242 = vector.load %arg7[%c11, %c0_63] : memref<18x64xf32, #tpu.memory_space<vmem>>, vector<1x32xf32>
    %c12 = arith.constant 12 : index
    %c0_64 = arith.constant 0 : index
    %243 = vector.load %arg7[%c12, %c0_64] : memref<18x64xf32, #tpu.memory_space<vmem>>, vector<1x32xf32>
    %c13 = arith.constant 13 : index
    %c0_65 = arith.constant 0 : index
    %244 = vector.load %arg7[%c13, %c0_65] : memref<18x64xf32, #tpu.memory_space<vmem>>, vector<1x32xf32>
    %c14 = arith.constant 14 : index
    %c0_66 = arith.constant 0 : index
    %245 = vector.load %arg7[%c14, %c0_66] : memref<18x64xf32, #tpu.memory_space<vmem>>, vector<1x32xf32>
    %c15 = arith.constant 15 : index
    %c0_67 = arith.constant 0 : index
    %246 = vector.load %arg7[%c15, %c0_67] : memref<18x64xf32, #tpu.memory_space<vmem>>, vector<1x64xf32>
    %c64 = arith.constant 64 : index
    %c0_68 = arith.constant 0 : index
    %247 = vector.load %arg3[%c64, %c0_68] : memref<128x128xf32, #tpu.memory_space<vmem>>, vector<32x128xf32>
    %c2_69 = arith.constant 2 : index
    %c0_70 = arith.constant 0 : index
    %248 = vector.load %arg4[%c2_69, %c0_70] : memref<4x128xf32, #tpu.memory_space<vmem>>, vector<1x128xf32>
    %c96 = arith.constant 96 : index
    %c0_71 = arith.constant 0 : index
    %249 = vector.load %arg3[%c96, %c0_71] : memref<128x128xf32, #tpu.memory_space<vmem>>, vector<32x128xf32>
    %c3_72 = arith.constant 3 : index
    %c0_73 = arith.constant 0 : index
    %250 = vector.load %arg4[%c3_72, %c0_73] : memref<4x128xf32, #tpu.memory_space<vmem>>, vector<1x128xf32>
    %c32_74 = arith.constant 32 : index
    %c0_75 = arith.constant 0 : index
    %251 = vector.load %arg5[%c32_74, %c0_75] : memref<64x64xf32, #tpu.memory_space<vmem>>, vector<32x64xf32>
    %c64_76 = arith.constant 64 : index
    %c0_77 = arith.constant 0 : index
    %252 = vector.load %arg6[%c64_76, %c0_77] : memref<128x32xf32, #tpu.memory_space<vmem>>, vector<64x32xf32>
    %cst_78 = arith.constant dense<0.000000e+00> : vector<8xf32>
    %253 = vector.multi_reduction <add>, %238, %cst_78 [1] : vector<8x32xf32> to vector<8xf32>
    %254 = vector.shape_cast %253 : vector<8xf32> to vector<8x1xf32>
    %cst_79 = arith.constant 3.200000e+01 : f32
    %255 = vector.broadcast %cst_79 : f32 to vector<8x1xf32>
    %256 = arith.divf %254, %255 : vector<8x1xf32>
    %257 = vector.broadcast %256 : vector<8x1xf32> to vector<8x32xf32>
    %258 = arith.subf %238, %257 : vector<8x32xf32>
    %259 = arith.mulf %258, %258 : vector<8x32xf32>
    %cst_80 = arith.constant dense<0.000000e+00> : vector<8xf32>
    %260 = vector.multi_reduction <add>, %259, %cst_80 [1] : vector<8x32xf32> to vector<8xf32>
    %261 = vector.shape_cast %260 : vector<8xf32> to vector<8x1xf32>
    %cst_81 = arith.constant 3.200000e+01 : f32
    %262 = vector.broadcast %cst_81 : f32 to vector<8x1xf32>
    %263 = arith.divf %261, %262 : vector<8x1xf32>
    %264 = vector.broadcast %256 : vector<8x1xf32> to vector<8x32xf32>
    %265 = arith.subf %238, %264 : vector<8x32xf32>
    %cst_82 = arith.constant 9.99999974E-6 : f32
    %266 = vector.broadcast %cst_82 : f32 to vector<8x1xf32>
    %267 = arith.addf %263, %266 : vector<8x1xf32>
    %268 = math.rsqrt %267 : vector<8x1xf32>
    %269 = vector.broadcast %268 : vector<8x1xf32> to vector<8x32xf32>
    %270 = arith.mulf %265, %269 : vector<8x32xf32>
    %271 = vector.broadcast %239 : vector<1x32xf32> to vector<8x32xf32>
    %272 = arith.mulf %270, %271 : vector<8x32xf32>
    %273 = vector.broadcast %240 : vector<1x32xf32> to vector<8x32xf32>
    %274 = arith.addf %272, %273 : vector<8x32xf32>
    %cst_83 = arith.constant dense<0.000000e+00> : vector<8x128xf32>
    %275 = tpu.matmul %274, %247, %cst_83 {dimension_numbers = #tpu.dot_dimension_numbers<[1], [0], [0], [1], [0, 0, 1, 1], [], []>} : vector<8x32xf32>, vector<32x128xf32>, vector<8x128xf32> -> vector<8x128xf32>
    %276 = vector.broadcast %248 : vector<1x128xf32> to vector<8x128xf32>
    %277 = arith.addf %275, %276 : vector<8x128xf32>
    %278 = vector.extract_strided_slice %277 {offsets = [0, 0], sizes = [8, 32], strides = [1, 1]} : vector<8x128xf32> to vector<8x32xf32>
    %279 = vector.extract_strided_slice %277 {offsets = [0, 32], sizes = [8, 32], strides = [1, 1]} : vector<8x128xf32> to vector<8x32xf32>
    %280 = vector.extract_strided_slice %277 {offsets = [0, 64], sizes = [8, 32], strides = [1, 1]} : vector<8x128xf32> to vector<8x32xf32>
    %281 = vector.extract_strided_slice %278 {offsets = [0, 0], sizes = [8, 8], strides = [1, 1]} : vector<8x32xf32> to vector<8x8xf32>
    %282 = vector.extract_strided_slice %278 {offsets = [0, 8], sizes = [8, 8], strides = [1, 1]} : vector<8x32xf32> to vector<8x8xf32>
    %283 = vector.extract_strided_slice %278 {offsets = [0, 16], sizes = [8, 8], strides = [1, 1]} : vector<8x32xf32> to vector<8x8xf32>
    %284 = vector.extract_strided_slice %278 {offsets = [0, 24], sizes = [8, 8], strides = [1, 1]} : vector<8x32xf32> to vector<8x8xf32>
    %285 = vector.shape_cast %281 : vector<8x8xf32> to vector<1x8x8xf32>
    %286 = vector.shape_cast %282 : vector<8x8xf32> to vector<1x8x8xf32>
    %287 = vector.shape_cast %283 : vector<8x8xf32> to vector<1x8x8xf32>
    %288 = vector.shape_cast %284 : vector<8x8xf32> to vector<1x8x8xf32>
    %289 = tpu.concatenate %285, %286, %287, %288 in 0 : vector<1x8x8xf32>, vector<1x8x8xf32>, vector<1x8x8xf32>, vector<1x8x8xf32> -> vector<4x8x8xf32>
    %290 = vector.extract_strided_slice %279 {offsets = [0, 0], sizes = [8, 8], strides = [1, 1]} : vector<8x32xf32> to vector<8x8xf32>
    %291 = vector.extract_strided_slice %279 {offsets = [0, 8], sizes = [8, 8], strides = [1, 1]} : vector<8x32xf32> to vector<8x8xf32>
    %292 = vector.extract_strided_slice %279 {offsets = [0, 16], sizes = [8, 8], strides = [1, 1]} : vector<8x32xf32> to vector<8x8xf32>
    %293 = vector.extract_strided_slice %279 {offsets = [0, 24], sizes = [8, 8], strides = [1, 1]} : vector<8x32xf32> to vector<8x8xf32>
    %294 = vector.shape_cast %290 : vector<8x8xf32> to vector<1x8x8xf32>
    %295 = vector.shape_cast %291 : vector<8x8xf32> to vector<1x8x8xf32>
    %296 = vector.shape_cast %292 : vector<8x8xf32> to vector<1x8x8xf32>
    %297 = vector.shape_cast %293 : vector<8x8xf32> to vector<1x8x8xf32>
    %298 = tpu.concatenate %294, %295, %296, %297 in 0 : vector<1x8x8xf32>, vector<1x8x8xf32>, vector<1x8x8xf32>, vector<1x8x8xf32> -> vector<4x8x8xf32>
    %299 = vector.extract_strided_slice %280 {offsets = [0, 0], sizes = [8, 8], strides = [1, 1]} : vector<8x32xf32> to vector<8x8xf32>
    %300 = vector.extract_strided_slice %280 {offsets = [0, 8], sizes = [8, 8], strides = [1, 1]} : vector<8x32xf32> to vector<8x8xf32>
    %301 = vector.extract_strided_slice %280 {offsets = [0, 16], sizes = [8, 8], strides = [1, 1]} : vector<8x32xf32> to vector<8x8xf32>
    %302 = vector.extract_strided_slice %280 {offsets = [0, 24], sizes = [8, 8], strides = [1, 1]} : vector<8x32xf32> to vector<8x8xf32>
    %303 = vector.shape_cast %299 : vector<8x8xf32> to vector<1x8x8xf32>
    %304 = vector.shape_cast %300 : vector<8x8xf32> to vector<1x8x8xf32>
    %305 = vector.shape_cast %301 : vector<8x8xf32> to vector<1x8x8xf32>
    %306 = vector.shape_cast %302 : vector<8x8xf32> to vector<1x8x8xf32>
    %307 = tpu.concatenate %303, %304, %305, %306 in 0 : vector<1x8x8xf32>, vector<1x8x8xf32>, vector<1x8x8xf32>, vector<1x8x8xf32> -> vector<4x8x8xf32>
    "tpu.trace_start"() <{level = 10 : i32, message = "hqd,hkd->hqk"}> : () -> ()
    %cst_84 = arith.constant dense<0.000000e+00> : vector<4x8x8xf32>
    %308 = tpu.matmul %289, %298, %cst_84 {dimension_numbers = #tpu.dot_dimension_numbers<[2], [2], [1], [1], [0, 0, 0, 1, 1, 1], [0], [0]>} : vector<4x8x8xf32>, vector<4x8x8xf32>, vector<4x8x8xf32> -> vector<4x8x8xf32>
    "tpu.trace_stop"() : () -> ()
    %cst_85 = arith.constant 0.353553385 : f32
    %309 = vector.broadcast %cst_85 : f32 to vector<4x8x8xf32>
    %310 = arith.mulf %308, %309 : vector<4x8x8xf32>
    %cst_86 = arith.constant dense<0xFF800000> : vector<4x8xf32>
    %311 = vector.multi_reduction <maximumf>, %310, %cst_86 [2] : vector<4x8x8xf32> to vector<4x8xf32>
    %312 = vector.shape_cast %311 : vector<4x8xf32> to vector<4x8x1xf32>
    %313 = vector.broadcast %312 : vector<4x8x1xf32> to vector<4x8x8xf32>
    %314 = arith.subf %310, %313 : vector<4x8x8xf32>
    %315 = math.exp %314 : vector<4x8x8xf32>
    %cst_87 = arith.constant dense<0.000000e+00> : vector<4x8xf32>
    %316 = vector.multi_reduction <add>, %315, %cst_87 [2] : vector<4x8x8xf32> to vector<4x8xf32>
    %317 = vector.shape_cast %316 : vector<4x8xf32> to vector<4x8x1xf32>
    %318 = vector.broadcast %317 : vector<4x8x1xf32> to vector<4x8x8xf32>
    %319 = arith.divf %315, %318 : vector<4x8x8xf32>
    "tpu.trace_start"() <{level = 10 : i32, message = "hqk,hkd->hqd"}> : () -> ()
    %cst_88 = arith.constant dense<0.000000e+00> : vector<4x8x8xf32>
    %320 = tpu.matmul %319, %307, %cst_88 {dimension_numbers = #tpu.dot_dimension_numbers<[2], [1], [1], [2], [0, 0, 0, 1, 1, 2], [0], [0]>} : vector<4x8x8xf32>, vector<4x8x8xf32>, vector<4x8x8xf32> -> vector<4x8x8xf32>
    "tpu.trace_stop"() : () -> ()
    %321 = vector.extract_strided_slice %320 {offsets = [0, 0, 0], sizes = [1, 8, 8], strides = [1, 1, 1]} : vector<4x8x8xf32> to vector<1x8x8xf32>
    %322 = vector.shape_cast %321 : vector<1x8x8xf32> to vector<8x8xf32>
    %323 = vector.extract_strided_slice %320 {offsets = [1, 0, 0], sizes = [1, 8, 8], strides = [1, 1, 1]} : vector<4x8x8xf32> to vector<1x8x8xf32>
    %324 = vector.shape_cast %323 : vector<1x8x8xf32> to vector<8x8xf32>
    %325 = vector.extract_strided_slice %320 {offsets = [2, 0, 0], sizes = [1, 8, 8], strides = [1, 1, 1]} : vector<4x8x8xf32> to vector<1x8x8xf32>
    %326 = vector.shape_cast %325 : vector<1x8x8xf32> to vector<8x8xf32>
    %327 = vector.extract_strided_slice %320 {offsets = [3, 0, 0], sizes = [1, 8, 8], strides = [1, 1, 1]} : vector<4x8x8xf32> to vector<1x8x8xf32>
    %328 = vector.shape_cast %327 : vector<1x8x8xf32> to vector<8x8xf32>
    %329 = tpu.concatenate %322, %324, %326, %328 in 1 : vector<8x8xf32>, vector<8x8xf32>, vector<8x8xf32>, vector<8x8xf32> -> vector<8x32xf32>
    %330 = vector.extract_strided_slice %247 {offsets = [0, 96], sizes = [32, 32], strides = [1, 1]} : vector<32x128xf32> to vector<32x32xf32>
    %cst_89 = arith.constant dense<0.000000e+00> : vector<8x32xf32>
    %331 = tpu.matmul %329, %330, %cst_89 {dimension_numbers = #tpu.dot_dimension_numbers<[1], [0], [0], [1], [0, 0, 1, 1], [], []>} : vector<8x32xf32>, vector<32x32xf32>, vector<8x32xf32> -> vector<8x32xf32>
    %332 = vector.extract_strided_slice %248 {offsets = [0, 96], sizes = [1, 32], strides = [1, 1]} : vector<1x128xf32> to vector<1x32xf32>
    %333 = vector.broadcast %332 : vector<1x32xf32> to vector<8x32xf32>
    %334 = arith.addf %331, %333 : vector<8x32xf32>
    %335 = arith.addf %238, %334 : vector<8x32xf32>
    %cst_90 = arith.constant dense<0.000000e+00> : vector<8xf32>
    %336 = vector.multi_reduction <add>, %335, %cst_90 [1] : vector<8x32xf32> to vector<8xf32>
    %337 = vector.shape_cast %336 : vector<8xf32> to vector<8x1xf32>
    %cst_91 = arith.constant 3.200000e+01 : f32
    %338 = vector.broadcast %cst_91 : f32 to vector<8x1xf32>
    %339 = arith.divf %337, %338 : vector<8x1xf32>
    %340 = vector.broadcast %339 : vector<8x1xf32> to vector<8x32xf32>
    %341 = arith.subf %335, %340 : vector<8x32xf32>
    %342 = arith.mulf %341, %341 : vector<8x32xf32>
    %cst_92 = arith.constant dense<0.000000e+00> : vector<8xf32>
    %343 = vector.multi_reduction <add>, %342, %cst_92 [1] : vector<8x32xf32> to vector<8xf32>
    %344 = vector.shape_cast %343 : vector<8xf32> to vector<8x1xf32>
    %cst_93 = arith.constant 3.200000e+01 : f32
    %345 = vector.broadcast %cst_93 : f32 to vector<8x1xf32>
    %346 = arith.divf %344, %345 : vector<8x1xf32>
    %347 = vector.broadcast %339 : vector<8x1xf32> to vector<8x32xf32>
    %348 = arith.subf %335, %347 : vector<8x32xf32>
    %cst_94 = arith.constant 9.99999974E-6 : f32
    %349 = vector.broadcast %cst_94 : f32 to vector<8x1xf32>
    %350 = arith.addf %346, %349 : vector<8x1xf32>
    %351 = math.rsqrt %350 : vector<8x1xf32>
    %352 = vector.broadcast %351 : vector<8x1xf32> to vector<8x32xf32>
    %353 = arith.mulf %348, %352 : vector<8x32xf32>
    %354 = vector.broadcast %239 : vector<1x32xf32> to vector<8x32xf32>
    %355 = arith.mulf %353, %354 : vector<8x32xf32>
    %356 = vector.broadcast %240 : vector<1x32xf32> to vector<8x32xf32>
    %357 = arith.addf %355, %356 : vector<8x32xf32>
    %cst_95 = arith.constant dense<0.000000e+00> : vector<8x128xf32>
    %358 = tpu.matmul %357, %249, %cst_95 {dimension_numbers = #tpu.dot_dimension_numbers<[1], [0], [0], [1], [0, 0, 1, 1], [], []>} : vector<8x32xf32>, vector<32x128xf32>, vector<8x128xf32> -> vector<8x128xf32>
    %359 = vector.broadcast %250 : vector<1x128xf32> to vector<8x128xf32>
    %360 = arith.addf %358, %359 : vector<8x128xf32>
    %cst_96 = arith.constant dense<0.000000e+00> : vector<8x128xf32>
    %361 = tpu.matmul %1, %249, %cst_96 {dimension_numbers = #tpu.dot_dimension_numbers<[1], [0], [0], [1], [0, 0, 1, 1], [], []>} : vector<8x32xf32>, vector<32x128xf32>, vector<8x128xf32> -> vector<8x128xf32>
    %362 = vector.broadcast %250 : vector<1x128xf32> to vector<8x128xf32>
    %363 = arith.addf %361, %362 : vector<8x128xf32>
    %364 = vector.extract_strided_slice %360 {offsets = [0, 0], sizes = [8, 32], strides = [1, 1]} : vector<8x128xf32> to vector<8x32xf32>
    %365 = vector.extract_strided_slice %363 {offsets = [0, 32], sizes = [8, 32], strides = [1, 1]} : vector<8x128xf32> to vector<8x32xf32>
    %366 = vector.extract_strided_slice %363 {offsets = [0, 64], sizes = [8, 32], strides = [1, 1]} : vector<8x128xf32> to vector<8x32xf32>
    %367 = vector.extract_strided_slice %364 {offsets = [0, 0], sizes = [8, 8], strides = [1, 1]} : vector<8x32xf32> to vector<8x8xf32>
    %368 = vector.extract_strided_slice %364 {offsets = [0, 8], sizes = [8, 8], strides = [1, 1]} : vector<8x32xf32> to vector<8x8xf32>
    %369 = vector.extract_strided_slice %364 {offsets = [0, 16], sizes = [8, 8], strides = [1, 1]} : vector<8x32xf32> to vector<8x8xf32>
    %370 = vector.extract_strided_slice %364 {offsets = [0, 24], sizes = [8, 8], strides = [1, 1]} : vector<8x32xf32> to vector<8x8xf32>
    %371 = vector.shape_cast %367 : vector<8x8xf32> to vector<1x8x8xf32>
    %372 = vector.shape_cast %368 : vector<8x8xf32> to vector<1x8x8xf32>
    %373 = vector.shape_cast %369 : vector<8x8xf32> to vector<1x8x8xf32>
    %374 = vector.shape_cast %370 : vector<8x8xf32> to vector<1x8x8xf32>
    %375 = tpu.concatenate %371, %372, %373, %374 in 0 : vector<1x8x8xf32>, vector<1x8x8xf32>, vector<1x8x8xf32>, vector<1x8x8xf32> -> vector<4x8x8xf32>
    %376 = vector.extract_strided_slice %365 {offsets = [0, 0], sizes = [8, 8], strides = [1, 1]} : vector<8x32xf32> to vector<8x8xf32>
    %377 = vector.extract_strided_slice %365 {offsets = [0, 8], sizes = [8, 8], strides = [1, 1]} : vector<8x32xf32> to vector<8x8xf32>
    %378 = vector.extract_strided_slice %365 {offsets = [0, 16], sizes = [8, 8], strides = [1, 1]} : vector<8x32xf32> to vector<8x8xf32>
    %379 = vector.extract_strided_slice %365 {offsets = [0, 24], sizes = [8, 8], strides = [1, 1]} : vector<8x32xf32> to vector<8x8xf32>
    %380 = vector.shape_cast %376 : vector<8x8xf32> to vector<1x8x8xf32>
    %381 = vector.shape_cast %377 : vector<8x8xf32> to vector<1x8x8xf32>
    %382 = vector.shape_cast %378 : vector<8x8xf32> to vector<1x8x8xf32>
    %383 = vector.shape_cast %379 : vector<8x8xf32> to vector<1x8x8xf32>
    %384 = tpu.concatenate %380, %381, %382, %383 in 0 : vector<1x8x8xf32>, vector<1x8x8xf32>, vector<1x8x8xf32>, vector<1x8x8xf32> -> vector<4x8x8xf32>
    %385 = vector.extract_strided_slice %366 {offsets = [0, 0], sizes = [8, 8], strides = [1, 1]} : vector<8x32xf32> to vector<8x8xf32>
    %386 = vector.extract_strided_slice %366 {offsets = [0, 8], sizes = [8, 8], strides = [1, 1]} : vector<8x32xf32> to vector<8x8xf32>
    %387 = vector.extract_strided_slice %366 {offsets = [0, 16], sizes = [8, 8], strides = [1, 1]} : vector<8x32xf32> to vector<8x8xf32>
    %388 = vector.extract_strided_slice %366 {offsets = [0, 24], sizes = [8, 8], strides = [1, 1]} : vector<8x32xf32> to vector<8x8xf32>
    %389 = vector.shape_cast %385 : vector<8x8xf32> to vector<1x8x8xf32>
    %390 = vector.shape_cast %386 : vector<8x8xf32> to vector<1x8x8xf32>
    %391 = vector.shape_cast %387 : vector<8x8xf32> to vector<1x8x8xf32>
    %392 = vector.shape_cast %388 : vector<8x8xf32> to vector<1x8x8xf32>
    %393 = tpu.concatenate %389, %390, %391, %392 in 0 : vector<1x8x8xf32>, vector<1x8x8xf32>, vector<1x8x8xf32>, vector<1x8x8xf32> -> vector<4x8x8xf32>
    "tpu.trace_start"() <{level = 10 : i32, message = "hqd,hkd->hqk"}> : () -> ()
    %cst_97 = arith.constant dense<0.000000e+00> : vector<4x8x8xf32>
    %394 = tpu.matmul %375, %384, %cst_97 {dimension_numbers = #tpu.dot_dimension_numbers<[2], [2], [1], [1], [0, 0, 0, 1, 1, 1], [0], [0]>} : vector<4x8x8xf32>, vector<4x8x8xf32>, vector<4x8x8xf32> -> vector<4x8x8xf32>
    "tpu.trace_stop"() : () -> ()
    %cst_98 = arith.constant 0.353553385 : f32
    %395 = vector.broadcast %cst_98 : f32 to vector<4x8x8xf32>
    %396 = arith.mulf %394, %395 : vector<4x8x8xf32>
    %cst_99 = arith.constant dense<0xFF800000> : vector<4x8xf32>
    %397 = vector.multi_reduction <maximumf>, %396, %cst_99 [2] : vector<4x8x8xf32> to vector<4x8xf32>
    %398 = vector.shape_cast %397 : vector<4x8xf32> to vector<4x8x1xf32>
    %399 = vector.broadcast %398 : vector<4x8x1xf32> to vector<4x8x8xf32>
    %400 = arith.subf %396, %399 : vector<4x8x8xf32>
    %401 = math.exp %400 : vector<4x8x8xf32>
    %cst_100 = arith.constant dense<0.000000e+00> : vector<4x8xf32>
    %402 = vector.multi_reduction <add>, %401, %cst_100 [2] : vector<4x8x8xf32> to vector<4x8xf32>
    %403 = vector.shape_cast %402 : vector<4x8xf32> to vector<4x8x1xf32>
    %404 = vector.broadcast %403 : vector<4x8x1xf32> to vector<4x8x8xf32>
    %405 = arith.divf %401, %404 : vector<4x8x8xf32>
    "tpu.trace_start"() <{level = 10 : i32, message = "hqk,hkd->hqd"}> : () -> ()
    %cst_101 = arith.constant dense<0.000000e+00> : vector<4x8x8xf32>
    %406 = tpu.matmul %405, %393, %cst_101 {dimension_numbers = #tpu.dot_dimension_numbers<[2], [1], [1], [2], [0, 0, 0, 1, 1, 2], [0], [0]>} : vector<4x8x8xf32>, vector<4x8x8xf32>, vector<4x8x8xf32> -> vector<4x8x8xf32>
    "tpu.trace_stop"() : () -> ()
    %407 = vector.extract_strided_slice %406 {offsets = [0, 0, 0], sizes = [1, 8, 8], strides = [1, 1, 1]} : vector<4x8x8xf32> to vector<1x8x8xf32>
    %408 = vector.shape_cast %407 : vector<1x8x8xf32> to vector<8x8xf32>
    %409 = vector.extract_strided_slice %406 {offsets = [1, 0, 0], sizes = [1, 8, 8], strides = [1, 1, 1]} : vector<4x8x8xf32> to vector<1x8x8xf32>
    %410 = vector.shape_cast %409 : vector<1x8x8xf32> to vector<8x8xf32>
    %411 = vector.extract_strided_slice %406 {offsets = [2, 0, 0], sizes = [1, 8, 8], strides = [1, 1, 1]} : vector<4x8x8xf32> to vector<1x8x8xf32>
    %412 = vector.shape_cast %411 : vector<1x8x8xf32> to vector<8x8xf32>
    %413 = vector.extract_strided_slice %406 {offsets = [3, 0, 0], sizes = [1, 8, 8], strides = [1, 1, 1]} : vector<4x8x8xf32> to vector<1x8x8xf32>
    %414 = vector.shape_cast %413 : vector<1x8x8xf32> to vector<8x8xf32>
    %415 = tpu.concatenate %408, %410, %412, %414 in 1 : vector<8x8xf32>, vector<8x8xf32>, vector<8x8xf32>, vector<8x8xf32> -> vector<8x32xf32>
    %416 = vector.extract_strided_slice %249 {offsets = [0, 96], sizes = [32, 32], strides = [1, 1]} : vector<32x128xf32> to vector<32x32xf32>
    %cst_102 = arith.constant dense<0.000000e+00> : vector<8x32xf32>
    %417 = tpu.matmul %415, %416, %cst_102 {dimension_numbers = #tpu.dot_dimension_numbers<[1], [0], [0], [1], [0, 0, 1, 1], [], []>} : vector<8x32xf32>, vector<32x32xf32>, vector<8x32xf32> -> vector<8x32xf32>
    %418 = vector.extract_strided_slice %250 {offsets = [0, 96], sizes = [1, 32], strides = [1, 1]} : vector<1x128xf32> to vector<1x32xf32>
    %419 = vector.broadcast %418 : vector<1x32xf32> to vector<8x32xf32>
    %420 = arith.addf %417, %419 : vector<8x32xf32>
    %421 = arith.addf %420, %357 : vector<8x32xf32>
    %cst_103 = arith.constant dense<0.000000e+00> : vector<8xf32>
    %422 = vector.multi_reduction <add>, %421, %cst_103 [1] : vector<8x32xf32> to vector<8xf32>
    %423 = vector.shape_cast %422 : vector<8xf32> to vector<8x1xf32>
    %cst_104 = arith.constant 3.200000e+01 : f32
    %424 = vector.broadcast %cst_104 : f32 to vector<8x1xf32>
    %425 = arith.divf %423, %424 : vector<8x1xf32>
    %426 = vector.broadcast %425 : vector<8x1xf32> to vector<8x32xf32>
    %427 = arith.subf %421, %426 : vector<8x32xf32>
    %428 = arith.mulf %427, %427 : vector<8x32xf32>
    %cst_105 = arith.constant dense<0.000000e+00> : vector<8xf32>
    %429 = vector.multi_reduction <add>, %428, %cst_105 [1] : vector<8x32xf32> to vector<8xf32>
    %430 = vector.shape_cast %429 : vector<8xf32> to vector<8x1xf32>
    %cst_106 = arith.constant 3.200000e+01 : f32
    %431 = vector.broadcast %cst_106 : f32 to vector<8x1xf32>
    %432 = arith.divf %430, %431 : vector<8x1xf32>
    %433 = vector.broadcast %425 : vector<8x1xf32> to vector<8x32xf32>
    %434 = arith.subf %421, %433 : vector<8x32xf32>
    %cst_107 = arith.constant 9.99999974E-6 : f32
    %435 = vector.broadcast %cst_107 : f32 to vector<8x1xf32>
    %436 = arith.addf %432, %435 : vector<8x1xf32>
    %437 = math.rsqrt %436 : vector<8x1xf32>
    %438 = vector.broadcast %437 : vector<8x1xf32> to vector<8x32xf32>
    %439 = arith.mulf %434, %438 : vector<8x32xf32>
    %440 = vector.broadcast %241 : vector<1x32xf32> to vector<8x32xf32>
    %441 = arith.mulf %439, %440 : vector<8x32xf32>
    %442 = vector.broadcast %242 : vector<1x32xf32> to vector<8x32xf32>
    %443 = arith.addf %441, %442 : vector<8x32xf32>
    %444 = arith.addf %443, %357 : vector<8x32xf32>
    %cst_108 = arith.constant dense<0.000000e+00> : vector<8x64xf32>
    %445 = tpu.matmul %444, %251, %cst_108 {dimension_numbers = #tpu.dot_dimension_numbers<[1], [0], [0], [1], [0, 0, 1, 1], [], []>} : vector<8x32xf32>, vector<32x64xf32>, vector<8x64xf32> -> vector<8x64xf32>
    %446 = vector.broadcast %246 : vector<1x64xf32> to vector<8x64xf32>
    %447 = arith.addf %445, %446 : vector<8x64xf32>
    %cst_109 = arith.constant 0.000000e+00 : f32
    %448 = vector.broadcast %cst_109 : f32 to vector<8x64xf32>
    %449 = arith.maximumf %447, %448 : vector<8x64xf32>
    %cst_110 = arith.constant dense<0.000000e+00> : vector<8x32xf32>
    %450 = tpu.matmul %449, %252, %cst_110 {dimension_numbers = #tpu.dot_dimension_numbers<[1], [0], [0], [1], [0, 0, 1, 1], [], []>} : vector<8x64xf32>, vector<64x32xf32>, vector<8x32xf32> -> vector<8x32xf32>
    %451 = vector.broadcast %245 : vector<1x32xf32> to vector<8x32xf32>
    %452 = arith.addf %450, %451 : vector<8x32xf32>
    %cst_111 = arith.constant dense<0.000000e+00> : vector<8xf32>
    %453 = vector.multi_reduction <add>, %452, %cst_111 [1] : vector<8x32xf32> to vector<8xf32>
    %454 = vector.shape_cast %453 : vector<8xf32> to vector<8x1xf32>
    %cst_112 = arith.constant 3.200000e+01 : f32
    %455 = vector.broadcast %cst_112 : f32 to vector<8x1xf32>
    %456 = arith.divf %454, %455 : vector<8x1xf32>
    %457 = vector.broadcast %456 : vector<8x1xf32> to vector<8x32xf32>
    %458 = arith.subf %452, %457 : vector<8x32xf32>
    %459 = arith.mulf %458, %458 : vector<8x32xf32>
    %cst_113 = arith.constant dense<0.000000e+00> : vector<8xf32>
    %460 = vector.multi_reduction <add>, %459, %cst_113 [1] : vector<8x32xf32> to vector<8xf32>
    %461 = vector.shape_cast %460 : vector<8xf32> to vector<8x1xf32>
    %cst_114 = arith.constant 3.200000e+01 : f32
    %462 = vector.broadcast %cst_114 : f32 to vector<8x1xf32>
    %463 = arith.divf %461, %462 : vector<8x1xf32>
    %464 = vector.broadcast %456 : vector<8x1xf32> to vector<8x32xf32>
    %465 = arith.subf %452, %464 : vector<8x32xf32>
    %cst_115 = arith.constant 9.99999974E-6 : f32
    %466 = vector.broadcast %cst_115 : f32 to vector<8x1xf32>
    %467 = arith.addf %463, %466 : vector<8x1xf32>
    %468 = math.rsqrt %467 : vector<8x1xf32>
    %469 = vector.broadcast %468 : vector<8x1xf32> to vector<8x32xf32>
    %470 = arith.mulf %465, %469 : vector<8x32xf32>
    %471 = vector.broadcast %243 : vector<1x32xf32> to vector<8x32xf32>
    %472 = arith.mulf %470, %471 : vector<8x32xf32>
    %473 = vector.broadcast %244 : vector<1x32xf32> to vector<8x32xf32>
    %474 = arith.addf %472, %473 : vector<8x32xf32>
    %475 = arith.addf %474, %444 : vector<8x32xf32>
    %c16 = arith.constant 16 : index
    %c0_116 = arith.constant 0 : index
    %476 = vector.load %arg7[%c16, %c0_116] : memref<18x64xf32, #tpu.memory_space<vmem>>, vector<1x32xf32>
    %c17 = arith.constant 17 : index
    %c0_117 = arith.constant 0 : index
    %477 = vector.load %arg7[%c17, %c0_117] : memref<18x64xf32, #tpu.memory_space<vmem>>, vector<1x32xf32>
    %cst_118 = arith.constant dense<0.000000e+00> : vector<8xf32>
    %478 = vector.multi_reduction <add>, %475, %cst_118 [1] : vector<8x32xf32> to vector<8xf32>
    %479 = vector.shape_cast %478 : vector<8xf32> to vector<8x1xf32>
    %cst_119 = arith.constant 3.200000e+01 : f32
    %480 = vector.broadcast %cst_119 : f32 to vector<8x1xf32>
    %481 = arith.divf %479, %480 : vector<8x1xf32>
    %482 = vector.broadcast %481 : vector<8x1xf32> to vector<8x32xf32>
    %483 = arith.subf %475, %482 : vector<8x32xf32>
    %484 = arith.mulf %483, %483 : vector<8x32xf32>
    %cst_120 = arith.constant dense<0.000000e+00> : vector<8xf32>
    %485 = vector.multi_reduction <add>, %484, %cst_120 [1] : vector<8x32xf32> to vector<8xf32>
    %486 = vector.shape_cast %485 : vector<8xf32> to vector<8x1xf32>
    %cst_121 = arith.constant 3.200000e+01 : f32
    %487 = vector.broadcast %cst_121 : f32 to vector<8x1xf32>
    %488 = arith.divf %486, %487 : vector<8x1xf32>
    %489 = vector.broadcast %481 : vector<8x1xf32> to vector<8x32xf32>
    %490 = arith.subf %475, %489 : vector<8x32xf32>
    %cst_122 = arith.constant 9.99999974E-6 : f32
    %491 = vector.broadcast %cst_122 : f32 to vector<8x1xf32>
    %492 = arith.addf %488, %491 : vector<8x1xf32>
    %493 = math.rsqrt %492 : vector<8x1xf32>
    %494 = vector.broadcast %493 : vector<8x1xf32> to vector<8x32xf32>
    %495 = arith.mulf %490, %494 : vector<8x32xf32>
    %496 = vector.broadcast %476 : vector<1x32xf32> to vector<8x32xf32>
    %497 = arith.mulf %495, %496 : vector<8x32xf32>
    %498 = vector.broadcast %477 : vector<1x32xf32> to vector<8x32xf32>
    %499 = arith.addf %497, %498 : vector<8x32xf32>
    %c0_123 = arith.constant 0 : index
    %c0_124 = arith.constant 0 : index
    %500 = vector.load %arg8[%c0_123, %c0_124] : memref<33x128xf32, #tpu.memory_space<vmem>>, vector<32x128xf32>
    %c32_125 = arith.constant 32 : index
    %c0_126 = arith.constant 0 : index
    %501 = vector.load %arg8[%c32_125, %c0_126] : memref<33x128xf32, #tpu.memory_space<vmem>>, vector<1x128xf32>
    %cst_127 = arith.constant dense<0.000000e+00> : vector<8x128xf32>
    %502 = tpu.matmul %499, %500, %cst_127 {dimension_numbers = #tpu.dot_dimension_numbers<[1], [0], [0], [1], [0, 0, 1, 1], [], []>} : vector<8x32xf32>, vector<32x128xf32>, vector<8x128xf32> -> vector<8x128xf32>
    %503 = vector.broadcast %501 : vector<1x128xf32> to vector<8x128xf32>
    %504 = arith.addf %502, %503 : vector<8x128xf32>
    %c0_128 = arith.constant 0 : index
    %c0_129 = arith.constant 0 : index
    %505 = vector.load %arg9[%c0_128, %c0_129] : memref<8x128xf32, #tpu.memory_space<vmem>>, vector<8x128xf32>
    tpu.vector_store %arg9[%c0_128, %c0_129], %504 {strides = array<i32>} : memref<8x128xf32, #tpu.memory_space<vmem>>, vector<8x128xf32>,
    return
  }
  func.func @transform_0(%arg0: i32) -> (i32, i32) {
    %c0_i32 = arith.constant 0 : i32
    %c0_i32_0 = arith.constant 0 : i32
    return %arg0, %c0_i32 : i32, i32
  }
  func.func @transform_1(%arg0: i32) -> (i32, i32) {
    %c0_i32 = arith.constant 0 : i32
    %c0_i32_0 = arith.constant 0 : i32
    return %arg0, %c0_i32 : i32, i32
  }
  func.func @transform_2(%arg0: i32) -> (i32, i32) {
    %c0_i32 = arith.constant 0 : i32
    %c0_i32_0 = arith.constant 0 : i32
    %c0_i32_1 = arith.constant 0 : i32
    return %c0_i32, %c0_i32_0 : i32, i32
  }
  func.func @transform_3(%arg0: i32) -> (i32, i32) {
    %c0_i32 = arith.constant 0 : i32
    %c0_i32_0 = arith.constant 0 : i32
    %c0_i32_1 = arith.constant 0 : i32
    return %c0_i32, %c0_i32_0 : i32, i32
  }
  func.func @transform_4(%arg0: i32) -> (i32, i32) {
    %c0_i32 = arith.constant 0 : i32
    %c0_i32_0 = arith.constant 0 : i32
    %c0_i32_1 = arith.constant 0 : i32
    return %c0_i32, %c0_i32_0 : i32, i32
  }
  func.func @transform_5(%arg0: i32) -> (i32, i32) {
    %c0_i32 = arith.constant 0 : i32
    %c0_i32_0 = arith.constant 0 : i32
    %c0_i32_1 = arith.constant 0 : i32
    return %c0_i32, %c0_i32_0 : i32, i32
  }
  func.func @transform_6(%arg0: i32) -> (i32, i32) {
    %c0_i32 = arith.constant 0 : i32
    %c0_i32_0 = arith.constant 0 : i32
    %c0_i32_1 = arith.constant 0 : i32
    return %c0_i32, %c0_i32_0 : i32, i32
  }
  func.func @transform_7(%arg0: i32) -> (i32, i32) {
    %c0_i32 = arith.constant 0 : i32
    %c0_i32_0 = arith.constant 0 : i32
    %c0_i32_1 = arith.constant 0 : i32
    return %c0_i32, %c0_i32_0 : i32, i32
  }
  func.func @transform_8(%arg0: i32) -> (i32, i32) {
    %c0_i32 = arith.constant 0 : i32
    %c0_i32_0 = arith.constant 0 : i32
    return %arg0, %c0_i32 : i32, i32
  }
}

</mosaic_0001>

<llo_original>
// kernel: decoder_forward.1
$region0: #{decoder_forward.1}
  #allocation0 [shape = 'u32[]', space=smem, size = 0x4, offset = 0x4, fixed_abs, tag = 'smem constant byte address 0x4 - core index']
  #allocation1 [shape = 'u32[72,128]{1,0:T(1,128)}', space=vmem, size = 0x9000, scoped, tag = 'internal scratch']
  %s0 = inlined_call_operand.vmem [shape: f32[16,32], index: 0, kind: input, shape index: {}]
  %s1 = inlined_call_operand.vmem [shape: f32[16,32], index: 1, kind: input, shape index: {}]
  %s2 = inlined_call_operand.vmem [shape: f32[128,128], index: 2, kind: input, shape index: {}]
  %s3 = inlined_call_operand.vmem [shape: f32[4,128], index: 3, kind: input, shape index: {}]
  %s4 = inlined_call_operand.vmem [shape: f32[64,64], index: 4, kind: input, shape index: {}]
  %s5 = inlined_call_operand.vmem [shape: f32[128,32], index: 5, kind: input, shape index: {}]
  %s6 = inlined_call_operand.vmem [shape: f32[18,64], index: 6, kind: input, shape index: {}]
  %s7 = inlined_call_operand.vmem [shape: f32[33,128], index: 7, kind: input, shape index: {}]
  %s8 = inlined_call_operand.vmem [shape: f32[16,128], index: 8, kind: output, shape index: {}]
  %s9 = sld [smem:[#allocation0]]
  $region65: #{decoder_forward.1} parent=0
    _
  %s11 = ssub.s32 1, %s9
  %s12 = scalar_select 0, %s11, %s9
  loop: start=0, step=1, limit=4
  $region2: #{decoder_forward.1} parent=0 // loop_pre_header
    _
  $region3: #{decoder_forward.1} parent=0 // loop_header
    %s14 = sphi 0, %s18
    %p15 = scmp.ge.s32.totalorder %s14, 4
    %s24 = sphi 0, %s26
    %s27 = sphi 0, %s24
    %s28 = sphi 0, %s27
    %s44 = sphi 0, %s28
    %s50 = sphi 0, %s52
    %s53 = sphi 0, %s50
    %s54 = sphi 0, %s53
    %s70 = sphi 0, %s54
    %s74 = sphi 0, %s74
    %s76 = sphi 0, %s74
    %s77 = sphi 0, %s76
    %s91 = sphi 0, %s77
    %s95 = sphi 0, %s95
    %s97 = sphi 0, %s95
    %s98 = sphi 0, %s97
    %s112 = sphi 0, %s98
    %s116 = sphi 0, %s116
    %s118 = sphi 0, %s116
    %s119 = sphi 0, %s118
    %s133 = sphi 0, %s119
    %s137 = sphi 0, %s137
    %s139 = sphi 0, %s137
    %s140 = sphi 0, %s139
    %s154 = sphi 0, %s140
    %s158 = sphi 0, %s158
    %s160 = sphi 0, %s158
    %s161 = sphi 0, %s160
    %s175 = sphi 0, %s161
    %s179 = sphi 0, %s179
    %s181 = sphi 0, %s179
    %s182 = sphi 0, %s181
    %s196 = sphi 0, %s182
    %s202 = sphi 0, %s204
    %s205 = sphi 0, %s202
    %s206 = sphi 0, %s205
    %s222 = sphi 0, %s206
  $region4: #{decoder_forward.1} parent=0 // loop_header_branch
    %17 = sbr.rel (%p15) target = $region8
  $region5: #{decoder_forward.1} parent=0 // loop_body
    %s19 = ssub.s32 %s14, 1
    %s20 = ssub.s32 %s14, 2
    %s21 = sadd.s32 %s14, 1
    %s22 = ssub.s32 %s14, %s21
    %p23 = scmp.eq.s32.totalorder %s22, 0
    %s25 = sadd.s32 %s24, 1
    %s26 = scalar_select %p23, %s24, %s25
    %p29 = pneg %p23
    %p30 = scmp.eq.s32.totalorder %s14, 1
    %p31 = por %p29, %p30
    %p32 = scmp.ne.s32.totalorder %s24, %s27
    %p33 = scmp.eq.s32.totalorder %s14, 0
    %p34 = por %p32, %p33
    %p35 = scmp.ne.s32.totalorder %s24, %s27
    %p36 = scmp.eq.s32.totalorder %s19, 1
    %p37 = por %p35, %p36
    %p38 = scmp.ne.s32.totalorder %s27, %s28
    %p39 = scmp.eq.s32.totalorder %s19, 0
    %p40 = por %p38, %p39
    %p41 = scmp.ne.s32.totalorder %s27, %s28
    %p42 = scmp.eq.s32.totalorder %s20, 1
    %p43 = por %p41, %p42
    %p45 = scmp.ne.s32.totalorder %s28, %s44
    %p46 = scmp.eq.s32.totalorder %s20, 0
    %p47 = por %p45, %p46
    %s48 = ssub.s32 %s14, %s21
    %p49 = scmp.eq.s32.totalorder %s48, 0
    %s51 = sadd.s32 %s50, 1
    %s52 = scalar_select %p49, %s50, %s51
    %p55 = pneg %p49
    %p56 = scmp.eq.s32.totalorder %s14, 1
    %p57 = por %p55, %p56
    %p58 = scmp.ne.s32.totalorder %s50, %s53
    %p59 = scmp.eq.s32.totalorder %s14, 0
    %p60 = por %p58, %p59
    %p61 = scmp.ne.s32.totalorder %s50, %s53
    %p62 = scmp.eq.s32.totalorder %s19, 1
    %p63 = por %p61, %p62
    %p64 = scmp.ne.s32.totalorder %s53, %s54
    %p65 = scmp.eq.s32.totalorder %s19, 0
    %p66 = por %p64, %p65
    %p67 = scmp.ne.s32.totalorder %s53, %s54
    %p68 = scmp.eq.s32.totalorder %s20, 1
    %p69 = por %p67, %p68
    %p71 = scmp.ne.s32.totalorder %s54, %s70
    %p72 = scmp.eq.s32.totalorder %s20, 0
    %p73 = por %p71, %p72
    %s75 = sadd.s32 %s74, 1
    %p78 = scmp.eq.s32.totalorder %s14, 1
    %p79 = scmp.ne.s32.totalorder %s74, %s76
    %p80 = scmp.eq.s32.totalorder %s14, 0
    %p81 = por %p79, %p80
    %p82 = scmp.ne.s32.totalorder %s74, %s76
    %p83 = scmp.eq.s32.totalorder %s19, 1
    %p84 = por %p82, %p83
    %p85 = scmp.ne.s32.totalorder %s76, %s77
    %p86 = scmp.eq.s32.totalorder %s19, 0
    %p87 = por %p85, %p86
    %p88 = scmp.ne.s32.totalorder %s76, %s77
    %p89 = scmp.eq.s32.totalorder %s20, 1
    %p90 = por %p88, %p89
    %p92 = scmp.ne.s32.totalorder %s77, %s91
    %p93 = scmp.eq.s32.totalorder %s20, 0
    %p94 = por %p92, %p93
    %s96 = sadd.s32 %s95, 1
    %p99 = scmp.eq.s32.totalorder %s14, 1
    %p100 = scmp.ne.s32.totalorder %s95, %s97
    %p101 = scmp.eq.s32.totalorder %s14, 0
    %p102 = por %p100, %p101
    %p103 = scmp.ne.s32.totalorder %s95, %s97
    %p104 = scmp.eq.s32.totalorder %s19, 1
    %p105 = por %p103, %p104
    %p106 = scmp.ne.s32.totalorder %s97, %s98
    %p107 = scmp.eq.s32.totalorder %s19, 0
    %p108 = por %p106, %p107
    %p109 = scmp.ne.s32.totalorder %s97, %s98
    %p110 = scmp.eq.s32.totalorder %s20, 1
    %p111 = por %p109, %p110
    %p113 = scmp.ne.s32.totalorder %s98, %s112
    %p114 = scmp.eq.s32.totalorder %s20, 0
    %p115 = por %p113, %p114
    %s117 = sadd.s32 %s116, 1
    %p120 = scmp.eq.s32.totalorder %s14, 1
    %p121 = scmp.ne.s32.totalorder %s116, %s118
    %p122 = scmp.eq.s32.totalorder %s14, 0
    %p123 = por %p121, %p122
    %p124 = scmp.ne.s32.totalorder %s116, %s118
    %p125 = scmp.eq.s32.totalorder %s19, 1
    %p126 = por %p124, %p125
    %p127 = scmp.ne.s32.totalorder %s118, %s119
    %p128 = scmp.eq.s32.totalorder %s19, 0
    %p129 = por %p127, %p128
    %p130 = scmp.ne.s32.totalorder %s118, %s119
    %p131 = scmp.eq.s32.totalorder %s20, 1
    %p132 = por %p130, %p131
    %p134 = scmp.ne.s32.totalorder %s119, %s133
    %p135 = scmp.eq.s32.totalorder %s20, 0
    %p136 = por %p134, %p135
    %s138 = sadd.s32 %s137, 1
    %p141 = scmp.eq.s32.totalorder %s14, 1
    %p142 = scmp.ne.s32.totalorder %s137, %s139
    %p143 = scmp.eq.s32.totalorder %s14, 0
    %p144 = por %p142, %p143
    %p145 = scmp.ne.s32.totalorder %s137, %s139
    %p146 = scmp.eq.s32.totalorder %s19, 1
    %p147 = por %p145, %p146
    %p148 = scmp.ne.s32.totalorder %s139, %s140
    %p149 = scmp.eq.s32.totalorder %s19, 0
    %p150 = por %p148, %p149
    %p151 = scmp.ne.s32.totalorder %s139, %s140
    %p152 = scmp.eq.s32.totalorder %s20, 1
    %p153 = por %p151, %p152
    %p155 = scmp.ne.s32.totalorder %s140, %s154
    %p156 = scmp.eq.s32.totalorder %s20, 0
    %p157 = por %p155, %p156
    %s159 = sadd.s32 %s158, 1
    %p162 = scmp.eq.s32.totalorder %s14, 1
    %p163 = scmp.ne.s32.totalorder %s158, %s160
    %p164 = scmp.eq.s32.totalorder %s14, 0
    %p165 = por %p163, %p164
    %p166 = scmp.ne.s32.totalorder %s158, %s160
    %p167 = scmp.eq.s32.totalorder %s19, 1
    %p168 = por %p166, %p167
    %p169 = scmp.ne.s32.totalorder %s160, %s161
    %p170 = scmp.eq.s32.totalorder %s19, 0
    %p171 = por %p169, %p170
    %p172 = scmp.ne.s32.totalorder %s160, %s161
    %p173 = scmp.eq.s32.totalorder %s20, 1
    %p174 = por %p172, %p173
    %p176 = scmp.ne.s32.totalorder %s161, %s175
    %p177 = scmp.eq.s32.totalorder %s20, 0
    %p178 = por %p176, %p177
    %s180 = sadd.s32 %s179, 1
    %p183 = scmp.eq.s32.totalorder %s14, 1
    %p184 = scmp.ne.s32.totalorder %s179, %s181
    %p185 = scmp.eq.s32.totalorder %s14, 0
    %p186 = por %p184, %p185
    %p187 = scmp.ne.s32.totalorder %s179, %s181
    %p188 = scmp.eq.s32.totalorder %s19, 1
    %p189 = por %p187, %p188
    %p190 = scmp.ne.s32.totalorder %s181, %s182
    %p191 = scmp.eq.s32.totalorder %s19, 0
    %p192 = por %p190, %p191
    %p193 = scmp.ne.s32.totalorder %s181, %s182
    %p194 = scmp.eq.s32.totalorder %s20, 1
    %p195 = por %p193, %p194
    %p197 = scmp.ne.s32.totalorder %s182, %s196
    %p198 = scmp.eq.s32.totalorder %s20, 0
    %p199 = por %p197, %p198
    %s200 = ssub.s32 %s14, %s21
    %p201 = scmp.eq.s32.totalorder %s200, 0
    %s203 = sadd.s32 %s202, 1
    %s204 = scalar_select %p201, %s202, %s203
    %p207 = pneg %p201
    %p208 = scmp.eq.s32.totalorder %s14, 1
    %p209 = por %p207, %p208
    %p210 = scmp.ne.s32.totalorder %s202, %s205
    %p211 = scmp.eq.s32.totalorder %s14, 0
    %p212 = por %p210, %p211
    %p213 = scmp.ne.s32.totalorder %s202, %s205
    %p214 = scmp.eq.s32.totalorder %s19, 1
    %p215 = por %p213, %p214
    %p216 = scmp.ne.s32.totalorder %s205, %s206
    %p217 = scmp.eq.s32.totalorder %s19, 0
    %p218 = por %p216, %p217
    %p219 = scmp.ne.s32.totalorder %s205, %s206
    %p220 = scmp.eq.s32.totalorder %s20, 1
    %p221 = por %p219, %p220
    %p223 = scmp.ne.s32.totalorder %s206, %s222
    %p224 = scmp.eq.s32.totalorder %s20, 0
    %p225 = por %p223, %p224
    %p226 = scmp.le.s32.totalorder 1, %s14
    %p227 = scmp.lt.s32.totalorder %s14, 3
    %p228 = pnand %p226, %p227
    %p229 = pneg %p228
    // Predicated region
    $region9: #{decoder_forward.1} parent=5 // pred_check
      _
    $region10: #{decoder_forward.1} parent=5 // pred_check_branch
      %231 = sbr.rel (%p228) target = $region12
    $region11: #{decoder_forward.1} parent=5 // pred_region
      %s232 = ssub.s32 %s14, 1
      // Predicated region
      $region13: #{decoder_forward.1} parent=11 // pred_check
        %p233 = pneg %p87
      $region14: #{decoder_forward.1} parent=11 // pred_check_branch
        %235 = sbr.rel (%p233) target = $region16
      $region15: #{decoder_forward.1} parent=11 // pred_region
        _
      $region16: #{decoder_forward.1} parent=11 // pred_fallthru
        _
      // Predicated region
      $region17: #{decoder_forward.1} parent=11 // pred_check
        %p236 = pneg %p108
      $region18: #{decoder_forward.1} parent=11 // pred_check_branch
        %238 = sbr.rel (%p236) target = $region20
      $region19: #{decoder_forward.1} parent=11 // pred_region
        _
      $region20: #{decoder_forward.1} parent=11 // pred_fallthru
        _
      // Predicated region
      $region21: #{decoder_forward.1} parent=11 // pred_check
        %p239 = pneg %p129
      $region22: #{decoder_forward.1} parent=11 // pred_check_branch
        %241 = sbr.rel (%p239) target = $region24
      $region23: #{decoder_forward.1} parent=11 // pred_region
        _
      $region24: #{decoder_forward.1} parent=11 // pred_fallthru
        _
      // Predicated region
      $region25: #{decoder_forward.1} parent=11 // pred_check
        %p242 = pneg %p150
      $region26: #{decoder_forward.1} parent=11 // pred_check_branch
        %244 = sbr.rel (%p242) target = $region28
      $region27: #{decoder_forward.1} parent=11 // pred_region
        _
      $region28: #{decoder_forward.1} parent=11 // pred_fallthru
        _
      // Predicated region
      $region29: #{decoder_forward.1} parent=11 // pred_check
        %p245 = pneg %p171
      $region30: #{decoder_forward.1} parent=11 // pred_check_branch
        %247 = sbr.rel (%p245) target = $region32
      $region31: #{decoder_forward.1} parent=11 // pred_region
        _
      $region32: #{decoder_forward.1} parent=11 // pred_fallthru
        _
      // Predicated region
      $region33: #{decoder_forward.1} parent=11 // pred_check
        %p248 = pneg %p192
      $region34: #{decoder_forward.1} parent=11 // pred_check_branch
        %250 = sbr.rel (%p248) target = $region36
      $region35: #{decoder_forward.1} parent=11 // pred_region
        _
      $region36: #{decoder_forward.1} parent=11 // pred_fallthru
        _
    $region12: #{decoder_forward.1} parent=5 // pred_fallthru
      _
    %p251 = scmp.lt.s32.totalorder %s14, 2
    // Predicated region
    $region37: #{decoder_forward.1} parent=5 // pred_check
      %p252 = pneg %p251
    $region38: #{decoder_forward.1} parent=5 // pred_check_branch
      %254 = sbr.rel (%p252) target = $region40
    $region39: #{decoder_forward.1} parent=5 // pred_region
      // Predicated region
      $region41: #{decoder_forward.1} parent=39 // pred_check
        %p255 = pneg %p34
      $region42: #{decoder_forward.1} parent=39 // pred_check_branch
        %257 = sbr.rel (%p255) target = $region44
      $region43: #{decoder_forward.1} parent=39 // pred_region
        %p258 = scmp.lt.s32.totalorder %s14, 1
        %s259 = scalar_select %p258, %s14, 1
        %s260 = smul.addr %s259, 8
        %s261 = scalar_lea.vmem %s0, %s260
      $region44: #{decoder_forward.1} parent=39 // pred_fallthru
        _
      // Predicated region
      $region45: #{decoder_forward.1} parent=39 // pred_check
        %p262 = pneg %p60
      $region46: #{decoder_forward.1} parent=39 // pred_check_branch
        %264 = sbr.rel (%p262) target = $region48
      $region47: #{decoder_forward.1} parent=39 // pred_region
        %p265 = scmp.lt.s32.totalorder %s14, 1
        %s266 = scalar_select %p265, %s14, 1
        %s267 = smul.addr %s266, 8
        %s268 = scalar_lea.vmem %s1, %s267
      $region48: #{decoder_forward.1} parent=39 // pred_fallthru
        _
    $region40: #{decoder_forward.1} parent=5 // pred_fallthru
      _
    %p269 = scmp.le.s32.totalorder 1, %s14
    %p270 = scmp.lt.s32.totalorder %s14, 3
    %p271 = pnand %p269, %p270
    %p272 = pneg %p271
    // Predicated region
    $region49: #{decoder_forward.1} parent=5 // pred_check
      _
    $region50: #{decoder_forward.1} parent=5 // pred_check_branch
      %274 = sbr.rel (%p271) target = $region52
    $region51: #{decoder_forward.1} parent=5 // pred_region
      %s275 = ssub.s32 %s14, 1
      %p276 = scmp.lt.s32.totalorder %s19, 1
      %s277 = scalar_select %p276, %s19, 1
      %s278 = smul.addr %s277, 8
      %s279 = scalar_lea.vmem %s0, %s278
      %p280 = pneg %p40
      %p281 = pneg %p37
      %p282 = scmp.lt.s32.totalorder %s19, 1
      %s283 = scalar_select %p282, %s19, 1
      %s284 = smul.addr %s283, 8
      %s285 = scalar_lea.vmem %s1, %s284
      %p286 = pneg %p66
      %p287 = pneg %p63
      %p288 = pneg %p87
      %p289 = pneg %p84
      %p290 = pneg %p108
      %p291 = pneg %p105
      %p292 = pneg %p129
      %p293 = pneg %p126
      %p294 = pneg %p150
      %p295 = pneg %p147
      %p296 = pneg %p171
      %p297 = pneg %p168
      %p298 = pneg %p192
      %p299 = pneg %p189
      %p300 = pneg %p218
      %p301 = pneg %p215
      %p302 = scmp.lt.s32.totalorder %s19, 1
      %s303 = scalar_select %p302, %s19, 1
      %s304 = smul.addr %s303, 8
      %s305 = scalar_lea.vmem %s8, %s304
      %p306 = scmp.lt.s32.totalorder %s19, 1
      %s307 = scalar_select %p306, %s19, 1
      %s308 = smul.addr %s307, 8
      %s309 = scalar_lea.vmem %s0, %s308
      %p310 = scmp.lt.s32.totalorder %s19, 1
      %s311 = scalar_select %p310, %s19, 1
      %s312 = smul.addr %s311, 8
      %s313 = scalar_lea.vmem %s1, %s312
      %p314 = scmp.lt.s32.totalorder %s19, 1
      %s315 = scalar_select %p314, %s19, 1
      %s316 = smul.addr %s315, 8
      %s317 = scalar_lea.vmem %s8, %s316
      %v318 = vld [vmem:[%s309] sm:$0xff]
      %v319 = vld [vmem:[%s313] sm:$0xff]
      %v320 = vld [vmem:[%s6] sm:$0x1]
      %v321 = vld [vmem:[%s6 + $0x1] sm:$0x1]
      %v322 = vld [vmem:[%s6 + $0x2] sm:$0x1]
      %v323 = vld [vmem:[%s6 + $0x3] sm:$0x1]
      %v324 = vld [vmem:[%s6 + $0x4] sm:$0x1]
      %v325 = vld [vmem:[%s6 + $0x5] sm:$0x1]
      %v326 = vld [vmem:[%s6 + $0x6] sm:$0x1]
      %v327 = vld [vmem:[%s6 + $0x7] sm:$0x1]
      %v328 = vld [vmem:[%s2] sm:$0xff]
      %v329 = vld [vmem:[%s2 + $0x8] sm:$0xff]
      %v330 = vld [vmem:[%s2 + $0x10] sm:$0xff]
      %v331 = vld [vmem:[%s2 + $0x18] sm:$0xff]
      %v332 = vld [vmem:[%s3] sm:$0x1]
      %v333 = vld [vmem:[%s2 + $0x20] sm:$0xff]
      %v334 = vld [vmem:[%s2 + $0x28] sm:$0xff]
      %v335 = vld [vmem:[%s2 + $0x30] sm:$0xff]
      %v336 = vld [vmem:[%s2 + $0x38] sm:$0xff]
      %v337 = vld [vmem:[%s3 + $0x1] sm:$0x1]
      %v338 = vld [vmem:[%s4] sm:$0xff]
      %v339 = vld [vmem:[%s4 + $0x8] sm:$0xff]
      %v340 = vld [vmem:[%s4 + $0x10] sm:$0xff]
      %v341 = vld [vmem:[%s4 + $0x18] sm:$0xff]
      %v342 = vld [vmem:[%s5] sm:$0xff]
      %v343 = vld [vmem:[%s5 + $0x8] sm:$0xff]
      %v344 = vld [vmem:[%s5 + $0x10] sm:$0xff]
      %v345 = vld [vmem:[%s5 + $0x18] sm:$0xff]
      %v346 = vld [vmem:[%s5 + $0x20] sm:$0xff]
      %v347 = vld [vmem:[%s5 + $0x28] sm:$0xff]
      %v348 = vld [vmem:[%s5 + $0x30] sm:$0xff]
      %v349 = vld [vmem:[%s5 + $0x38] sm:$0xff]
      %vm350 = vcmask 261120
      %v351 = vsel %vm350, %v318, 0.0
      %352 = vadd.xlane.f32.xlu0 %v351
      %v353 = vpop.xlane.xlu0 %352
      %v354 = vrcp.pop 32.0
      %v355 = vmul.f32 32.0, %v354
      %v356 = vsub.f32 1.0, %v355
      %v357 = vmul.f32 %v354, %v356
      %v358 = vadd.f32 %v354, %v357
      %vm359 = vweird.f32 %v354
      %v360 = vsel %vm359, %v354, %v358
      %v361 = vmul.f32 %v353, %v360
      %v362 = vsub.f32 %v318, %v361
      %v363 = vmul.f32 %v362, %v362
      %v364 = vsel %vm350, %v363, 0.0
      %365 = vadd.xlane.f32.xlu0 %v364
      %v366 = vpop.xlane.xlu0 %365
      %v367 = vmul.f32 %v366, %v360
      %v368 = vadd.f32 %v367, 1e-05
      %v369 = vrsqrt.pop %v368
      %v370 = vmul.f32 %v369, %v368
      %v371 = vmul.f32 %v370, %v369
      %v372 = vmul.f32 0.5, %v371
      %v373 = vsub.f32 1.5, %v372
      %v374 = vmul.f32 %v369, %v373
      %vm375 = vweird.f32 %v368
      %vm376 = vweird.f32 %v369
      %vm377 = vmor %vm375, %vm376
      %v378 = vsel %vm377, %v369, %v374
      %v379 = vmul.f32 %v362, %v378
      %v380 = vperm.slane %v320, 0
      %v381 = vmul.f32 %v379, %v380
      %v382 = vperm.slane %v321, 0
      %v383 = vadd.f32 %v381, %v382
      %v384 = vperm.slane %v332, 0
      %v386 = vsel %vm350, %v383, 0
      %388 = vmatpush.msra.mxu0 0.0
      %389 = vmatpush.msra.mxu0 0.0
      %390 = vmatpush.msra.mxu0 0.0
      %391 = vmatpush.msra.mxu0 0.0
      %392 = vmatpush.msra.mxu0 0.0
      %393 = vmatpush.msra.mxu0 0.0
      %394 = vmatpush.msra.mxu0 0.0
      %395 = vmatpush.msra.mxu0 0.0
      %396 = vmatpush.msra.mxu0 0.0
      %397 = vmatpush.msra.mxu0 0.0
      %398 = vmatpush.msra.mxu0 0.0
      %399 = vmatpush.msra.mxu0 0.0
      %400 = vmatpush.msra.mxu0 %v331
      %401 = vmatpush.msra.mxu0 %v330
      %402 = vmatpush.msra.mxu0 %v329
      %403 = vmatpush.msra.mxu0 %v328
      %404 = vmatmul.f32.gmra.mxu0 %v386
      %v405 = vpop.f32.mrf.mxu0
      %v406 = vadd.f32 %v384, %v405
      %407 = vdwg.mxu0
      %409 = vrot.lane.b32.xlu0 %v406, 120
      %v410 = vpop.permute.xlu0 %409
      %411 = vrot.lane.b32.xlu0 %v406, 112
      %v412 = vpop.permute.xlu0 %411
      %413 = vrot.lane.b32.xlu0 %v406, 104
      %v414 = vpop.permute.xlu0 %413
      %415 = vrot.lane.b32.xlu0 %v406, 96
      %v416 = vpop.permute.xlu0 %415
      %vm417 = vcmask 64512
      %v418 = vsel %vm417, %v406, 0
      %v420 = vsel %vm417, %v416, 0
      %422 = vmatpush.xpose.msra.mxu0 0.0
      %423 = vmatpush.xpose.msra.mxu0 0.0
      %424 = vmatpush.xpose.msra.mxu0 0.0
      %425 = vmatpush.xpose.msra.mxu0 0.0
      %426 = vmatpush.xpose.msra.mxu0 0.0
      %427 = vmatpush.xpose.msra.mxu0 0.0
      %428 = vmatpush.xpose.msra.mxu0 0.0
      %429 = vmatpush.xpose.msra.mxu0 0.0
      %430 = vmatpush.xpose.msra.mxu0 0.0
      %431 = vmatpush.xpose.msra.mxu0 0.0
      %432 = vmatpush.xpose.msra.mxu0 0.0
      %433 = vmatpush.xpose.msra.mxu0 0.0
      %434 = vmatpush.xpose.msra.mxu0 0.0
      %435 = vmatpush.xpose.msra.mxu0 0.0
      %436 = vmatpush.xpose.msra.mxu0 0.0
      %437 = vmatpush.xpose.msra.mxu0 %v420
      %438 = vmatmul.f32.gmra.mxu0 %v418
      %v439 = vpop.f32.mrf.mxu0
      %v440 = vadd.f32 0.0, %v439
      %441 = vdwg.mxu0
      %442 = vrot.lane.b32.xlu0 %v410, 96
      %v443 = vpop.permute.xlu0 %442
      %v444 = vsel %vm417, %v410, 0
      %v446 = vsel %vm417, %v443, 0
      %448 = vmatpush.xpose.msra.mxu0 0.0
      %449 = vmatpush.xpose.msra.mxu0 0.0
      %450 = vmatpush.xpose.msra.mxu0 0.0
      %451 = vmatpush.xpose.msra.mxu0 0.0
      %452 = vmatpush.xpose.msra.mxu0 0.0
      %453 = vmatpush.xpose.msra.mxu0 0.0
      %454 = vmatpush.xpose.msra.mxu0 0.0
      %455 = vmatpush.xpose.msra.mxu0 0.0
      %456 = vmatpush.xpose.msra.mxu0 0.0
      %457 = vmatpush.xpose.msra.mxu0 0.0
      %458 = vmatpush.xpose.msra.mxu0 0.0
      %459 = vmatpush.xpose.msra.mxu0 0.0
      %460 = vmatpush.xpose.msra.mxu0 0.0
      %461 = vmatpush.xpose.msra.mxu0 0.0
      %462 = vmatpush.xpose.msra.mxu0 0.0
      %463 = vmatpush.xpose.msra.mxu0 %v446
      %464 = vmatmul.f32.gmra.mxu0 %v444
      %v465 = vpop.f32.mrf.mxu0
      %v466 = vadd.f32 0.0, %v465
      %467 = vdwg.mxu0
      %468 = vrot.lane.b32.xlu0 %v412, 96
      %v469 = vpop.permute.xlu0 %468
      %v470 = vsel %vm417, %v412, 0
      %v472 = vsel %vm417, %v469, 0
      %474 = vmatpush.xpose.msra.mxu0 0.0
      %475 = vmatpush.xpose.msra.mxu0 0.0
      %476 = vmatpush.xpose.msra.mxu0 0.0
      %477 = vmatpush.xpose.msra.mxu0 0.0
      %478 = vmatpush.xpose.msra.mxu0 0.0
      %479 = vmatpush.xpose.msra.mxu0 0.0
      %480 = vmatpush.xpose.msra.mxu0 0.0
      %481 = vmatpush.xpose.msra.mxu0 0.0
      %482 = vmatpush.xpose.msra.mxu0 0.0
      %483 = vmatpush.xpose.msra.mxu0 0.0
      %484 = vmatpush.xpose.msra.mxu0 0.0
      %485 = vmatpush.xpose.msra.mxu0 0.0
      %486 = vmatpush.xpose.msra.mxu0 0.0
      %487 = vmatpush.xpose.msra.mxu0 0.0
      %488 = vmatpush.xpose.msra.mxu0 0.0
      %489 = vmatpush.xpose.msra.mxu0 %v472
      %490 = vmatmul.f32.gmra.mxu0 %v470
      %v491 = vpop.f32.mrf.mxu0
      %v492 = vadd.f32 0.0, %v491
      %493 = vdwg.mxu0
      %494 = vrot.lane.b32.xlu0 %v414, 96
      %v495 = vpop.permute.xlu0 %494
      %v496 = vsel %vm417, %v414, 0
      %v498 = vsel %vm417, %v495, 0
      %500 = vmatpush.xpose.msra.mxu0 0.0
      %501 = vmatpush.xpose.msra.mxu0 0.0
      %502 = vmatpush.xpose.msra.mxu0 0.0
      %503 = vmatpush.xpose.msra.mxu0 0.0
      %504 = vmatpush.xpose.msra.mxu0 0.0
      %505 = vmatpush.xpose.msra.mxu0 0.0
      %506 = vmatpush.xpose.msra.mxu0 0.0
      %507 = vmatpush.xpose.msra.mxu0 0.0
      %508 = vmatpush.xpose.msra.mxu0 0.0
      %509 = vmatpush.xpose.msra.mxu0 0.0
      %510 = vmatpush.xpose.msra.mxu0 0.0
      %511 = vmatpush.xpose.msra.mxu0 0.0
      %512 = vmatpush.xpose.msra.mxu0 0.0
      %513 = vmatpush.xpose.msra.mxu0 0.0
      %514 = vmatpush.xpose.msra.mxu0 0.0
      %515 = vmatpush.xpose.msra.mxu0 %v498
      %516 = vmatmul.f32.gmra.mxu0 %v496
      %v517 = vpop.f32.mrf.mxu0
      %v518 = vadd.f32 0.0, %v517
      %519 = vdwg.mxu0
      %v520 = vmul.f32 %v440, 0.35355338
      %v521 = vmul.f32 %v466, 0.35355338
      %v522 = vmul.f32 %v492, 0.35355338
      %v523 = vmul.f32 %v518, 0.35355338
      %v524 = vsel %vm417, %v520, -inf
      %525 = vmax.xlane.f32.xlu0 %v524
      %v526 = vpop.xlane.xlu0 %525
      %v527 = vsel %vm417, %v521, -inf
      %528 = vmax.xlane.f32.xlu0 %v527
      %v529 = vpop.xlane.xlu0 %528
      %v530 = vsel %vm417, %v522, -inf
      %531 = vmax.xlane.f32.xlu0 %v530
      %v532 = vpop.xlane.xlu0 %531
      %v533 = vsel %vm417, %v523, -inf
      %534 = vmax.xlane.f32.xlu0 %v533
      %v535 = vpop.xlane.xlu0 %534
      %v536 = vsub.f32 %v520, %v526
      %v537 = vsub.f32 %v521, %v529
      %v538 = vsub.f32 %v522, %v532
      %v539 = vsub.f32 %v523, %v535
      %v540 = vmul.f32 %v536, 1.442695
      %v541 = vpow.pop %v540
      %v542 = vmul.f32 %v537, 1.442695
      %v543 = vpow.pop %v542
      %v544 = vmul.f32 %v538, 1.442695
      %v545 = vpow.pop %v544
      %v546 = vmul.f32 %v539, 1.442695
      %v547 = vpow.pop %v546
      %v548 = vsel %vm417, %v541, 0.0
      %549 = vadd.xlane.f32.xlu0 %v548
      %v550 = vpop.xlane.xlu0 %549
      %v551 = vsel %vm417, %v543, 0.0
      %552 = vadd.xlane.f32.xlu0 %v551
      %v553 = vpop.xlane.xlu0 %552
      %v554 = vsel %vm417, %v545, 0.0
      %555 = vadd.xlane.f32.xlu0 %v554
      %v556 = vpop.xlane.xlu0 %555
      %v557 = vsel %vm417, %v547, 0.0
      %558 = vadd.xlane.f32.xlu0 %v557
      %v559 = vpop.xlane.xlu0 %558
      %v560 = vrcp.pop %v550
      %v561 = vmul.f32 %v550, %v560
      %v562 = vsub.f32 1.0, %v561
      %v563 = vmul.f32 %v560, %v562
      %v564 = vadd.f32 %v560, %v563
      %vm565 = vweird.f32 %v550
      %vm566 = vweird.f32 %v560
      %vm567 = vmor %vm565, %vm566
      %v568 = vsel %vm567, %v560, %v564
      %v569 = vand.u32 2147483647, %v550
      %vm570 = vcmp.eq.f32.partialorder %v569, 8.507059e+37
      %v571 = vand.u32 %v550, 2147483648
      %v572 = vor.u32 1.1754944e-38, %v571
      %v573 = vsel %vm570, %v572, %v568
      %v574 = vmul.f32 %v541, %v573
      %v575 = vrcp.pop %v553
      %v576 = vmul.f32 %v553, %v575
      %v577 = vsub.f32 1.0, %v576
      %v578 = vmul.f32 %v575, %v577
      %v579 = vadd.f32 %v575, %v578
      %vm580 = vweird.f32 %v553
      %vm581 = vweird.f32 %v575
      %vm582 = vmor %vm580, %vm581
      %v583 = vsel %vm582, %v575, %v579
      %v584 = vand.u32 2147483647, %v553
      %vm585 = vcmp.eq.f32.partialorder %v584, 8.507059e+37
      %v586 = vand.u32 %v553, 2147483648
      %v587 = vor.u32 1.1754944e-38, %v586
      %v588 = vsel %vm585, %v587, %v583
      %v589 = vmul.f32 %v543, %v588
      %v590 = vrcp.pop %v556
      %v591 = vmul.f32 %v556, %v590
      %v592 = vsub.f32 1.0, %v591
      %v593 = vmul.f32 %v590, %v592
      %v594 = vadd.f32 %v590, %v593
      %vm595 = vweird.f32 %v556
      %vm596 = vweird.f32 %v590
      %vm597 = vmor %vm595, %vm596
      %v598 = vsel %vm597, %v590, %v594
      %v599 = vand.u32 2147483647, %v556
      %vm600 = vcmp.eq.f32.partialorder %v599, 8.507059e+37
      %v601 = vand.u32 %v556, 2147483648
      %v602 = vor.u32 1.1754944e-38, %v601
      %v603 = vsel %vm600, %v602, %v598
      %v604 = vmul.f32 %v545, %v603
      %v605 = vrcp.pop %v559
      %v606 = vmul.f32 %v559, %v605
      %v607 = vsub.f32 1.0, %v606
      %v608 = vmul.f32 %v605, %v607
      %v609 = vadd.f32 %v605, %v608
      %vm610 = vweird.f32 %v559
      %vm611 = vweird.f32 %v605
      %vm612 = vmor %vm610, %vm611
      %v613 = vsel %vm612, %v605, %v609
      %v614 = vand.u32 2147483647, %v559
      %vm615 = vcmp.eq.f32.partialorder %v614, 8.507059e+37
      %v616 = vand.u32 %v559, 2147483648
      %v617 = vor.u32 1.1754944e-38, %v616
      %v618 = vsel %vm615, %v617, %v613
      %v619 = vmul.f32 %v547, %v618
      %620 = vrot.lane.b32.xlu0 %v406, 64
      %v621 = vpop.permute.xlu0 %620
      %v624 = vsel %vm417, %v574, 0
      %626 = vmatpush.msra.mxu0 0.0
      %627 = vmatpush.msra.mxu0 0.0
      %628 = vmatpush.msra.mxu0 0.0
      %629 = vmatpush.msra.mxu0 0.0
      %630 = vmatpush.msra.mxu0 0.0
      %631 = vmatpush.msra.mxu0 0.0
      %632 = vmatpush.msra.mxu0 0.0
      %633 = vmatpush.msra.mxu0 0.0
      %634 = vmatpush.msra.mxu0 0.0
      %635 = vmatpush.msra.mxu0 0.0
      %636 = vmatpush.msra.mxu0 0.0
      %637 = vmatpush.msra.mxu0 0.0
      %638 = vmatpush.msra.mxu0 0.0
      %639 = vmatpush.msra.mxu0 0.0
      %640 = vmatpush.msra.mxu0 0.0
      %641 = vmatpush.msra.mxu0 %v621
      %642 = vmatmul.f32.gmra.mxu0 %v624
      %v643 = vpop.f32.mrf.mxu0
      %v644 = vadd.f32 0.0, %v643
      %645 = vdwg.mxu0
      %646 = vrot.lane.b32.xlu0 %v410, 64
      %v647 = vpop.permute.xlu0 %646
      %v650 = vsel %vm417, %v589, 0
      %652 = vmatpush.msra.mxu0 0.0
      %653 = vmatpush.msra.mxu0 0.0
      %654 = vmatpush.msra.mxu0 0.0
      %655 = vmatpush.msra.mxu0 0.0
      %656 = vmatpush.msra.mxu0 0.0
      %657 = vmatpush.msra.mxu0 0.0
      %658 = vmatpush.msra.mxu0 0.0
      %659 = vmatpush.msra.mxu0 0.0
      %660 = vmatpush.msra.mxu0 0.0
      %661 = vmatpush.msra.mxu0 0.0
      %662 = vmatpush.msra.mxu0 0.0
      %663 = vmatpush.msra.mxu0 0.0
      %664 = vmatpush.msra.mxu0 0.0
      %665 = vmatpush.msra.mxu0 0.0
      %666 = vmatpush.msra.mxu0 0.0
      %667 = vmatpush.msra.mxu0 %v647
      %668 = vmatmul.f32.gmra.mxu0 %v650
      %v669 = vpop.f32.mrf.mxu0
      %v670 = vadd.f32 0.0, %v669
      %671 = vdwg.mxu0
      %672 = vrot.lane.b32.xlu0 %v412, 64
      %v673 = vpop.permute.xlu0 %672
      %v676 = vsel %vm417, %v604, 0
      %678 = vmatpush.msra.mxu0 0.0
      %679 = vmatpush.msra.mxu0 0.0
      %680 = vmatpush.msra.mxu0 0.0
      %681 = vmatpush.msra.mxu0 0.0
      %682 = vmatpush.msra.mxu0 0.0
      %683 = vmatpush.msra.mxu0 0.0
      %684 = vmatpush.msra.mxu0 0.0
      %685 = vmatpush.msra.mxu0 0.0
      %686 = vmatpush.msra.mxu0 0.0
      %687 = vmatpush.msra.mxu0 0.0
      %688 = vmatpush.msra.mxu0 0.0
      %689 = vmatpush.msra.mxu0 0.0
      %690 = vmatpush.msra.mxu0 0.0
      %691 = vmatpush.msra.mxu0 0.0
      %692 = vmatpush.msra.mxu0 0.0
      %693 = vmatpush.msra.mxu0 %v673
      %694 = vmatmul.f32.gmra.mxu0 %v676
      %v695 = vpop.f32.mrf.mxu0
      %v696 = vadd.f32 0.0, %v695
      %697 = vdwg.mxu0
      %698 = vrot.lane.b32.xlu0 %v414, 64
      %v699 = vpop.permute.xlu0 %698
      %v702 = vsel %vm417, %v619, 0
      %704 = vmatpush.msra.mxu0 0.0
      %705 = vmatpush.msra.mxu0 0.0
      %706 = vmatpush.msra.mxu0 0.0
      %707 = vmatpush.msra.mxu0 0.0
      %708 = vmatpush.msra.mxu0 0.0
      %709 = vmatpush.msra.mxu0 0.0
      %710 = vmatpush.msra.mxu0 0.0
      %711 = vmatpush.msra.mxu0 0.0
      %712 = vmatpush.msra.mxu0 0.0
      %713 = vmatpush.msra.mxu0 0.0
      %714 = vmatpush.msra.mxu0 0.0
      %715 = vmatpush.msra.mxu0 0.0
      %716 = vmatpush.msra.mxu0 0.0
      %717 = vmatpush.msra.mxu0 0.0
      %718 = vmatpush.msra.mxu0 0.0
      %719 = vmatpush.msra.mxu0 %v699
      %720 = vmatmul.f32.gmra.mxu0 %v702
      %v721 = vpop.f32.mrf.mxu0
      %v722 = vadd.f32 0.0, %v721
      %723 = vdwg.mxu0
      %725 = vrot.lane.b32.xlu0 %v670, 8
      %v726 = vpop.permute.xlu0 %725
      %729 = vrot.lane.b32.xlu0 %v696, 16
      %v730 = vpop.permute.xlu0 %729
      %733 = vrot.lane.b32.xlu0 %v722, 24
      %v734 = vpop.permute.xlu0 %733
      %v736 = vsel %vm417, %v644, %v726
      %vm737 = vcmask 130048
      %v738 = vsel %vm737, %v736, %v730
      %vm739 = vcmask 195584
      %v740 = vsel %vm739, %v738, %v734
      %745 = vrot.lane.b32.xlu0 %v328, 32
      %v746 = vpop.permute.xlu0 %745
      %747 = vrot.lane.b32.xlu0 %v329, 32
      %v748 = vpop.permute.xlu0 %747
      %749 = vrot.lane.b32.xlu0 %v330, 32
      %v750 = vpop.permute.xlu0 %749
      %751 = vrot.lane.b32.xlu0 %v331, 32
      %v752 = vpop.permute.xlu0 %751
      %758 = vrot.lane.b32.xlu0 %v384, 32
      %v759 = vpop.permute.xlu0 %758
      %v762 = vsel %vm350, %v740, 0
      %764 = vmatpush.msra.mxu0 0.0
      %765 = vmatpush.msra.mxu0 0.0
      %766 = vmatpush.msra.mxu0 0.0
      %767 = vmatpush.msra.mxu0 0.0
      %768 = vmatpush.msra.mxu0 0.0
      %769 = vmatpush.msra.mxu0 0.0
      %770 = vmatpush.msra.mxu0 0.0
      %771 = vmatpush.msra.mxu0 0.0
      %772 = vmatpush.msra.mxu0 0.0
      %773 = vmatpush.msra.mxu0 0.0
      %774 = vmatpush.msra.mxu0 0.0
      %775 = vmatpush.msra.mxu0 0.0
      %776 = vmatpush.msra.mxu0 %v752
      %777 = vmatpush.msra.mxu0 %v750
      %778 = vmatpush.msra.mxu0 %v748
      %779 = vmatpush.msra.mxu0 %v746
      %780 = vmatmul.f32.gmra.mxu0 %v762
      %v781 = vpop.f32.mrf.mxu0
      %v782 = vadd.f32 %v759, %v781
      %783 = vdwg.mxu0
      %v784 = vadd.f32 %v318, %v782
      %v785 = vsel %vm350, %v784, 0.0
      %786 = vadd.xlane.f32.xlu0 %v785
      %v787 = vpop.xlane.xlu0 %786
      %v788 = vmul.f32 %v787, %v360
      %v789 = vsub.f32 %v784, %v788
      %v790 = vmul.f32 %v789, %v789
      %v791 = vsel %vm350, %v790, 0.0
      %792 = vadd.xlane.f32.xlu0 %v791
      %v793 = vpop.xlane.xlu0 %792
      %v794 = vmul.f32 %v793, %v360
      %v795 = vadd.f32 %v794, 1e-05
      %v796 = vrsqrt.pop %v795
      %v797 = vmul.f32 %v796, %v795
      %v798 = vmul.f32 %v797, %v796
      %v799 = vmul.f32 0.5, %v798
      %v800 = vsub.f32 1.5, %v799
      %v801 = vmul.f32 %v796, %v800
      %vm802 = vweird.f32 %v795
      %vm803 = vweird.f32 %v796
      %vm804 = vmor %vm802, %vm803
      %v805 = vsel %vm804, %v796, %v801
      %v806 = vmul.f32 %v789, %v805
      %v807 = vmul.f32 %v806, %v380
      %v808 = vadd.f32 %v807, %v382
      %v809 = vperm.slane %v337, 0
      %v811 = vsel %vm350, %v808, 0
      %813 = vmatpush.msra.mxu0 0.0
      %814 = vmatpush.msra.mxu0 0.0
      %815 = vmatpush.msra.mxu0 0.0
      %816 = vmatpush.msra.mxu0 0.0
      %817 = vmatpush.msra.mxu0 0.0
      %818 = vmatpush.msra.mxu0 0.0
      %819 = vmatpush.msra.mxu0 0.0
      %820 = vmatpush.msra.mxu0 0.0
      %821 = vmatpush.msra.mxu0 0.0
      %822 = vmatpush.msra.mxu0 0.0
      %823 = vmatpush.msra.mxu0 0.0
      %824 = vmatpush.msra.mxu0 0.0
      %825 = vmatpush.msra.mxu0 %v336
      %826 = vmatpush.msra.mxu0 %v335
      %827 = vmatpush.msra.mxu0 %v334
      %828 = vmatpush.msra.mxu0 %v333
      %829 = vmatmul.f32.gmra.mxu0 %v811
      %v830 = vpop.f32.mrf.mxu0
      %v831 = vadd.f32 %v809, %v830
      %832 = vdwg.mxu0
      %v834 = vsel %vm350, %v319, 0
      %836 = vmatpush.msra.mxu0 0.0
      %837 = vmatpush.msra.mxu0 0.0
      %838 = vmatpush.msra.mxu0 0.0
      %839 = vmatpush.msra.mxu0 0.0
      %840 = vmatpush.msra.mxu0 0.0
      %841 = vmatpush.msra.mxu0 0.0
      %842 = vmatpush.msra.mxu0 0.0
      %843 = vmatpush.msra.mxu0 0.0
      %844 = vmatpush.msra.mxu0 0.0
      %845 = vmatpush.msra.mxu0 0.0
      %846 = vmatpush.msra.mxu0 0.0
      %847 = vmatpush.msra.mxu0 0.0
      %848 = vmatpush.msra.mxu0 %v336
      %849 = vmatpush.msra.mxu0 %v335
      %850 = vmatpush.msra.mxu0 %v334
      %851 = vmatpush.msra.mxu0 %v333
      %852 = vmatmul.f32.gmra.mxu0 %v834
      %v853 = vpop.f32.mrf.mxu0
      %v854 = vadd.f32 %v809, %v853
      %855 = vdwg.mxu0
      %857 = vrot.lane.b32.xlu0 %v831, 120
      %v858 = vpop.permute.xlu0 %857
      %859 = vrot.lane.b32.xlu0 %v831, 112
      %v860 = vpop.permute.xlu0 %859
      %861 = vrot.lane.b32.xlu0 %v831, 104
      %v862 = vpop.permute.xlu0 %861
      %864 = vrot.lane.b32.xlu0 %v854, 120
      %v865 = vpop.permute.xlu0 %864
      %866 = vrot.lane.b32.xlu0 %v854, 112
      %v867 = vpop.permute.xlu0 %866
      %868 = vrot.lane.b32.xlu0 %v854, 104
      %v869 = vpop.permute.xlu0 %868
      %870 = vrot.lane.b32.xlu0 %v854, 96
      %v871 = vpop.permute.xlu0 %870
      %v872 = vsel %vm417, %v831, 0
      %v874 = vsel %vm417, %v871, 0
      %876 = vmatpush.xpose.msra.mxu0 0.0
      %877 = vmatpush.xpose.msra.mxu0 0.0
      %878 = vmatpush.xpose.msra.mxu0 0.0
      %879 = vmatpush.xpose.msra.mxu0 0.0
      %880 = vmatpush.xpose.msra.mxu0 0.0
      %881 = vmatpush.xpose.msra.mxu0 0.0
      %882 = vmatpush.xpose.msra.mxu0 0.0
      %883 = vmatpush.xpose.msra.mxu0 0.0
      %884 = vmatpush.xpose.msra.mxu0 0.0
      %885 = vmatpush.xpose.msra.mxu0 0.0
      %886 = vmatpush.xpose.msra.mxu0 0.0
      %887 = vmatpush.xpose.msra.mxu0 0.0
      %888 = vmatpush.xpose.msra.mxu0 0.0
      %889 = vmatpush.xpose.msra.mxu0 0.0
      %890 = vmatpush.xpose.msra.mxu0 0.0
      %891 = vmatpush.xpose.msra.mxu0 %v874
      %892 = vmatmul.f32.gmra.mxu0 %v872
      %v893 = vpop.f32.mrf.mxu0
      %v894 = vadd.f32 0.0, %v893
      %895 = vdwg.mxu0
      %896 = vrot.lane.b32.xlu0 %v865, 96
      %v897 = vpop.permute.xlu0 %896
      %v898 = vsel %vm417, %v858, 0
      %v900 = vsel %vm417, %v897, 0
      %902 = vmatpush.xpose.msra.mxu0 0.0
      %903 = vmatpush.xpose.msra.mxu0 0.0
      %904 = vmatpush.xpose.msra.mxu0 0.0
      %905 = vmatpush.xpose.msra.mxu0 0.0
      %906 = vmatpush.xpose.msra.mxu0 0.0
      %907 = vmatpush.xpose.msra.mxu0 0.0
      %908 = vmatpush.xpose.msra.mxu0 0.0
      %909 = vmatpush.xpose.msra.mxu0 0.0
      %910 = vmatpush.xpose.msra.mxu0 0.0
      %911 = vmatpush.xpose.msra.mxu0 0.0
      %912 = vmatpush.xpose.msra.mxu0 0.0
      %913 = vmatpush.xpose.msra.mxu0 0.0
      %914 = vmatpush.xpose.msra.mxu0 0.0
      %915 = vmatpush.xpose.msra.mxu0 0.0
      %916 = vmatpush.xpose.msra.mxu0 0.0
      %917 = vmatpush.xpose.msra.mxu0 %v900
      %918 = vmatmul.f32.gmra.mxu0 %v898
      %v919 = vpop.f32.mrf.mxu0
      %v920 = vadd.f32 0.0, %v919
      %921 = vdwg.mxu0
      %922 = vrot.lane.b32.xlu0 %v867, 96
      %v923 = vpop.permute.xlu0 %922
      %v924 = vsel %vm417, %v860, 0
      %v926 = vsel %vm417, %v923, 0
      %928 = vmatpush.xpose.msra.mxu0 0.0
      %929 = vmatpush.xpose.msra.mxu0 0.0
      %930 = vmatpush.xpose.msra.mxu0 0.0
      %931 = vmatpush.xpose.msra.mxu0 0.0
      %932 = vmatpush.xpose.msra.mxu0 0.0
      %933 = vmatpush.xpose.msra.mxu0 0.0
      %934 = vmatpush.xpose.msra.mxu0 0.0
      %935 = vmatpush.xpose.msra.mxu0 0.0
      %936 = vmatpush.xpose.msra.mxu0 0.0
      %937 = vmatpush.xpose.msra.mxu0 0.0
      %938 = vmatpush.xpose.msra.mxu0 0.0
      %939 = vmatpush.xpose.msra.mxu0 0.0
      %940 = vmatpush.xpose.msra.mxu0 0.0
      %941 = vmatpush.xpose.msra.mxu0 0.0
      %942 = vmatpush.xpose.msra.mxu0 0.0
      %943 = vmatpush.xpose.msra.mxu0 %v926
      %944 = vmatmul.f32.gmra.mxu0 %v924
      %v945 = vpop.f32.mrf.mxu0
      %v946 = vadd.f32 0.0, %v945
      %947 = vdwg.mxu0
      %948 = vrot.lane.b32.xlu0 %v869, 96
      %v949 = vpop.permute.xlu0 %948
      %v950 = vsel %vm417, %v862, 0
      %v952 = vsel %vm417, %v949, 0
      %954 = vmatpush.xpose.msra.mxu0 0.0
      %955 = vmatpush.xpose.msra.mxu0 0.0
      %956 = vmatpush.xpose.msra.mxu0 0.0
      %957 = vmatpush.xpose.msra.mxu0 0.0
      %958 = vmatpush.xpose.msra.mxu0 0.0
      %959 = vmatpush.xpose.msra.mxu0 0.0
      %960 = vmatpush.xpose.msra.mxu0 0.0
      %961 = vmatpush.xpose.msra.mxu0 0.0
      %962 = vmatpush.xpose.msra.mxu0 0.0
      %963 = vmatpush.xpose.msra.mxu0 0.0
      %964 = vmatpush.xpose.msra.mxu0 0.0
      %965 = vmatpush.xpose.msra.mxu0 0.0
      %966 = vmatpush.xpose.msra.mxu0 0.0
      %967 = vmatpush.xpose.msra.mxu0 0.0
      %968 = vmatpush.xpose.msra.mxu0 0.0
      %969 = vmatpush.xpose.msra.mxu0 %v952
      %970 = vmatmul.f32.gmra.mxu0 %v950
      %v971 = vpop.f32.mrf.mxu0
      %v972 = vadd.f32 0.0, %v971
      %973 = vdwg.mxu0
      %v974 = vmul.f32 %v894, 0.35355338
      %v975 = vmul.f32 %v920, 0.35355338
      %v976 = vmul.f32 %v946, 0.35355338
      %v977 = vmul.f32 %v972, 0.35355338
      %v978 = vsel %vm417, %v974, -inf
      %979 = vmax.xlane.f32.xlu0 %v978
      %v980 = vpop.xlane.xlu0 %979
      %v981 = vsel %vm417, %v975, -inf
      %982 = vmax.xlane.f32.xlu0 %v981
      %v983 = vpop.xlane.xlu0 %982
      %v984 = vsel %vm417, %v976, -inf
      %985 = vmax.xlane.f32.xlu0 %v984
      %v986 = vpop.xlane.xlu0 %985
      %v987 = vsel %vm417, %v977, -inf
      %988 = vmax.xlane.f32.xlu0 %v987
      %v989 = vpop.xlane.xlu0 %988
      %v990 = vsub.f32 %v974, %v980
      %v991 = vsub.f32 %v975, %v983
      %v992 = vsub.f32 %v976, %v986
      %v993 = vsub.f32 %v977, %v989
      %v994 = vmul.f32 %v990, 1.442695
      %v995 = vpow.pop %v994
      %v996 = vmul.f32 %v991, 1.442695
      %v997 = vpow.pop %v996
      %v998 = vmul.f32 %v992, 1.442695
      %v999 = vpow.pop %v998
      %v1000 = vmul.f32 %v993, 1.442695
      %v1001 = vpow.pop %v1000
      %v1002 = vsel %vm417, %v995, 0.0
      %1003 = vadd.xlane.f32.xlu0 %v1002
      %v1004 = vpop.xlane.xlu0 %1003
      %v1005 = vsel %vm417, %v997, 0.0
      %1006 = vadd.xlane.f32.xlu0 %v1005
      %v1007 = vpop.xlane.xlu0 %1006
      %v1008 = vsel %vm417, %v999, 0.0
      %1009 = vadd.xlane.f32.xlu0 %v1008
      %v1010 = vpop.xlane.xlu0 %1009
      %v1011 = vsel %vm417, %v1001, 0.0
      %1012 = vadd.xlane.f32.xlu0 %v1011
      %v1013 = vpop.xlane.xlu0 %1012
      %v1014 = vrcp.pop %v1004
      %v1015 = vmul.f32 %v1004, %v1014
      %v1016 = vsub.f32 1.0, %v1015
      %v1017 = vmul.f32 %v1014, %v1016
      %v1018 = vadd.f32 %v1014, %v1017
      %vm1019 = vweird.f32 %v1004
      %vm1020 = vweird.f32 %v1014
      %vm1021 = vmor %vm1019, %vm1020
      %v1022 = vsel %vm1021, %v1014, %v1018
      %v1023 = vand.u32 2147483647, %v1004
      %vm1024 = vcmp.eq.f32.partialorder %v1023, 8.507059e+37
      %v1025 = vand.u32 %v1004, 2147483648
      %v1026 = vor.u32 1.1754944e-38, %v1025
      %v1027 = vsel %vm1024, %v1026, %v1022
      %v1028 = vmul.f32 %v995, %v1027
      %v1029 = vrcp.pop %v1007
      %v1030 = vmul.f32 %v1007, %v1029
      %v1031 = vsub.f32 1.0, %v1030
      %v1032 = vmul.f32 %v1029, %v1031
      %v1033 = vadd.f32 %v1029, %v1032
      %vm1034 = vweird.f32 %v1007
      %vm1035 = vweird.f32 %v1029
      %vm1036 = vmor %vm1034, %vm1035
      %v1037 = vsel %vm1036, %v1029, %v1033
      %v1038 = vand.u32 2147483647, %v1007
      %vm1039 = vcmp.eq.f32.partialorder %v1038, 8.507059e+37
      %v1040 = vand.u32 %v1007, 2147483648
      %v1041 = vor.u32 1.1754944e-38, %v1040
      %v1042 = vsel %vm1039, %v1041, %v1037
      %v1043 = vmul.f32 %v997, %v1042
      %v1044 = vrcp.pop %v1010
      %v1045 = vmul.f32 %v1010, %v1044
      %v1046 = vsub.f32 1.0, %v1045
      %v1047 = vmul.f32 %v1044, %v1046
      %v1048 = vadd.f32 %v1044, %v1047
      %vm1049 = vweird.f32 %v1010
      %vm1050 = vweird.f32 %v1044
      %vm1051 = vmor %vm1049, %vm1050
      %v1052 = vsel %vm1051, %v1044, %v1048
      %v1053 = vand.u32 2147483647, %v1010
      %vm1054 = vcmp.eq.f32.partialorder %v1053, 8.507059e+37
      %v1055 = vand.u32 %v1010, 2147483648
      %v1056 = vor.u32 1.1754944e-38, %v1055
      %v1057 = vsel %vm1054, %v1056, %v1052
      %v1058 = vmul.f32 %v999, %v1057
      %v1059 = vrcp.pop %v1013
      %v1060 = vmul.f32 %v1013, %v1059
      %v1061 = vsub.f32 1.0, %v1060
      %v1062 = vmul.f32 %v1059, %v1061
      %v1063 = vadd.f32 %v1059, %v1062
      %vm1064 = vweird.f32 %v1013
      %vm1065 = vweird.f32 %v1059
      %vm1066 = vmor %vm1064, %vm1065
      %v1067 = vsel %vm1066, %v1059, %v1063
      %v1068 = vand.u32 2147483647, %v1013
      %vm1069 = vcmp.eq.f32.partialorder %v1068, 8.507059e+37
      %v1070 = vand.u32 %v1013, 2147483648
      %v1071 = vor.u32 1.1754944e-38, %v1070
      %v1072 = vsel %vm1069, %v1071, %v1067
      %v1073 = vmul.f32 %v1001, %v1072
      %1074 = vrot.lane.b32.xlu0 %v854, 64
      %v1075 = vpop.permute.xlu0 %1074
      %v1078 = vsel %vm417, %v1028, 0
      %1080 = vmatpush.msra.mxu0 0.0
      %1081 = vmatpush.msra.mxu0 0.0
      %1082 = vmatpush.msra.mxu0 0.0
      %1083 = vmatpush.msra.mxu0 0.0
      %1084 = vmatpush.msra.mxu0 0.0
      %1085 = vmatpush.msra.mxu0 0.0
      %1086 = vmatpush.msra.mxu0 0.0
      %1087 = vmatpush.msra.mxu0 0.0
      %1088 = vmatpush.msra.mxu0 0.0
      %1089 = vmatpush.msra.mxu0 0.0
      %1090 = vmatpush.msra.mxu0 0.0
      %1091 = vmatpush.msra.mxu0 0.0
      %1092 = vmatpush.msra.mxu0 0.0
      %1093 = vmatpush.msra.mxu0 0.0
      %1094 = vmatpush.msra.mxu0 0.0
      %1095 = vmatpush.msra.mxu0 %v1075
      %1096 = vmatmul.f32.gmra.mxu0 %v1078
      %v1097 = vpop.f32.mrf.mxu0
      %v1098 = vadd.f32 0.0, %v1097
      %1099 = vdwg.mxu0
      %1100 = vrot.lane.b32.xlu0 %v865, 64
      %v1101 = vpop.permute.xlu0 %1100
      %v1104 = vsel %vm417, %v1043, 0
      %1106 = vmatpush.msra.mxu0 0.0
      %1107 = vmatpush.msra.mxu0 0.0
      %1108 = vmatpush.msra.mxu0 0.0
      %1109 = vmatpush.msra.mxu0 0.0
      %1110 = vmatpush.msra.mxu0 0.0
      %1111 = vmatpush.msra.mxu0 0.0
      %1112 = vmatpush.msra.mxu0 0.0
      %1113 = vmatpush.msra.mxu0 0.0
      %1114 = vmatpush.msra.mxu0 0.0
      %1115 = vmatpush.msra.mxu0 0.0
      %1116 = vmatpush.msra.mxu0 0.0
      %1117 = vmatpush.msra.mxu0 0.0
      %1118 = vmatpush.msra.mxu0 0.0
      %1119 = vmatpush.msra.mxu0 0.0
      %1120 = vmatpush.msra.mxu0 0.0
      %1121 = vmatpush.msra.mxu0 %v1101
      %1122 = vmatmul.f32.gmra.mxu0 %v1104
      %v1123 = vpop.f32.mrf.mxu0
      %v1124 = vadd.f32 0.0, %v1123
      %1125 = vdwg.mxu0
      %1126 = vrot.lane.b32.xlu0 %v867, 64
      %v1127 = vpop.permute.xlu0 %1126
      %v1130 = vsel %vm417, %v1058, 0
      %1132 = vmatpush.msra.mxu0 0.0
      %1133 = vmatpush.msra.mxu0 0.0
      %1134 = vmatpush.msra.mxu0 0.0
      %1135 = vmatpush.msra.mxu0 0.0
      %1136 = vmatpush.msra.mxu0 0.0
      %1137 = vmatpush.msra.mxu0 0.0
      %1138 = vmatpush.msra.mxu0 0.0
      %1139 = vmatpush.msra.mxu0 0.0
      %1140 = vmatpush.msra.mxu0 0.0
      %1141 = vmatpush.msra.mxu0 0.0
      %1142 = vmatpush.msra.mxu0 0.0
      %1143 = vmatpush.msra.mxu0 0.0
      %1144 = vmatpush.msra.mxu0 0.0
      %1145 = vmatpush.msra.mxu0 0.0
      %1146 = vmatpush.msra.mxu0 0.0
      %1147 = vmatpush.msra.mxu0 %v1127
      %1148 = vmatmul.f32.gmra.mxu0 %v1130
      %v1149 = vpop.f32.mrf.mxu0
      %v1150 = vadd.f32 0.0, %v1149
      %1151 = vdwg.mxu0
      %1152 = vrot.lane.b32.xlu0 %v869, 64
      %v1153 = vpop.permute.xlu0 %1152
      %v1156 = vsel %vm417, %v1073, 0
      %1158 = vmatpush.msra.mxu0 0.0
      %1159 = vmatpush.msra.mxu0 0.0
      %1160 = vmatpush.msra.mxu0 0.0
      %1161 = vmatpush.msra.mxu0 0.0
      %1162 = vmatpush.msra.mxu0 0.0
      %1163 = vmatpush.msra.mxu0 0.0
      %1164 = vmatpush.msra.mxu0 0.0
      %1165 = vmatpush.msra.mxu0 0.0
      %1166 = vmatpush.msra.mxu0 0.0
      %1167 = vmatpush.msra.mxu0 0.0
      %1168 = vmatpush.msra.mxu0 0.0
      %1169 = vmatpush.msra.mxu0 0.0
      %1170 = vmatpush.msra.mxu0 0.0
      %1171 = vmatpush.msra.mxu0 0.0
      %1172 = vmatpush.msra.mxu0 0.0
      %1173 = vmatpush.msra.mxu0 %v1153
      %1174 = vmatmul.f32.gmra.mxu0 %v1156
      %v1175 = vpop.f32.mrf.mxu0
      %v1176 = vadd.f32 0.0, %v1175
      %1177 = vdwg.mxu0
      %1179 = vrot.lane.b32.xlu0 %v1124, 8
      %v1180 = vpop.permute.xlu0 %1179
      %1183 = vrot.lane.b32.xlu0 %v1150, 16
      %v1184 = vpop.permute.xlu0 %1183
      %1187 = vrot.lane.b32.xlu0 %v1176, 24
      %v1188 = vpop.permute.xlu0 %1187
      %v1190 = vsel %vm417, %v1098, %v1180
      %v1191 = vsel %vm737, %v1190, %v1184
      %v1192 = vsel %vm739, %v1191, %v1188
      %1197 = vrot.lane.b32.xlu0 %v333, 32
      %v1198 = vpop.permute.xlu0 %1197
      %1199 = vrot.lane.b32.xlu0 %v334, 32
      %v1200 = vpop.permute.xlu0 %1199
      %1201 = vrot.lane.b32.xlu0 %v335, 32
      %v1202 = vpop.permute.xlu0 %1201
      %1203 = vrot.lane.b32.xlu0 %v336, 32
      %v1204 = vpop.permute.xlu0 %1203
      %1210 = vrot.lane.b32.xlu0 %v809, 32
      %v1211 = vpop.permute.xlu0 %1210
      %v1214 = vsel %vm350, %v1192, 0
      %1216 = vmatpush.msra.mxu0 0.0
      %1217 = vmatpush.msra.mxu0 0.0
      %1218 = vmatpush.msra.mxu0 0.0
      %1219 = vmatpush.msra.mxu0 0.0
      %1220 = vmatpush.msra.mxu0 0.0
      %1221 = vmatpush.msra.mxu0 0.0
      %1222 = vmatpush.msra.mxu0 0.0
      %1223 = vmatpush.msra.mxu0 0.0
      %1224 = vmatpush.msra.mxu0 0.0
      %1225 = vmatpush.msra.mxu0 0.0
      %1226 = vmatpush.msra.mxu0 0.0
      %1227 = vmatpush.msra.mxu0 0.0
      %1228 = vmatpush.msra.mxu0 %v1204
      %1229 = vmatpush.msra.mxu0 %v1202
      %1230 = vmatpush.msra.mxu0 %v1200
      %1231 = vmatpush.msra.mxu0 %v1198
      %1232 = vmatmul.f32.gmra.mxu0 %v1214
      %v1233 = vpop.f32.mrf.mxu0
      %v1234 = vadd.f32 %v1211, %v1233
      %1235 = vdwg.mxu0
      %v1236 = vadd.f32 %v1234, %v808
      %v1237 = vsel %vm350, %v1236, 0.0
      %1238 = vadd.xlane.f32.xlu0 %v1237
      %v1239 = vpop.xlane.xlu0 %1238
      %v1240 = vmul.f32 %v1239, %v360
      %v1241 = vsub.f32 %v1236, %v1240
      %v1242 = vmul.f32 %v1241, %v1241
      %v1243 = vsel %vm350, %v1242, 0.0
      %1244 = vadd.xlane.f32.xlu0 %v1243
      %v1245 = vpop.xlane.xlu0 %1244
      %v1246 = vmul.f32 %v1245, %v360
      %v1247 = vadd.f32 %v1246, 1e-05
      %v1248 = vrsqrt.pop %v1247
      %v1249 = vmul.f32 %v1248, %v1247
      %v1250 = vmul.f32 %v1249, %v1248
      %v1251 = vmul.f32 0.5, %v1250
      %v1252 = vsub.f32 1.5, %v1251
      %v1253 = vmul.f32 %v1248, %v1252
      %vm1254 = vweird.f32 %v1247
      %vm1255 = vweird.f32 %v1248
      %vm1256 = vmor %vm1254, %vm1255
      %v1257 = vsel %vm1256, %v1248, %v1253
      %v1258 = vmul.f32 %v1241, %v1257
      %v1259 = vperm.slane %v322, 0
      %v1260 = vmul.f32 %v1258, %v1259
      %v1261 = vperm.slane %v323, 0
      %v1262 = vadd.f32 %v1260, %v1261
      %v1263 = vadd.f32 %v1262, %v808
      %v1264 = vperm.slane %v327, 0
      %v1266 = vsel %vm350, %v1263, 0
      %1268 = vmatpush.msra.mxu0 0.0
      %1269 = vmatpush.msra.mxu0 0.0
      %1270 = vmatpush.msra.mxu0 0.0
      %1271 = vmatpush.msra.mxu0 0.0
      %1272 = vmatpush.msra.mxu0 0.0
      %1273 = vmatpush.msra.mxu0 0.0
      %1274 = vmatpush.msra.mxu0 0.0
      %1275 = vmatpush.msra.mxu0 0.0
      %1276 = vmatpush.msra.mxu0 0.0
      %1277 = vmatpush.msra.mxu0 0.0
      %1278 = vmatpush.msra.mxu0 0.0
      %1279 = vmatpush.msra.mxu0 0.0
      %1280 = vmatpush.msra.mxu0 %v341
      %1281 = vmatpush.msra.mxu0 %v340
      %1282 = vmatpush.msra.mxu0 %v339
      %1283 = vmatpush.msra.mxu0 %v338
      %1284 = vmatmul.f32.gmra.mxu0 %v1266
      %v1285 = vpop.f32.mrf.mxu0
      %v1286 = vadd.f32 %v1264, %v1285
      %1287 = vdwg.mxu0
      %v1288 = vmax.f32 %v1286, 0.0
      %v1289 = vperm.slane %v326, 0
      %vm1290 = vcmask 523264
      %v1292 = vsel %vm1290, %v1288, 0
      %1294 = vmatpush.msra.mxu0 0.0
      %1295 = vmatpush.msra.mxu0 0.0
      %1296 = vmatpush.msra.mxu0 0.0
      %1297 = vmatpush.msra.mxu0 0.0
      %1298 = vmatpush.msra.mxu0 0.0
      %1299 = vmatpush.msra.mxu0 0.0
      %1300 = vmatpush.msra.mxu0 0.0
      %1301 = vmatpush.msra.mxu0 0.0
      %1302 = vmatpush.msra.mxu0 %v349
      %1303 = vmatpush.msra.mxu0 %v348
      %1304 = vmatpush.msra.mxu0 %v347
      %1305 = vmatpush.msra.mxu0 %v346
      %1306 = vmatpush.msra.mxu0 %v345
      %1307 = vmatpush.msra.mxu0 %v344
      %1308 = vmatpush.msra.mxu0 %v343
      %1309 = vmatpush.msra.mxu0 %v342
      %1310 = vmatmul.f32.gmra.mxu0 %v1292
      %v1311 = vpop.f32.mrf.mxu0
      %v1312 = vadd.f32 %v1289, %v1311
      %1313 = vdwg.mxu0
      %v1314 = vsel %vm350, %v1312, 0.0
      %1315 = vadd.xlane.f32.xlu0 %v1314
      %v1316 = vpop.xlane.xlu0 %1315
      %v1317 = vmul.f32 %v1316, %v360
      %v1318 = vsub.f32 %v1312, %v1317
      %v1319 = vmul.f32 %v1318, %v1318
      %v1320 = vsel %vm350, %v1319, 0.0
      %1321 = vadd.xlane.f32.xlu0 %v1320
      %v1322 = vpop.xlane.xlu0 %1321
      %v1323 = vmul.f32 %v1322, %v360
      %v1324 = vadd.f32 %v1323, 1e-05
      %v1325 = vrsqrt.pop %v1324
      %v1326 = vmul.f32 %v1325, %v1324
      %v1327 = vmul.f32 %v1326, %v1325
      %v1328 = vmul.f32 0.5, %v1327
      %v1329 = vsub.f32 1.5, %v1328
      %v1330 = vmul.f32 %v1325, %v1329
      %vm1331 = vweird.f32 %v1324
      %vm1332 = vweird.f32 %v1325
      %vm1333 = vmor %vm1331, %vm1332
      %v1334 = vsel %vm1333, %v1325, %v1330
      %v1335 = vmul.f32 %v1318, %v1334
      %v1336 = vperm.slane %v324, 0
      %v1337 = vmul.f32 %v1335, %v1336
      %v1338 = vperm.slane %v325, 0
      %v1339 = vadd.f32 %v1337, %v1338
      %v1340 = vadd.f32 %v1339, %v1263
      %v1341 = vld [vmem:[%s6 + $0x8] sm:$0x1]
      %v1342 = vld [vmem:[%s6 + $0x9] sm:$0x1]
      %v1343 = vld [vmem:[%s6 + $0xa] sm:$0x1]
      %v1344 = vld [vmem:[%s6 + $0xb] sm:$0x1]
      %v1345 = vld [vmem:[%s6 + $0xc] sm:$0x1]
      %v1346 = vld [vmem:[%s6 + $0xd] sm:$0x1]
      %v1347 = vld [vmem:[%s6 + $0xe] sm:$0x1]
      %v1348 = vld [vmem:[%s6 + $0xf] sm:$0x1]
      %v1349 = vld [vmem:[%s2 + $0x40] sm:$0xff]
      %v1350 = vld [vmem:[%s2 + $0x48] sm:$0xff]
      %v1351 = vld [vmem:[%s2 + $0x50] sm:$0xff]
      %v1352 = vld [vmem:[%s2 + $0x58] sm:$0xff]
      %v1353 = vld [vmem:[%s3 + $0x2] sm:$0x1]
      %v1354 = vld [vmem:[%s2 + $0x60] sm:$0xff]
      %v1355 = vld [vmem:[%s2 + $0x68] sm:$0xff]
      %v1356 = vld [vmem:[%s2 + $0x70] sm:$0xff]
      %v1357 = vld [vmem:[%s2 + $0x78] sm:$0xff]
      %v1358 = vld [vmem:[%s3 + $0x3] sm:$0x1]
      %v1359 = vld [vmem:[%s4 + $0x20] sm:$0xff]
      %v1360 = vld [vmem:[%s4 + $0x28] sm:$0xff]
      %v1361 = vld [vmem:[%s4 + $0x30] sm:$0xff]
      %v1362 = vld [vmem:[%s4 + $0x38] sm:$0xff]
      %v1363 = vld [vmem:[%s5 + $0x40] sm:$0xff]
      %v1364 = vld [vmem:[%s5 + $0x48] sm:$0xff]
      %v1365 = vld [vmem:[%s5 + $0x50] sm:$0xff]
      %v1366 = vld [vmem:[%s5 + $0x58] sm:$0xff]
      %v1367 = vld [vmem:[%s5 + $0x60] sm:$0xff]
      %v1368 = vld [vmem:[%s5 + $0x68] sm:$0xff]
      %v1369 = vld [vmem:[%s5 + $0x70] sm:$0xff]
      %v1370 = vld [vmem:[%s5 + $0x78] sm:$0xff]
      %v1371 = vsel %vm350, %v1340, 0.0
      %1372 = vadd.xlane.f32.xlu0 %v1371
      %v1373 = vpop.xlane.xlu0 %1372
      %v1374 = vmul.f32 %v1373, %v360
      %v1375 = vsub.f32 %v1340, %v1374
      %v1376 = vmul.f32 %v1375, %v1375
      %v1377 = vsel %vm350, %v1376, 0.0
      %1378 = vadd.xlane.f32.xlu0 %v1377
      %v1379 = vpop.xlane.xlu0 %1378
      %v1380 = vmul.f32 %v1379, %v360
      %v1381 = vadd.f32 %v1380, 1e-05
      %v1382 = vrsqrt.pop %v1381
      %v1383 = vmul.f32 %v1382, %v1381
      %v1384 = vmul.f32 %v1383, %v1382
      %v1385 = vmul.f32 0.5, %v1384
      %v1386 = vsub.f32 1.5, %v1385
      %v1387 = vmul.f32 %v1382, %v1386
      %vm1388 = vweird.f32 %v1381
      %vm1389 = vweird.f32 %v1382
      %vm1390 = vmor %vm1388, %vm1389
      %v1391 = vsel %vm1390, %v1382, %v1387
      %v1392 = vmul.f32 %v1375, %v1391
      %v1393 = vperm.slane %v1341, 0
      %v1394 = vmul.f32 %v1392, %v1393
      %v1395 = vperm.slane %v1342, 0
      %v1396 = vadd.f32 %v1394, %v1395
      %v1397 = vperm.slane %v1353, 0
      %v1399 = vsel %vm350, %v1396, 0
      %1401 = vmatpush.msra.mxu0 0.0
      %1402 = vmatpush.msra.mxu0 0.0
      %1403 = vmatpush.msra.mxu0 0.0
      %1404 = vmatpush.msra.mxu0 0.0
      %1405 = vmatpush.msra.mxu0 0.0
      %1406 = vmatpush.msra.mxu0 0.0
      %1407 = vmatpush.msra.mxu0 0.0
      %1408 = vmatpush.msra.mxu0 0.0
      %1409 = vmatpush.msra.mxu0 0.0
      %1410 = vmatpush.msra.mxu0 0.0
      %1411 = vmatpush.msra.mxu0 0.0
      %1412 = vmatpush.msra.mxu0 0.0
      %1413 = vmatpush.msra.mxu0 %v1352
      %1414 = vmatpush.msra.mxu0 %v1351
      %1415 = vmatpush.msra.mxu0 %v1350
      %1416 = vmatpush.msra.mxu0 %v1349
      %1417 = vmatmul.f32.gmra.mxu0 %v1399
      %v1418 = vpop.f32.mrf.mxu0
      %v1419 = vadd.f32 %v1397, %v1418
      %1420 = vdwg.mxu0
      %1422 = vrot.lane.b32.xlu0 %v1419, 120
      %v1423 = vpop.permute.xlu0 %1422
      %1424 = vrot.lane.b32.xlu0 %v1419, 112
      %v1425 = vpop.permute.xlu0 %1424
      %1426 = vrot.lane.b32.xlu0 %v1419, 104
      %v1427 = vpop.permute.xlu0 %1426
      %1428 = vrot.lane.b32.xlu0 %v1419, 96
      %v1429 = vpop.permute.xlu0 %1428
      %v1430 = vsel %vm417, %v1419, 0
      %v1432 = vsel %vm417, %v1429, 0
      %1434 = vmatpush.xpose.msra.mxu0 0.0
      %1435 = vmatpush.xpose.msra.mxu0 0.0
      %1436 = vmatpush.xpose.msra.mxu0 0.0
      %1437 = vmatpush.xpose.msra.mxu0 0.0
      %1438 = vmatpush.xpose.msra.mxu0 0.0
      %1439 = vmatpush.xpose.msra.mxu0 0.0
      %1440 = vmatpush.xpose.msra.mxu0 0.0
      %1441 = vmatpush.xpose.msra.mxu0 0.0
      %1442 = vmatpush.xpose.msra.mxu0 0.0
      %1443 = vmatpush.xpose.msra.mxu0 0.0
      %1444 = vmatpush.xpose.msra.mxu0 0.0
      %1445 = vmatpush.xpose.msra.mxu0 0.0
      %1446 = vmatpush.xpose.msra.mxu0 0.0
      %1447 = vmatpush.xpose.msra.mxu0 0.0
      %1448 = vmatpush.xpose.msra.mxu0 0.0
      %1449 = vmatpush.xpose.msra.mxu0 %v1432
      %1450 = vmatmul.f32.gmra.mxu0 %v1430
      %v1451 = vpop.f32.mrf.mxu0
      %v1452 = vadd.f32 0.0, %v1451
      %1453 = vdwg.mxu0
      %1454 = vrot.lane.b32.xlu0 %v1423, 96
      %v1455 = vpop.permute.xlu0 %1454
      %v1456 = vsel %vm417, %v1423, 0
      %v1458 = vsel %vm417, %v1455, 0
      %1460 = vmatpush.xpose.msra.mxu0 0.0
      %1461 = vmatpush.xpose.msra.mxu0 0.0
      %1462 = vmatpush.xpose.msra.mxu0 0.0
      %1463 = vmatpush.xpose.msra.mxu0 0.0
      %1464 = vmatpush.xpose.msra.mxu0 0.0
      %1465 = vmatpush.xpose.msra.mxu0 0.0
      %1466 = vmatpush.xpose.msra.mxu0 0.0
      %1467 = vmatpush.xpose.msra.mxu0 0.0
      %1468 = vmatpush.xpose.msra.mxu0 0.0
      %1469 = vmatpush.xpose.msra.mxu0 0.0
      %1470 = vmatpush.xpose.msra.mxu0 0.0
      %1471 = vmatpush.xpose.msra.mxu0 0.0
      %1472 = vmatpush.xpose.msra.mxu0 0.0
      %1473 = vmatpush.xpose.msra.mxu0 0.0
      %1474 = vmatpush.xpose.msra.mxu0 0.0
      %1475 = vmatpush.xpose.msra.mxu0 %v1458
      %1476 = vmatmul.f32.gmra.mxu0 %v1456
      %v1477 = vpop.f32.mrf.mxu0
      %v1478 = vadd.f32 0.0, %v1477
      %1479 = vdwg.mxu0
      %1480 = vrot.lane.b32.xlu0 %v1425, 96
      %v1481 = vpop.permute.xlu0 %1480
      %v1482 = vsel %vm417, %v1425, 0
      %v1484 = vsel %vm417, %v1481, 0
      %1486 = vmatpush.xpose.msra.mxu0 0.0
      %1487 = vmatpush.xpose.msra.mxu0 0.0
      %1488 = vmatpush.xpose.msra.mxu0 0.0
      %1489 = vmatpush.xpose.msra.mxu0 0.0
      %1490 = vmatpush.xpose.msra.mxu0 0.0
      %1491 = vmatpush.xpose.msra.mxu0 0.0
      %1492 = vmatpush.xpose.msra.mxu0 0.0
      %1493 = vmatpush.xpose.msra.mxu0 0.0
      %1494 = vmatpush.xpose.msra.mxu0 0.0
      %1495 = vmatpush.xpose.msra.mxu0 0.0
      %1496 = vmatpush.xpose.msra.mxu0 0.0
      %1497 = vmatpush.xpose.msra.mxu0 0.0
      %1498 = vmatpush.xpose.msra.mxu0 0.0
      %1499 = vmatpush.xpose.msra.mxu0 0.0
      %1500 = vmatpush.xpose.msra.mxu0 0.0
      %1501 = vmatpush.xpose.msra.mxu0 %v1484
      %1502 = vmatmul.f32.gmra.mxu0 %v1482
      %v1503 = vpop.f32.mrf.mxu0
      %v1504 = vadd.f32 0.0, %v1503
      %1505 = vdwg.mxu0
      %1506 = vrot.lane.b32.xlu0 %v1427, 96
      %v1507 = vpop.permute.xlu0 %1506
      %v1508 = vsel %vm417, %v1427, 0
      %v1510 = vsel %vm417, %v1507, 0
      %1512 = vmatpush.xpose.msra.mxu0 0.0
      %1513 = vmatpush.xpose.msra.mxu0 0.0
      %1514 = vmatpush.xpose.msra.mxu0 0.0
      %1515 = vmatpush.xpose.msra.mxu0 0.0
      %1516 = vmatpush.xpose.msra.mxu0 0.0
      %1517 = vmatpush.xpose.msra.mxu0 0.0
      %1518 = vmatpush.xpose.msra.mxu0 0.0
      %1519 = vmatpush.xpose.msra.mxu0 0.0
      %1520 = vmatpush.xpose.msra.mxu0 0.0
      %1521 = vmatpush.xpose.msra.mxu0 0.0
      %1522 = vmatpush.xpose.msra.mxu0 0.0
      %1523 = vmatpush.xpose.msra.mxu0 0.0
      %1524 = vmatpush.xpose.msra.mxu0 0.0
      %1525 = vmatpush.xpose.msra.mxu0 0.0
      %1526 = vmatpush.xpose.msra.mxu0 0.0
      %1527 = vmatpush.xpose.msra.mxu0 %v1510
      %1528 = vmatmul.f32.gmra.mxu0 %v1508
      %v1529 = vpop.f32.mrf.mxu0
      %v1530 = vadd.f32 0.0, %v1529
      %1531 = vdwg.mxu0
      %v1532 = vmul.f32 %v1452, 0.35355338
      %v1533 = vmul.f32 %v1478, 0.35355338
      %v1534 = vmul.f32 %v1504, 0.35355338
      %v1535 = vmul.f32 %v1530, 0.35355338
      %v1536 = vsel %vm417, %v1532, -inf
      %1537 = vmax.xlane.f32.xlu0 %v1536
      %v1538 = vpop.xlane.xlu0 %1537
      %v1539 = vsel %vm417, %v1533, -inf
      %1540 = vmax.xlane.f32.xlu0 %v1539
      %v1541 = vpop.xlane.xlu0 %1540
      %v1542 = vsel %vm417, %v1534, -inf
      %1543 = vmax.xlane.f32.xlu0 %v1542
      %v1544 = vpop.xlane.xlu0 %1543
      %v1545 = vsel %vm417, %v1535, -inf
      %1546 = vmax.xlane.f32.xlu0 %v1545
      %v1547 = vpop.xlane.xlu0 %1546
      %v1548 = vsub.f32 %v1532, %v1538
      %v1549 = vsub.f32 %v1533, %v1541
      %v1550 = vsub.f32 %v1534, %v1544
      %v1551 = vsub.f32 %v1535, %v1547
      %v1552 = vmul.f32 %v1548, 1.442695
      %v1553 = vpow.pop %v1552
      %v1554 = vmul.f32 %v1549, 1.442695
      %v1555 = vpow.pop %v1554
      %v1556 = vmul.f32 %v1550, 1.442695
      %v1557 = vpow.pop %v1556
      %v1558 = vmul.f32 %v1551, 1.442695
      %v1559 = vpow.pop %v1558
      %v1560 = vsel %vm417, %v1553, 0.0
      %1561 = vadd.xlane.f32.xlu0 %v1560
      %v1562 = vpop.xlane.xlu0 %1561
      %v1563 = vsel %vm417, %v1555, 0.0
      %1564 = vadd.xlane.f32.xlu0 %v1563
      %v1565 = vpop.xlane.xlu0 %1564
      %v1566 = vsel %vm417, %v1557, 0.0
      %1567 = vadd.xlane.f32.xlu0 %v1566
      %v1568 = vpop.xlane.xlu0 %1567
      %v1569 = vsel %vm417, %v1559, 0.0
      %1570 = vadd.xlane.f32.xlu0 %v1569
      %v1571 = vpop.xlane.xlu0 %1570
      %v1572 = vrcp.pop %v1562
      %v1573 = vmul.f32 %v1562, %v1572
      %v1574 = vsub.f32 1.0, %v1573
      %v1575 = vmul.f32 %v1572, %v1574
      %v1576 = vadd.f32 %v1572, %v1575
      %vm1577 = vweird.f32 %v1562
      %vm1578 = vweird.f32 %v1572
      %vm1579 = vmor %vm1577, %vm1578
      %v1580 = vsel %vm1579, %v1572, %v1576
      %v1581 = vand.u32 2147483647, %v1562
      %vm1582 = vcmp.eq.f32.partialorder %v1581, 8.507059e+37
      %v1583 = vand.u32 %v1562, 2147483648
      %v1584 = vor.u32 1.1754944e-38, %v1583
      %v1585 = vsel %vm1582, %v1584, %v1580
      %v1586 = vmul.f32 %v1553, %v1585
      %v1587 = vrcp.pop %v1565
      %v1588 = vmul.f32 %v1565, %v1587
      %v1589 = vsub.f32 1.0, %v1588
      %v1590 = vmul.f32 %v1587, %v1589
      %v1591 = vadd.f32 %v1587, %v1590
      %vm1592 = vweird.f32 %v1565
      %vm1593 = vweird.f32 %v1587
      %vm1594 = vmor %vm1592, %vm1593
      %v1595 = vsel %vm1594, %v1587, %v1591
      %v1596 = vand.u32 2147483647, %v1565
      %vm1597 = vcmp.eq.f32.partialorder %v1596, 8.507059e+37
      %v1598 = vand.u32 %v1565, 2147483648
      %v1599 = vor.u32 1.1754944e-38, %v1598
      %v1600 = vsel %vm1597, %v1599, %v1595
      %v1601 = vmul.f32 %v1555, %v1600
      %v1602 = vrcp.pop %v1568
      %v1603 = vmul.f32 %v1568, %v1602
      %v1604 = vsub.f32 1.0, %v1603
      %v1605 = vmul.f32 %v1602, %v1604
      %v1606 = vadd.f32 %v1602, %v1605
      %vm1607 = vweird.f32 %v1568
      %vm1608 = vweird.f32 %v1602
      %vm1609 = vmor %vm1607, %vm1608
      %v1610 = vsel %vm1609, %v1602, %v1606
      %v1611 = vand.u32 2147483647, %v1568
      %vm1612 = vcmp.eq.f32.partialorder %v1611, 8.507059e+37
      %v1613 = vand.u32 %v1568, 2147483648
      %v1614 = vor.u32 1.1754944e-38, %v1613
      %v1615 = vsel %vm1612, %v1614, %v1610
      %v1616 = vmul.f32 %v1557, %v1615
      %v1617 = vrcp.pop %v1571
      %v1618 = vmul.f32 %v1571, %v1617
      %v1619 = vsub.f32 1.0, %v1618
      %v1620 = vmul.f32 %v1617, %v1619
      %v1621 = vadd.f32 %v1617, %v1620
      %vm1622 = vweird.f32 %v1571
      %vm1623 = vweird.f32 %v1617
      %vm1624 = vmor %vm1622, %vm1623
      %v1625 = vsel %vm1624, %v1617, %v1621
      %v1626 = vand.u32 2147483647, %v1571
      %vm1627 = vcmp.eq.f32.partialorder %v1626, 8.507059e+37
      %v1628 = vand.u32 %v1571, 2147483648
      %v1629 = vor.u32 1.1754944e-38, %v1628
      %v1630 = vsel %vm1627, %v1629, %v1625
      %v1631 = vmul.f32 %v1559, %v1630
      %1632 = vrot.lane.b32.xlu0 %v1419, 64
      %v1633 = vpop.permute.xlu0 %1632
      %v1636 = vsel %vm417, %v1586, 0
      %1638 = vmatpush.msra.mxu0 0.0
      %1639 = vmatpush.msra.mxu0 0.0
      %1640 = vmatpush.msra.mxu0 0.0
      %1641 = vmatpush.msra.mxu0 0.0
      %1642 = vmatpush.msra.mxu0 0.0
      %1643 = vmatpush.msra.mxu0 0.0
      %1644 = vmatpush.msra.mxu0 0.0
      %1645 = vmatpush.msra.mxu0 0.0
      %1646 = vmatpush.msra.mxu0 0.0
      %1647 = vmatpush.msra.mxu0 0.0
      %1648 = vmatpush.msra.mxu0 0.0
      %1649 = vmatpush.msra.mxu0 0.0
      %1650 = vmatpush.msra.mxu0 0.0
      %1651 = vmatpush.msra.mxu0 0.0
      %1652 = vmatpush.msra.mxu0 0.0
      %1653 = vmatpush.msra.mxu0 %v1633
      %1654 = vmatmul.f32.gmra.mxu0 %v1636
      %v1655 = vpop.f32.mrf.mxu0
      %v1656 = vadd.f32 0.0, %v1655
      %1657 = vdwg.mxu0
      %1658 = vrot.lane.b32.xlu0 %v1423, 64
      %v1659 = vpop.permute.xlu0 %1658
      %v1662 = vsel %vm417, %v1601, 0
      %1664 = vmatpush.msra.mxu0 0.0
      %1665 = vmatpush.msra.mxu0 0.0
      %1666 = vmatpush.msra.mxu0 0.0
      %1667 = vmatpush.msra.mxu0 0.0
      %1668 = vmatpush.msra.mxu0 0.0
      %1669 = vmatpush.msra.mxu0 0.0
      %1670 = vmatpush.msra.mxu0 0.0
      %1671 = vmatpush.msra.mxu0 0.0
      %1672 = vmatpush.msra.mxu0 0.0
      %1673 = vmatpush.msra.mxu0 0.0
      %1674 = vmatpush.msra.mxu0 0.0
      %1675 = vmatpush.msra.mxu0 0.0
      %1676 = vmatpush.msra.mxu0 0.0
      %1677 = vmatpush.msra.mxu0 0.0
      %1678 = vmatpush.msra.mxu0 0.0
      %1679 = vmatpush.msra.mxu0 %v1659
      %1680 = vmatmul.f32.gmra.mxu0 %v1662
      %v1681 = vpop.f32.mrf.mxu0
      %v1682 = vadd.f32 0.0, %v1681
      %1683 = vdwg.mxu0
      %1684 = vrot.lane.b32.xlu0 %v1425, 64
      %v1685 = vpop.permute.xlu0 %1684
      %v1688 = vsel %vm417, %v1616, 0
      %1690 = vmatpush.msra.mxu0 0.0
      %1691 = vmatpush.msra.mxu0 0.0
      %1692 = vmatpush.msra.mxu0 0.0
      %1693 = vmatpush.msra.mxu0 0.0
      %1694 = vmatpush.msra.mxu0 0.0
      %1695 = vmatpush.msra.mxu0 0.0
      %1696 = vmatpush.msra.mxu0 0.0
      %1697 = vmatpush.msra.mxu0 0.0
      %1698 = vmatpush.msra.mxu0 0.0
      %1699 = vmatpush.msra.mxu0 0.0
      %1700 = vmatpush.msra.mxu0 0.0
      %1701 = vmatpush.msra.mxu0 0.0
      %1702 = vmatpush.msra.mxu0 0.0
      %1703 = vmatpush.msra.mxu0 0.0
      %1704 = vmatpush.msra.mxu0 0.0
      %1705 = vmatpush.msra.mxu0 %v1685
      %1706 = vmatmul.f32.gmra.mxu0 %v1688
      %v1707 = vpop.f32.mrf.mxu0
      %v1708 = vadd.f32 0.0, %v1707
      %1709 = vdwg.mxu0
      %1710 = vrot.lane.b32.xlu0 %v1427, 64
      %v1711 = vpop.permute.xlu0 %1710
      %v1714 = vsel %vm417, %v1631, 0
      %1716 = vmatpush.msra.mxu0 0.0
      %1717 = vmatpush.msra.mxu0 0.0
      %1718 = vmatpush.msra.mxu0 0.0
      %1719 = vmatpush.msra.mxu0 0.0
      %1720 = vmatpush.msra.mxu0 0.0
      %1721 = vmatpush.msra.mxu0 0.0
      %1722 = vmatpush.msra.mxu0 0.0
      %1723 = vmatpush.msra.mxu0 0.0
      %1724 = vmatpush.msra.mxu0 0.0
      %1725 = vmatpush.msra.mxu0 0.0
      %1726 = vmatpush.msra.mxu0 0.0
      %1727 = vmatpush.msra.mxu0 0.0
      %1728 = vmatpush.msra.mxu0 0.0
      %1729 = vmatpush.msra.mxu0 0.0
      %1730 = vmatpush.msra.mxu0 0.0
      %1731 = vmatpush.msra.mxu0 %v1711
      %1732 = vmatmul.f32.gmra.mxu0 %v1714
      %v1733 = vpop.f32.mrf.mxu0
      %v1734 = vadd.f32 0.0, %v1733
      %1735 = vdwg.mxu0
      %1737 = vrot.lane.b32.xlu0 %v1682, 8
      %v1738 = vpop.permute.xlu0 %1737
      %1741 = vrot.lane.b32.xlu0 %v1708, 16
      %v1742 = vpop.permute.xlu0 %1741
      %1745 = vrot.lane.b32.xlu0 %v1734, 24
      %v1746 = vpop.permute.xlu0 %1745
      %v1748 = vsel %vm417, %v1656, %v1738
      %v1749 = vsel %vm737, %v1748, %v1742
      %v1750 = vsel %vm739, %v1749, %v1746
      %1755 = vrot.lane.b32.xlu0 %v1349, 32
      %v1756 = vpop.permute.xlu0 %1755
      %1757 = vrot.lane.b32.xlu0 %v1350, 32
      %v1758 = vpop.permute.xlu0 %1757
      %1759 = vrot.lane.b32.xlu0 %v1351, 32
      %v1760 = vpop.permute.xlu0 %1759
      %1761 = vrot.lane.b32.xlu0 %v1352, 32
      %v1762 = vpop.permute.xlu0 %1761
      %1768 = vrot.lane.b32.xlu0 %v1397, 32
      %v1769 = vpop.permute.xlu0 %1768
      %v1772 = vsel %vm350, %v1750, 0
      %1774 = vmatpush.msra.mxu0 0.0
      %1775 = vmatpush.msra.mxu0 0.0
      %1776 = vmatpush.msra.mxu0 0.0
      %1777 = vmatpush.msra.mxu0 0.0
      %1778 = vmatpush.msra.mxu0 0.0
      %1779 = vmatpush.msra.mxu0 0.0
      %1780 = vmatpush.msra.mxu0 0.0
      %1781 = vmatpush.msra.mxu0 0.0
      %1782 = vmatpush.msra.mxu0 0.0
      %1783 = vmatpush.msra.mxu0 0.0
      %1784 = vmatpush.msra.mxu0 0.0
      %1785 = vmatpush.msra.mxu0 0.0
      %1786 = vmatpush.msra.mxu0 %v1762
      %1787 = vmatpush.msra.mxu0 %v1760
      %1788 = vmatpush.msra.mxu0 %v1758
      %1789 = vmatpush.msra.mxu0 %v1756
      %1790 = vmatmul.f32.gmra.mxu0 %v1772
      %v1791 = vpop.f32.mrf.mxu0
      %v1792 = vadd.f32 %v1769, %v1791
      %1793 = vdwg.mxu0
      %v1794 = vadd.f32 %v1340, %v1792
      %v1795 = vsel %vm350, %v1794, 0.0
      %1796 = vadd.xlane.f32.xlu0 %v1795
      %v1797 = vpop.xlane.xlu0 %1796
      %v1798 = vmul.f32 %v1797, %v360
      %v1799 = vsub.f32 %v1794, %v1798
      %v1800 = vmul.f32 %v1799, %v1799
      %v1801 = vsel %vm350, %v1800, 0.0
      %1802 = vadd.xlane.f32.xlu0 %v1801
      %v1803 = vpop.xlane.xlu0 %1802
      %v1804 = vmul.f32 %v1803, %v360
      %v1805 = vadd.f32 %v1804, 1e-05
      %v1806 = vrsqrt.pop %v1805
      %v1807 = vmul.f32 %v1806, %v1805
      %v1808 = vmul.f32 %v1807, %v1806
      %v1809 = vmul.f32 0.5, %v1808
      %v1810 = vsub.f32 1.5, %v1809
      %v1811 = vmul.f32 %v1806, %v1810
      %vm1812 = vweird.f32 %v1805
      %vm1813 = vweird.f32 %v1806
      %vm1814 = vmor %vm1812, %vm1813
      %v1815 = vsel %vm1814, %v1806, %v1811
      %v1816 = vmul.f32 %v1799, %v1815
      %v1817 = vmul.f32 %v1816, %v1393
      %v1818 = vadd.f32 %v1817, %v1395
      %v1819 = vperm.slane %v1358, 0
      %v1821 = vsel %vm350, %v1818, 0
      %1823 = vmatpush.msra.mxu0 0.0
      %1824 = vmatpush.msra.mxu0 0.0
      %1825 = vmatpush.msra.mxu0 0.0
      %1826 = vmatpush.msra.mxu0 0.0
      %1827 = vmatpush.msra.mxu0 0.0
      %1828 = vmatpush.msra.mxu0 0.0
      %1829 = vmatpush.msra.mxu0 0.0
      %1830 = vmatpush.msra.mxu0 0.0
      %1831 = vmatpush.msra.mxu0 0.0
      %1832 = vmatpush.msra.mxu0 0.0
      %1833 = vmatpush.msra.mxu0 0.0
      %1834 = vmatpush.msra.mxu0 0.0
      %1835 = vmatpush.msra.mxu0 %v1357
      %1836 = vmatpush.msra.mxu0 %v1356
      %1837 = vmatpush.msra.mxu0 %v1355
      %1838 = vmatpush.msra.mxu0 %v1354
      %1839 = vmatmul.f32.gmra.mxu0 %v1821
      %v1840 = vpop.f32.mrf.mxu0
      %v1841 = vadd.f32 %v1819, %v1840
      %1842 = vdwg.mxu0
      %1843 = vmatpush.msra.mxu0 0.0
      %1844 = vmatpush.msra.mxu0 0.0
      %1845 = vmatpush.msra.mxu0 0.0
      %1846 = vmatpush.msra.mxu0 0.0
      %1847 = vmatpush.msra.mxu0 0.0
      %1848 = vmatpush.msra.mxu0 0.0
      %1849 = vmatpush.msra.mxu0 0.0
      %1850 = vmatpush.msra.mxu0 0.0
      %1851 = vmatpush.msra.mxu0 0.0
      %1852 = vmatpush.msra.mxu0 0.0
      %1853 = vmatpush.msra.mxu0 0.0
      %1854 = vmatpush.msra.mxu0 0.0
      %1855 = vmatpush.msra.mxu0 %v1357
      %1856 = vmatpush.msra.mxu0 %v1356
      %1857 = vmatpush.msra.mxu0 %v1355
      %1858 = vmatpush.msra.mxu0 %v1354
      %1859 = vmatmul.f32.gmra.mxu0 %v834
      %v1860 = vpop.f32.mrf.mxu0
      %v1861 = vadd.f32 %v1819, %v1860
      %1862 = vdwg.mxu0
      %1864 = vrot.lane.b32.xlu0 %v1841, 120
      %v1865 = vpop.permute.xlu0 %1864
      %1866 = vrot.lane.b32.xlu0 %v1841, 112
      %v1867 = vpop.permute.xlu0 %1866
      %1868 = vrot.lane.b32.xlu0 %v1841, 104
      %v1869 = vpop.permute.xlu0 %1868
      %1871 = vrot.lane.b32.xlu0 %v1861, 120
      %v1872 = vpop.permute.xlu0 %1871
      %1873 = vrot.lane.b32.xlu0 %v1861, 112
      %v1874 = vpop.permute.xlu0 %1873
      %1875 = vrot.lane.b32.xlu0 %v1861, 104
      %v1876 = vpop.permute.xlu0 %1875
      %1877 = vrot.lane.b32.xlu0 %v1861, 96
      %v1878 = vpop.permute.xlu0 %1877
      %v1879 = vsel %vm417, %v1841, 0
      %v1881 = vsel %vm417, %v1878, 0
      %1883 = vmatpush.xpose.msra.mxu0 0.0
      %1884 = vmatpush.xpose.msra.mxu0 0.0
      %1885 = vmatpush.xpose.msra.mxu0 0.0
      %1886 = vmatpush.xpose.msra.mxu0 0.0
      %1887 = vmatpush.xpose.msra.mxu0 0.0
      %1888 = vmatpush.xpose.msra.mxu0 0.0
      %1889 = vmatpush.xpose.msra.mxu0 0.0
      %1890 = vmatpush.xpose.msra.mxu0 0.0
      %1891 = vmatpush.xpose.msra.mxu0 0.0
      %1892 = vmatpush.xpose.msra.mxu0 0.0
      %1893 = vmatpush.xpose.msra.mxu0 0.0
      %1894 = vmatpush.xpose.msra.mxu0 0.0
      %1895 = vmatpush.xpose.msra.mxu0 0.0
      %1896 = vmatpush.xpose.msra.mxu0 0.0
      %1897 = vmatpush.xpose.msra.mxu0 0.0
      %1898 = vmatpush.xpose.msra.mxu0 %v1881
      %1899 = vmatmul.f32.gmra.mxu0 %v1879
      %v1900 = vpop.f32.mrf.mxu0
      %v1901 = vadd.f32 0.0, %v1900
      %1902 = vdwg.mxu0
      %1903 = vrot.lane.b32.xlu0 %v1872, 96
      %v1904 = vpop.permute.xlu0 %1903
      %v1905 = vsel %vm417, %v1865, 0
      %v1907 = vsel %vm417, %v1904, 0
      %1909 = vmatpush.xpose.msra.mxu0 0.0
      %1910 = vmatpush.xpose.msra.mxu0 0.0
      %1911 = vmatpush.xpose.msra.mxu0 0.0
      %1912 = vmatpush.xpose.msra.mxu0 0.0
      %1913 = vmatpush.xpose.msra.mxu0 0.0
      %1914 = vmatpush.xpose.msra.mxu0 0.0
      %1915 = vmatpush.xpose.msra.mxu0 0.0
      %1916 = vmatpush.xpose.msra.mxu0 0.0
      %1917 = vmatpush.xpose.msra.mxu0 0.0
      %1918 = vmatpush.xpose.msra.mxu0 0.0
      %1919 = vmatpush.xpose.msra.mxu0 0.0
      %1920 = vmatpush.xpose.msra.mxu0 0.0
      %1921 = vmatpush.xpose.msra.mxu0 0.0
      %1922 = vmatpush.xpose.msra.mxu0 0.0
      %1923 = vmatpush.xpose.msra.mxu0 0.0
      %1924 = vmatpush.xpose.msra.mxu0 %v1907
      %1925 = vmatmul.f32.gmra.mxu0 %v1905
      %v1926 = vpop.f32.mrf.mxu0
      %v1927 = vadd.f32 0.0, %v1926
      %1928 = vdwg.mxu0
      %1929 = vrot.lane.b32.xlu0 %v1874, 96
      %v1930 = vpop.permute.xlu0 %1929
      %v1931 = vsel %vm417, %v1867, 0
      %v1933 = vsel %vm417, %v1930, 0
      %1935 = vmatpush.xpose.msra.mxu0 0.0
      %1936 = vmatpush.xpose.msra.mxu0 0.0
      %1937 = vmatpush.xpose.msra.mxu0 0.0
      %1938 = vmatpush.xpose.msra.mxu0 0.0
      %1939 = vmatpush.xpose.msra.mxu0 0.0
      %1940 = vmatpush.xpose.msra.mxu0 0.0
      %1941 = vmatpush.xpose.msra.mxu0 0.0
      %1942 = vmatpush.xpose.msra.mxu0 0.0
      %1943 = vmatpush.xpose.msra.mxu0 0.0
      %1944 = vmatpush.xpose.msra.mxu0 0.0
      %1945 = vmatpush.xpose.msra.mxu0 0.0
      %1946 = vmatpush.xpose.msra.mxu0 0.0
      %1947 = vmatpush.xpose.msra.mxu0 0.0
      %1948 = vmatpush.xpose.msra.mxu0 0.0
      %1949 = vmatpush.xpose.msra.mxu0 0.0
      %1950 = vmatpush.xpose.msra.mxu0 %v1933
      %1951 = vmatmul.f32.gmra.mxu0 %v1931
      %v1952 = vpop.f32.mrf.mxu0
      %v1953 = vadd.f32 0.0, %v1952
      %1954 = vdwg.mxu0
      %1955 = vrot.lane.b32.xlu0 %v1876, 96
      %v1956 = vpop.permute.xlu0 %1955
      %v1957 = vsel %vm417, %v1869, 0
      %v1959 = vsel %vm417, %v1956, 0
      %1961 = vmatpush.xpose.msra.mxu0 0.0
      %1962 = vmatpush.xpose.msra.mxu0 0.0
      %1963 = vmatpush.xpose.msra.mxu0 0.0
      %1964 = vmatpush.xpose.msra.mxu0 0.0
      %1965 = vmatpush.xpose.msra.mxu0 0.0
      %1966 = vmatpush.xpose.msra.mxu0 0.0
      %1967 = vmatpush.xpose.msra.mxu0 0.0
      %1968 = vmatpush.xpose.msra.mxu0 0.0
      %1969 = vmatpush.xpose.msra.mxu0 0.0
      %1970 = vmatpush.xpose.msra.mxu0 0.0
      %1971 = vmatpush.xpose.msra.mxu0 0.0
      %1972 = vmatpush.xpose.msra.mxu0 0.0
      %1973 = vmatpush.xpose.msra.mxu0 0.0
      %1974 = vmatpush.xpose.msra.mxu0 0.0
      %1975 = vmatpush.xpose.msra.mxu0 0.0
      %1976 = vmatpush.xpose.msra.mxu0 %v1959
      %1977 = vmatmul.f32.gmra.mxu0 %v1957
      %v1978 = vpop.f32.mrf.mxu0
      %v1979 = vadd.f32 0.0, %v1978
      %1980 = vdwg.mxu0
      %v1981 = vmul.f32 %v1901, 0.35355338
      %v1982 = vmul.f32 %v1927, 0.35355338
      %v1983 = vmul.f32 %v1953, 0.35355338
      %v1984 = vmul.f32 %v1979, 0.35355338
      %v1985 = vsel %vm417, %v1981, -inf
      %1986 = vmax.xlane.f32.xlu0 %v1985
      %v1987 = vpop.xlane.xlu0 %1986
      %v1988 = vsel %vm417, %v1982, -inf
      %1989 = vmax.xlane.f32.xlu0 %v1988
      %v1990 = vpop.xlane.xlu0 %1989
      %v1991 = vsel %vm417, %v1983, -inf
      %1992 = vmax.xlane.f32.xlu0 %v1991
      %v1993 = vpop.xlane.xlu0 %1992
      %v1994 = vsel %vm417, %v1984, -inf
      %1995 = vmax.xlane.f32.xlu0 %v1994
      %v1996 = vpop.xlane.xlu0 %1995
      %v1997 = vsub.f32 %v1981, %v1987
      %v1998 = vsub.f32 %v1982, %v1990
      %v1999 = vsub.f32 %v1983, %v1993
      %v2000 = vsub.f32 %v1984, %v1996
      %v2001 = vmul.f32 %v1997, 1.442695
      %v2002 = vpow.pop %v2001
      %v2003 = vmul.f32 %v1998, 1.442695
      %v2004 = vpow.pop %v2003
      %v2005 = vmul.f32 %v1999, 1.442695
      %v2006 = vpow.pop %v2005
      %v2007 = vmul.f32 %v2000, 1.442695
      %v2008 = vpow.pop %v2007
      %v2009 = vsel %vm417, %v2002, 0.0
      %2010 = vadd.xlane.f32.xlu0 %v2009
      %v2011 = vpop.xlane.xlu0 %2010
      %v2012 = vsel %vm417, %v2004, 0.0
      %2013 = vadd.xlane.f32.xlu0 %v2012
      %v2014 = vpop.xlane.xlu0 %2013
      %v2015 = vsel %vm417, %v2006, 0.0
      %2016 = vadd.xlane.f32.xlu0 %v2015
      %v2017 = vpop.xlane.xlu0 %2016
      %v2018 = vsel %vm417, %v2008, 0.0
      %2019 = vadd.xlane.f32.xlu0 %v2018
      %v2020 = vpop.xlane.xlu0 %2019
      %v2021 = vrcp.pop %v2011
      %v2022 = vmul.f32 %v2011, %v2021
      %v2023 = vsub.f32 1.0, %v2022
      %v2024 = vmul.f32 %v2021, %v2023
      %v2025 = vadd.f32 %v2021, %v2024
      %vm2026 = vweird.f32 %v2011
      %vm2027 = vweird.f32 %v2021
      %vm2028 = vmor %vm2026, %vm2027
      %v2029 = vsel %vm2028, %v2021, %v2025
      %v2030 = vand.u32 2147483647, %v2011
      %vm2031 = vcmp.eq.f32.partialorder %v2030, 8.507059e+37
      %v2032 = vand.u32 %v2011, 2147483648
      %v2033 = vor.u32 1.1754944e-38, %v2032
      %v2034 = vsel %vm2031, %v2033, %v2029
      %v2035 = vmul.f32 %v2002, %v2034
      %v2036 = vrcp.pop %v2014
      %v2037 = vmul.f32 %v2014, %v2036
      %v2038 = vsub.f32 1.0, %v2037
      %v2039 = vmul.f32 %v2036, %v2038
      %v2040 = vadd.f32 %v2036, %v2039
      %vm2041 = vweird.f32 %v2014
      %vm2042 = vweird.f32 %v2036
      %vm2043 = vmor %vm2041, %vm2042
      %v2044 = vsel %vm2043, %v2036, %v2040
      %v2045 = vand.u32 2147483647, %v2014
      %vm2046 = vcmp.eq.f32.partialorder %v2045, 8.507059e+37
      %v2047 = vand.u32 %v2014, 2147483648
      %v2048 = vor.u32 1.1754944e-38, %v2047
      %v2049 = vsel %vm2046, %v2048, %v2044
      %v2050 = vmul.f32 %v2004, %v2049
      %v2051 = vrcp.pop %v2017
      %v2052 = vmul.f32 %v2017, %v2051
      %v2053 = vsub.f32 1.0, %v2052
      %v2054 = vmul.f32 %v2051, %v2053
      %v2055 = vadd.f32 %v2051, %v2054
      %vm2056 = vweird.f32 %v2017
      %vm2057 = vweird.f32 %v2051
      %vm2058 = vmor %vm2056, %vm2057
      %v2059 = vsel %vm2058, %v2051, %v2055
      %v2060 = vand.u32 2147483647, %v2017
      %vm2061 = vcmp.eq.f32.partialorder %v2060, 8.507059e+37
      %v2062 = vand.u32 %v2017, 2147483648
      %v2063 = vor.u32 1.1754944e-38, %v2062
      %v2064 = vsel %vm2061, %v2063, %v2059
      %v2065 = vmul.f32 %v2006, %v2064
      %v2066 = vrcp.pop %v2020
      %v2067 = vmul.f32 %v2020, %v2066
      %v2068 = vsub.f32 1.0, %v2067
      %v2069 = vmul.f32 %v2066, %v2068
      %v2070 = vadd.f32 %v2066, %v2069
      %vm2071 = vweird.f32 %v2020
      %vm2072 = vweird.f32 %v2066
      %vm2073 = vmor %vm2071, %vm2072
      %v2074 = vsel %vm2073, %v2066, %v2070
      %v2075 = vand.u32 2147483647, %v2020
      %vm2076 = vcmp.eq.f32.partialorder %v2075, 8.507059e+37
      %v2077 = vand.u32 %v2020, 2147483648
      %v2078 = vor.u32 1.1754944e-38, %v2077
      %v2079 = vsel %vm2076, %v2078, %v2074
      %v2080 = vmul.f32 %v2008, %v2079
      %2081 = vrot.lane.b32.xlu0 %v1861, 64
      %v2082 = vpop.permute.xlu0 %2081
      %v2085 = vsel %vm417, %v2035, 0
      %2087 = vmatpush.msra.mxu0 0.0
      %2088 = vmatpush.msra.mxu0 0.0
      %2089 = vmatpush.msra.mxu0 0.0
      %2090 = vmatpush.msra.mxu0 0.0
      %2091 = vmatpush.msra.mxu0 0.0
      %2092 = vmatpush.msra.mxu0 0.0
      %2093 = vmatpush.msra.mxu0 0.0
      %2094 = vmatpush.msra.mxu0 0.0
      %2095 = vmatpush.msra.mxu0 0.0
      %2096 = vmatpush.msra.mxu0 0.0
      %2097 = vmatpush.msra.mxu0 0.0
      %2098 = vmatpush.msra.mxu0 0.0
      %2099 = vmatpush.msra.mxu0 0.0
      %2100 = vmatpush.msra.mxu0 0.0
      %2101 = vmatpush.msra.mxu0 0.0
      %2102 = vmatpush.msra.mxu0 %v2082
      %2103 = vmatmul.f32.gmra.mxu0 %v2085
      %v2104 = vpop.f32.mrf.mxu0
      %v2105 = vadd.f32 0.0, %v2104
      %2106 = vdwg.mxu0
      %2107 = vrot.lane.b32.xlu0 %v1872, 64
      %v2108 = vpop.permute.xlu0 %2107
      %v2111 = vsel %vm417, %v2050, 0
      %2113 = vmatpush.msra.mxu0 0.0
      %2114 = vmatpush.msra.mxu0 0.0
      %2115 = vmatpush.msra.mxu0 0.0
      %2116 = vmatpush.msra.mxu0 0.0
      %2117 = vmatpush.msra.mxu0 0.0
      %2118 = vmatpush.msra.mxu0 0.0
      %2119 = vmatpush.msra.mxu0 0.0
      %2120 = vmatpush.msra.mxu0 0.0
      %2121 = vmatpush.msra.mxu0 0.0
      %2122 = vmatpush.msra.mxu0 0.0
      %2123 = vmatpush.msra.mxu0 0.0
      %2124 = vmatpush.msra.mxu0 0.0
      %2125 = vmatpush.msra.mxu0 0.0
      %2126 = vmatpush.msra.mxu0 0.0
      %2127 = vmatpush.msra.mxu0 0.0
      %2128 = vmatpush.msra.mxu0 %v2108
      %2129 = vmatmul.f32.gmra.mxu0 %v2111
      %v2130 = vpop.f32.mrf.mxu0
      %v2131 = vadd.f32 0.0, %v2130
      %2132 = vdwg.mxu0
      %2133 = vrot.lane.b32.xlu0 %v1874, 64
      %v2134 = vpop.permute.xlu0 %2133
      %v2137 = vsel %vm417, %v2065, 0
      %2139 = vmatpush.msra.mxu0 0.0
      %2140 = vmatpush.msra.mxu0 0.0
      %2141 = vmatpush.msra.mxu0 0.0
      %2142 = vmatpush.msra.mxu0 0.0
      %2143 = vmatpush.msra.mxu0 0.0
      %2144 = vmatpush.msra.mxu0 0.0
      %2145 = vmatpush.msra.mxu0 0.0
      %2146 = vmatpush.msra.mxu0 0.0
      %2147 = vmatpush.msra.mxu0 0.0
      %2148 = vmatpush.msra.mxu0 0.0
      %2149 = vmatpush.msra.mxu0 0.0
      %2150 = vmatpush.msra.mxu0 0.0
      %2151 = vmatpush.msra.mxu0 0.0
      %2152 = vmatpush.msra.mxu0 0.0
      %2153 = vmatpush.msra.mxu0 0.0
      %2154 = vmatpush.msra.mxu0 %v2134
      %2155 = vmatmul.f32.gmra.mxu0 %v2137
      %v2156 = vpop.f32.mrf.mxu0
      %v2157 = vadd.f32 0.0, %v2156
      %2158 = vdwg.mxu0
      %2159 = vrot.lane.b32.xlu0 %v1876, 64
      %v2160 = vpop.permute.xlu0 %2159
      %v2163 = vsel %vm417, %v2080, 0
      %2165 = vmatpush.msra.mxu0 0.0
      %2166 = vmatpush.msra.mxu0 0.0
      %2167 = vmatpush.msra.mxu0 0.0
      %2168 = vmatpush.msra.mxu0 0.0
      %2169 = vmatpush.msra.mxu0 0.0
      %2170 = vmatpush.msra.mxu0 0.0
      %2171 = vmatpush.msra.mxu0 0.0
      %2172 = vmatpush.msra.mxu0 0.0
      %2173 = vmatpush.msra.mxu0 0.0
      %2174 = vmatpush.msra.mxu0 0.0
      %2175 = vmatpush.msra.mxu0 0.0
      %2176 = vmatpush.msra.mxu0 0.0
      %2177 = vmatpush.msra.mxu0 0.0
      %2178 = vmatpush.msra.mxu0 0.0
      %2179 = vmatpush.msra.mxu0 0.0
      %2180 = vmatpush.msra.mxu0 %v2160
      %2181 = vmatmul.f32.gmra.mxu0 %v2163
      %v2182 = vpop.f32.mrf.mxu0
      %v2183 = vadd.f32 0.0, %v2182
      %2184 = vdwg.mxu0
      %2186 = vrot.lane.b32.xlu0 %v2131, 8
      %v2187 = vpop.permute.xlu0 %2186
      %2190 = vrot.lane.b32.xlu0 %v2157, 16
      %v2191 = vpop.permute.xlu0 %2190
      %2194 = vrot.lane.b32.xlu0 %v2183, 24
      %v2195 = vpop.permute.xlu0 %2194
      %v2197 = vsel %vm417, %v2105, %v2187
      %v2198 = vsel %vm737, %v2197, %v2191
      %v2199 = vsel %vm739, %v2198, %v2195
      %2204 = vrot.lane.b32.xlu0 %v1354, 32
      %v2205 = vpop.permute.xlu0 %2204
      %2206 = vrot.lane.b32.xlu0 %v1355, 32
      %v2207 = vpop.permute.xlu0 %2206
      %2208 = vrot.lane.b32.xlu0 %v1356, 32
      %v2209 = vpop.permute.xlu0 %2208
      %2210 = vrot.lane.b32.xlu0 %v1357, 32
      %v2211 = vpop.permute.xlu0 %2210
      %2217 = vrot.lane.b32.xlu0 %v1819, 32
      %v2218 = vpop.permute.xlu0 %2217
      %v2221 = vsel %vm350, %v2199, 0
      %2223 = vmatpush.msra.mxu0 0.0
      %2224 = vmatpush.msra.mxu0 0.0
      %2225 = vmatpush.msra.mxu0 0.0
      %2226 = vmatpush.msra.mxu0 0.0
      %2227 = vmatpush.msra.mxu0 0.0
      %2228 = vmatpush.msra.mxu0 0.0
      %2229 = vmatpush.msra.mxu0 0.0
      %2230 = vmatpush.msra.mxu0 0.0
      %2231 = vmatpush.msra.mxu0 0.0
      %2232 = vmatpush.msra.mxu0 0.0
      %2233 = vmatpush.msra.mxu0 0.0
      %2234 = vmatpush.msra.mxu0 0.0
      %2235 = vmatpush.msra.mxu0 %v2211
      %2236 = vmatpush.msra.mxu0 %v2209
      %2237 = vmatpush.msra.mxu0 %v2207
      %2238 = vmatpush.msra.mxu0 %v2205
      %2239 = vmatmul.f32.gmra.mxu0 %v2221
      %v2240 = vpop.f32.mrf.mxu0
      %v2241 = vadd.f32 %v2218, %v2240
      %2242 = vdwg.mxu0
      %v2243 = vadd.f32 %v2241, %v1818
      %v2244 = vsel %vm350, %v2243, 0.0
      %2245 = vadd.xlane.f32.xlu0 %v2244
      %v2246 = vpop.xlane.xlu0 %2245
      %v2247 = vmul.f32 %v2246, %v360
      %v2248 = vsub.f32 %v2243, %v2247
      %v2249 = vmul.f32 %v2248, %v2248
      %v2250 = vsel %vm350, %v2249, 0.0
      %2251 = vadd.xlane.f32.xlu0 %v2250
      %v2252 = vpop.xlane.xlu0 %2251
      %v2253 = vmul.f32 %v2252, %v360
      %v2254 = vadd.f32 %v2253, 1e-05
      %v2255 = vrsqrt.pop %v2254
      %v2256 = vmul.f32 %v2255, %v2254
      %v2257 = vmul.f32 %v2256, %v2255
      %v2258 = vmul.f32 0.5, %v2257
      %v2259 = vsub.f32 1.5, %v2258
      %v2260 = vmul.f32 %v2255, %v2259
      %vm2261 = vweird.f32 %v2254
      %vm2262 = vweird.f32 %v2255
      %vm2263 = vmor %vm2261, %vm2262
      %v2264 = vsel %vm2263, %v2255, %v2260
      %v2265 = vmul.f32 %v2248, %v2264
      %v2266 = vperm.slane %v1343, 0
      %v2267 = vmul.f32 %v2265, %v2266
      %v2268 = vperm.slane %v1344, 0
      %v2269 = vadd.f32 %v2267, %v2268
      %v2270 = vadd.f32 %v2269, %v1818
      %v2271 = vperm.slane %v1348, 0
      %v2273 = vsel %vm350, %v2270, 0
      %2275 = vmatpush.msra.mxu0 0.0
      %2276 = vmatpush.msra.mxu0 0.0
      %2277 = vmatpush.msra.mxu0 0.0
      %2278 = vmatpush.msra.mxu0 0.0
      %2279 = vmatpush.msra.mxu0 0.0
      %2280 = vmatpush.msra.mxu0 0.0
      %2281 = vmatpush.msra.mxu0 0.0
      %2282 = vmatpush.msra.mxu0 0.0
      %2283 = vmatpush.msra.mxu0 0.0
      %2284 = vmatpush.msra.mxu0 0.0
      %2285 = vmatpush.msra.mxu0 0.0
      %2286 = vmatpush.msra.mxu0 0.0
      %2287 = vmatpush.msra.mxu0 %v1362
      %2288 = vmatpush.msra.mxu0 %v1361
      %2289 = vmatpush.msra.mxu0 %v1360
      %2290 = vmatpush.msra.mxu0 %v1359
      %2291 = vmatmul.f32.gmra.mxu0 %v2273
      %v2292 = vpop.f32.mrf.mxu0
      %v2293 = vadd.f32 %v2271, %v2292
      %2294 = vdwg.mxu0
      %v2295 = vmax.f32 %v2293, 0.0
      %v2296 = vperm.slane %v1347, 0
      %v2298 = vsel %vm1290, %v2295, 0
      %2300 = vmatpush.msra.mxu0 0.0
      %2301 = vmatpush.msra.mxu0 0.0
      %2302 = vmatpush.msra.mxu0 0.0
      %2303 = vmatpush.msra.mxu0 0.0
      %2304 = vmatpush.msra.mxu0 0.0
      %2305 = vmatpush.msra.mxu0 0.0
      %2306 = vmatpush.msra.mxu0 0.0
      %2307 = vmatpush.msra.mxu0 0.0
      %2308 = vmatpush.msra.mxu0 %v1370
      %2309 = vmatpush.msra.mxu0 %v1369
      %2310 = vmatpush.msra.mxu0 %v1368
      %2311 = vmatpush.msra.mxu0 %v1367
      %2312 = vmatpush.msra.mxu0 %v1366
      %2313 = vmatpush.msra.mxu0 %v1365
      %2314 = vmatpush.msra.mxu0 %v1364
      %2315 = vmatpush.msra.mxu0 %v1363
      %2316 = vmatmul.f32.gmra.mxu0 %v2298
      %v2317 = vpop.f32.mrf.mxu0
      %v2318 = vadd.f32 %v2296, %v2317
      %2319 = vdwg.mxu0
      %v2320 = vsel %vm350, %v2318, 0.0
      %2321 = vadd.xlane.f32.xlu0 %v2320
      %v2322 = vpop.xlane.xlu0 %2321
      %v2323 = vmul.f32 %v2322, %v360
      %v2324 = vsub.f32 %v2318, %v2323
      %v2325 = vmul.f32 %v2324, %v2324
      %v2326 = vsel %vm350, %v2325, 0.0
      %2327 = vadd.xlane.f32.xlu0 %v2326
      %v2328 = vpop.xlane.xlu0 %2327
      %v2329 = vmul.f32 %v2328, %v360
      %v2330 = vadd.f32 %v2329, 1e-05
      %v2331 = vrsqrt.pop %v2330
      %v2332 = vmul.f32 %v2331, %v2330
      %v2333 = vmul.f32 %v2332, %v2331
      %v2334 = vmul.f32 0.5, %v2333
      %v2335 = vsub.f32 1.5, %v2334
      %v2336 = vmul.f32 %v2331, %v2335
      %vm2337 = vweird.f32 %v2330
      %vm2338 = vweird.f32 %v2331
      %vm2339 = vmor %vm2337, %vm2338
      %v2340 = vsel %vm2339, %v2331, %v2336
      %v2341 = vmul.f32 %v2324, %v2340
      %v2342 = vperm.slane %v1345, 0
      %v2343 = vmul.f32 %v2341, %v2342
      %v2344 = vperm.slane %v1346, 0
      %v2345 = vadd.f32 %v2343, %v2344
      %v2346 = vadd.f32 %v2345, %v2270
      %v2347 = vld [vmem:[%s6 + $0x10] sm:$0x1]
      %v2348 = vld [vmem:[%s6 + $0x11] sm:$0x1]
      %v2349 = vsel %vm350, %v2346, 0.0
      %2350 = vadd.xlane.f32.xlu0 %v2349
      %v2351 = vpop.xlane.xlu0 %2350
      %v2352 = vmul.f32 %v2351, %v360
      %v2353 = vsub.f32 %v2346, %v2352
      %v2354 = vmul.f32 %v2353, %v2353
      %v2355 = vsel %vm350, %v2354, 0.0
      %2356 = vadd.xlane.f32.xlu0 %v2355
      %v2357 = vpop.xlane.xlu0 %2356
      %v2358 = vmul.f32 %v2357, %v360
      %v2359 = vadd.f32 %v2358, 1e-05
      %v2360 = vrsqrt.pop %v2359
      %v2361 = vmul.f32 %v2360, %v2359
      %v2362 = vmul.f32 %v2361, %v2360
      %v2363 = vmul.f32 0.5, %v2362
      %v2364 = vsub.f32 1.5, %v2363
      %v2365 = vmul.f32 %v2360, %v2364
      %vm2366 = vweird.f32 %v2359
      %vm2367 = vweird.f32 %v2360
      %vm2368 = vmor %vm2366, %vm2367
      %v2369 = vsel %vm2368, %v2360, %v2365
      %v2370 = vmul.f32 %v2353, %v2369
      %v2371 = vperm.slane %v2347, 0
      %v2372 = vmul.f32 %v2370, %v2371
      %v2373 = vperm.slane %v2348, 0
      %v2374 = vadd.f32 %v2372, %v2373
      %v2375 = vld [vmem:[%s7] sm:$0xff]
      %v2376 = vld [vmem:[%s7 + $0x8] sm:$0xff]
      %v2377 = vld [vmem:[%s7 + $0x10] sm:$0xff]
      %v2378 = vld [vmem:[%s7 + $0x18] sm:$0xff]
      %v2379 = vld [vmem:[%s7 + $0x20] sm:$0x1]
      %v2380 = vperm.slane %v2379, 0
      %v2382 = vsel %vm350, %v2374, 0
      %2384 = vmatpush.msra.mxu0 0.0
      %2385 = vmatpush.msra.mxu0 0.0
      %2386 = vmatpush.msra.mxu0 0.0
      %2387 = vmatpush.msra.mxu0 0.0
      %2388 = vmatpush.msra.mxu0 0.0
      %2389 = vmatpush.msra.mxu0 0.0
      %2390 = vmatpush.msra.mxu0 0.0
      %2391 = vmatpush.msra.mxu0 0.0
      %2392 = vmatpush.msra.mxu0 0.0
      %2393 = vmatpush.msra.mxu0 0.0
      %2394 = vmatpush.msra.mxu0 0.0
      %2395 = vmatpush.msra.mxu0 0.0
      %2396 = vmatpush.msra.mxu0 %v2378
      %2397 = vmatpush.msra.mxu0 %v2377
      %2398 = vmatpush.msra.mxu0 %v2376
      %2399 = vmatpush.msra.mxu0 %v2375
      %2400 = vmatmul.f32.gmra.mxu0 %v2382
      %v2401 = vpop.f32.mrf.mxu0
      %v2402 = vadd.f32 %v2380, %v2401
      %2403 = vdwg.mxu0
      %2404 = vst [vmem:[%s317] sm:$0xff] %v2402
      %p2405 = scmp.lt.s32.totalorder %s19, 1
      %s2406 = scalar_select %p2405, %s19, 1
      %s2407 = smul.addr %s2406, 8
      %s2408 = scalar_lea.vmem %s8, %s2407
      // Predicated region
      $region53: #{decoder_forward.1} parent=51 // pred_check
        %p2409 = pneg %p215
      $region54: #{decoder_forward.1} parent=51 // pred_check_branch
        %2411 = sbr.rel (%p2409) target = $region56
      $region55: #{decoder_forward.1} parent=51 // pred_region
        _
      $region56: #{decoder_forward.1} parent=51 // pred_fallthru
        _
    $region52: #{decoder_forward.1} parent=5 // pred_fallthru
      _
    %p2412 = scmp.le.s32.totalorder 2, %s14
    // Predicated region
    $region57: #{decoder_forward.1} parent=5 // pred_check
      %p2413 = pneg %p2412
    $region58: #{decoder_forward.1} parent=5 // pred_check_branch
      %2415 = sbr.rel (%p2413) target = $region60
    $region59: #{decoder_forward.1} parent=5 // pred_region
      %s2416 = ssub.s32 %s14, 2
      // Predicated region
      $region61: #{decoder_forward.1} parent=59 // pred_check
        %p2417 = pneg %p221
      $region62: #{decoder_forward.1} parent=59 // pred_check_branch
        %2419 = sbr.rel (%p2417) target = $region64
      $region63: #{decoder_forward.1} parent=59 // pred_region
        %p2420 = scmp.lt.s32.totalorder %s20, 1
        %s2421 = scalar_select %p2420, %s20, 1
        %s2422 = smul.addr %s2421, 8
        %s2423 = scalar_lea.vmem %s8, %s2422
      $region64: #{decoder_forward.1} parent=59 // pred_fallthru
        _
    $region60: #{decoder_forward.1} parent=5 // pred_fallthru
      _
  $region6: #{decoder_forward.1} parent=0 // loop_footer
    %s18 = sadd.s32 1, %s14
  $region7: #{decoder_forward.1} parent=0 // loop_footer_branch
    %13 = sbr.rel target = $region3
  $region8: #{decoder_forward.1} parent=0 // loop_exit
    _

</llo_original>
